<compile_context>
chip_gen: v7x
topology: tpu7x:2x2x1
jax: 0.10.0
libtpu: 0.0.40
codegen_flags: <defaults>
</compile_context>

<pallas_src>
import jax
import jax.numpy as jnp
from jax.experimental import pallas as pl

C_IN = 4        # input channels to the synthetic backbone
C_OUT = 1280    # backbone feature channels (matches nn.Linear(1280*2, nclass))
NCLASS = 6
H = 8
W = 8
B = 2


def _make_dain_fused_kernel(b, hw, c_out):
    inv_hw = 1.0 / float(hw)

    def kernel(x_img_ref, x_diff_ref, w1_ref, b1_ref, w2_ref, b2_ref,
               fcw_ref, fcb_ref, o_ref):
        # Per-image average-pooling matrix, built in-register (no DMA):
        # pool[i, j] = 1/hw if row j of the (b*hw, c_out) feature matrix belongs
        # to image i, else 0.
        row = jax.lax.broadcasted_iota(jnp.int32, (b, b * hw), 0)
        col = jax.lax.broadcasted_iota(jnp.int32, (b, b * hw), 1)
        pool = jnp.where((col >= row * hw) & (col < (row + 1) * hw),
                         inv_hw, 0.0).astype(jnp.float32)

        def backbone(x, w, bias):
            # (b*hw, c_in) @ (c_in, c_out) -> (b*hw, c_out): lane-dense output.
            f = jnp.dot(x, w, preferred_element_type=jnp.float32)
            f = jnp.maximum(f + bias, 0.0)           # synthetic backbone ReLU
            # Spatial mean AFTER the nonlinearity (== x.mean(3).mean(2)).
            return jnp.dot(pool, f, preferred_element_type=jnp.float32)  # (b, c_out)

        img_f = backbone(x_img_ref[...], w1_ref[...], b1_ref[...])
        diff_f = backbone(x_diff_ref[...], w2_ref[...], b2_ref[...])

        # fc(cat([img_f, diff_f + img_f]))
        #   = img_f @ (W_top + W_bot).T + diff_f @ W_bot.T + fc_b
        fcw = fcw_ref[...]                  # (nclass, 2*c_out), PyTorch layout
        w_top = fcw[:, :c_out]              # lane-aligned static slices
        w_bot = fcw[:, c_out:]
        dn = (((1,), (1,)), ((), ()))       # contract the feature axis of both
        out = (jax.lax.dot_general(img_f, w_top + w_bot, dn,
                                   preferred_element_type=jnp.float32)
               + jax.lax.dot_general(diff_f, w_bot, dn,
                                     preferred_element_type=jnp.float32)
               + fcb_ref[...])
        o_ref[...] = out.astype(o_ref.dtype)

    return kernel


@jax.jit
def dain_forward(img, diff_img, params):
    bn, ci, hh, ww = img.shape
    hw = hh * ww
    # NCHW -> (B*H*W, C_IN). Tiny transpose (512 elems) folded by XLA; rows of
    # each image are contiguous so the in-kernel pooling matmul averages per image.
    x_img = jnp.transpose(img, (0, 2, 3, 1)).reshape(bn * hw, ci)
    x_diff = jnp.transpose(diff_img, (0, 2, 3, 1)).reshape(bn * hw, ci)

    kernel = _make_dain_fused_kernel(bn, hw, C_OUT)
    # No grid: every operand is a single whole-array VMEM block.
    # Total footprint (~0.3 MB) fits trivially on v5e/v6e/v7x.
    return pl.pallas_call(
        kernel,
        out_shape=jax.ShapeDtypeStruct((bn, NCLASS), jnp.float32),
    )(x_img, x_diff,
      params["w1"], params["b1"], params["w2"], params["b2"],
      params["fc_w"], params["fc_b"].reshape(1, NCLASS))


# Pure-JAX reference for correctness checking
def dain_reference(img, diff_img, params):
    def feats(x, w, b):
        f = jnp.einsum("bchw,ck->bkhw", x, w) + b.reshape(1, -1, 1, 1)
        f = jnp.maximum(f, 0.0)
        return f.mean(axis=3).mean(axis=2)
    img_f = feats(img, params["w1"], params["b1"])
    diff_f = feats(diff_img, params["w2"], params["b2"])
    diff_f = diff_f + img_f
    cat = jnp.concatenate([img_f, diff_f], axis=1)
    return cat @ params["fc_w"].T + params["fc_b"]


if __name__ == "__main__":
    key = jax.random.PRNGKey(0)
    k_img, k_diff, k_w1, k_b1, k_w2, k_b2, k_fcw, k_fcb = jax.random.split(key, 8)

    img = jax.random.normal(k_img, (B, C_IN, H, W), dtype=jnp.float32)
    diff_img = jax.random.normal(k_diff, (B, C_IN, H, W), dtype=jnp.float32)

    params = {
        # Backbone weights stored once in kernel-friendly (C_IN, C_OUT)/(1, C_OUT)
        # layout (one-time transpose of the PyTorch conv layout, not per call).
        "w1": jax.random.normal(k_w1, (C_IN, C_OUT), dtype=jnp.float32) * 0.05,
        "b1": jax.random.normal(k_b1, (1, C_OUT), dtype=jnp.float32) * 0.05,
        "w2": jax.random.normal(k_w2, (C_IN, C_OUT), dtype=jnp.float32) * 0.05,
        "b2": jax.random.normal(k_b2, (1, C_OUT), dtype=jnp.float32) * 0.05,
        # fc kept in PyTorch nn.Linear layout (NCLASS, 2*C_OUT); no transpose at
        # call time — the kernel contracts via dot_general.
        "fc_w": jax.random.normal(k_fcw, (NCLASS, 2 * C_OUT), dtype=jnp.float32) * 0.02,
        "fc_b": jax.random.normal(k_fcb, (NCLASS,), dtype=jnp.float32) * 0.02,
    }

    out = jax.block_until_ready(dain_forward(img, diff_img, params))
    ref = jax.block_until_ready(dain_reference(img, diff_img, params))

    assert out.shape == (B, NCLASS), out.shape
    assert jnp.allclose(out, ref, atol=1e-4, rtol=1e-4), (out, ref)
    print("KERNEL_OK")
</pallas_src>

<mosaic_0001>
module attributes {stable_mosaic.version = 11 : i64} {
  func.func @kernel(%arg0: memref<128x4xf32, #tpu.memory_space<vmem>>, %arg1: memref<128x4xf32, #tpu.memory_space<vmem>>, %arg2: memref<4x1280xf32, #tpu.memory_space<vmem>>, %arg3: memref<1x1280xf32, #tpu.memory_space<vmem>>, %arg4: memref<4x1280xf32, #tpu.memory_space<vmem>>, %arg5: memref<1x1280xf32, #tpu.memory_space<vmem>>, %arg6: memref<6x2560xf32, #tpu.memory_space<vmem>>, %arg7: memref<1x6xf32, #tpu.memory_space<vmem>>, %arg8: memref<2x6xf32, #tpu.memory_space<vmem>>) attributes {dimension_semantics = [], scalar_prefetch = 0 : i64, scratch_operands = 0 : i64, tpu.core_type = #tpu.core_type<tc>} {
    %0 = tpu.iota {dimensions = array<i32: 0>} : vector<2x128xi32>
    %1 = tpu.iota {dimensions = array<i32: 1>} : vector<2x128xi32>
    %c64_i32 = arith.constant 64 : i32
    %2 = vector.broadcast %c64_i32 : i32 to vector<2x128xi32>
    %3 = arith.muli %0, %2 : vector<2x128xi32>
    %4 = arith.cmpi sge, %1, %3 : vector<2x128xi32>
    %c1_i32 = arith.constant 1 : i32
    %5 = vector.broadcast %c1_i32 : i32 to vector<2x128xi32>
    %6 = arith.addi %0, %5 : vector<2x128xi32>
    %c64_i32_0 = arith.constant 64 : i32
    %7 = vector.broadcast %c64_i32_0 : i32 to vector<2x128xi32>
    %8 = arith.muli %6, %7 : vector<2x128xi32>
    %9 = arith.cmpi slt, %1, %8 : vector<2x128xi32>
    %10 = arith.andi %4, %9 : vector<2x128xi1>
    %cst = arith.constant 1.562500e-02 : f32
    %cst_1 = arith.constant 0.000000e+00 : f32
    %11 = vector.broadcast %cst : f32 to vector<2x128xf32>
    %12 = vector.broadcast %cst_1 : f32 to vector<2x128xf32>
    %13 = arith.select %10, %11, %12 : vector<2x128xi1>, vector<2x128xf32>
    %c0 = arith.constant 0 : index
    %c0_2 = arith.constant 0 : index
    %14 = vector.load %arg0[%c0, %c0_2] : memref<128x4xf32, #tpu.memory_space<vmem>>, vector<128x4xf32>
    %c0_3 = arith.constant 0 : index
    %c0_4 = arith.constant 0 : index
    %15 = vector.load %arg2[%c0_3, %c0_4] : memref<4x1280xf32, #tpu.memory_space<vmem>>, vector<4x1280xf32>
    %c0_5 = arith.constant 0 : index
    %c0_6 = arith.constant 0 : index
    %16 = vector.load %arg3[%c0_5, %c0_6] : memref<1x1280xf32, #tpu.memory_space<vmem>>, vector<1x1280xf32>
    %cst_7 = arith.constant dense<0.000000e+00> : vector<128x1280xf32>
    %17 = tpu.matmul %14, %15, %cst_7 {dimension_numbers = #tpu.dot_dimension_numbers<[1], [0], [0], [1], [0, 0, 1, 1], [], []>} : vector<128x4xf32>, vector<4x1280xf32>, vector<128x1280xf32> -> vector<128x1280xf32>
    %18 = vector.broadcast %16 : vector<1x1280xf32> to vector<128x1280xf32>
    %19 = arith.addf %17, %18 : vector<128x1280xf32>
    %cst_8 = arith.constant 0.000000e+00 : f32
    %20 = vector.broadcast %cst_8 : f32 to vector<128x1280xf32>
    %21 = arith.maximumf %19, %20 : vector<128x1280xf32>
    %cst_9 = arith.constant dense<0.000000e+00> : vector<2x1280xf32>
    %22 = tpu.matmul %13, %21, %cst_9 {dimension_numbers = #tpu.dot_dimension_numbers<[1], [0], [0], [1], [0, 0, 1, 1], [], []>} : vector<2x128xf32>, vector<128x1280xf32>, vector<2x1280xf32> -> vector<2x1280xf32>
    %c0_10 = arith.constant 0 : index
    %c0_11 = arith.constant 0 : index
    %23 = vector.load %arg1[%c0_10, %c0_11] : memref<128x4xf32, #tpu.memory_space<vmem>>, vector<128x4xf32>
    %c0_12 = arith.constant 0 : index
    %c0_13 = arith.constant 0 : index
    %24 = vector.load %arg4[%c0_12, %c0_13] : memref<4x1280xf32, #tpu.memory_space<vmem>>, vector<4x1280xf32>
    %c0_14 = arith.constant 0 : index
    %c0_15 = arith.constant 0 : index
    %25 = vector.load %arg5[%c0_14, %c0_15] : memref<1x1280xf32, #tpu.memory_space<vmem>>, vector<1x1280xf32>
    %cst_16 = arith.constant dense<0.000000e+00> : vector<128x1280xf32>
    %26 = tpu.matmul %23, %24, %cst_16 {dimension_numbers = #tpu.dot_dimension_numbers<[1], [0], [0], [1], [0, 0, 1, 1], [], []>} : vector<128x4xf32>, vector<4x1280xf32>, vector<128x1280xf32> -> vector<128x1280xf32>
    %27 = vector.broadcast %25 : vector<1x1280xf32> to vector<128x1280xf32>
    %28 = arith.addf %26, %27 : vector<128x1280xf32>
    %cst_17 = arith.constant 0.000000e+00 : f32
    %29 = vector.broadcast %cst_17 : f32 to vector<128x1280xf32>
    %30 = arith.maximumf %28, %29 : vector<128x1280xf32>
    %cst_18 = arith.constant dense<0.000000e+00> : vector<2x1280xf32>
    %31 = tpu.matmul %13, %30, %cst_18 {dimension_numbers = #tpu.dot_dimension_numbers<[1], [0], [0], [1], [0, 0, 1, 1], [], []>} : vector<2x128xf32>, vector<128x1280xf32>, vector<2x1280xf32> -> vector<2x1280xf32>
    %c0_19 = arith.constant 0 : index
    %c0_20 = arith.constant 0 : index
    %32 = vector.load %arg6[%c0_19, %c0_20] : memref<6x2560xf32, #tpu.memory_space<vmem>>, vector<6x2560xf32>
    %33 = vector.extract_strided_slice %32 {offsets = [0, 0], sizes = [6, 1280], strides = [1, 1]} : vector<6x2560xf32> to vector<6x1280xf32>
    %34 = vector.extract_strided_slice %32 {offsets = [0, 1280], sizes = [6, 1280], strides = [1, 1]} : vector<6x2560xf32> to vector<6x1280xf32>
    %35 = arith.addf %33, %34 : vector<6x1280xf32>
    %cst_21 = arith.constant dense<0.000000e+00> : vector<2x6xf32>
    %36 = tpu.matmul %22, %35, %cst_21 {dimension_numbers = #tpu.dot_dimension_numbers<[1], [1], [0], [0], [0, 0, 1, 0], [], []>} : vector<2x1280xf32>, vector<6x1280xf32>, vector<2x6xf32> -> vector<2x6xf32>
    %cst_22 = arith.constant dense<0.000000e+00> : vector<2x6xf32>
    %37 = tpu.matmul %31, %34, %cst_22 {dimension_numbers = #tpu.dot_dimension_numbers<[1], [1], [0], [0], [0, 0, 1, 0], [], []>} : vector<2x1280xf32>, vector<6x1280xf32>, vector<2x6xf32> -> vector<2x6xf32>
    %38 = arith.addf %36, %37 : vector<2x6xf32>
    %c0_23 = arith.constant 0 : index
    %c0_24 = arith.constant 0 : index
    %39 = vector.load %arg7[%c0_23, %c0_24] : memref<1x6xf32, #tpu.memory_space<vmem>>, vector<1x6xf32>
    %40 = vector.broadcast %39 : vector<1x6xf32> to vector<2x6xf32>
    %41 = arith.addf %38, %40 : vector<2x6xf32>
    %c0_25 = arith.constant 0 : index
    %c0_26 = arith.constant 0 : index
    %42 = vector.load %arg8[%c0_25, %c0_26] : memref<2x6xf32, #tpu.memory_space<vmem>>, vector<2x6xf32>
    tpu.vector_store %arg8[%c0_25, %c0_26], %41 {strides = array<i32>} : memref<2x6xf32, #tpu.memory_space<vmem>>, vector<2x6xf32>,
    return
  }
}

</mosaic_0001>

<llo_original>
// kernel: dain_forward.1
$region0: #{dain_forward.1}
  #allocation0 [shape = 'u32[]', space=smem, size = 0x4, offset = 0x4, fixed_abs, tag = 'smem constant byte address 0x4 - core index']
  #allocation1 [shape = 'u32[144,128]{1,0:T(1,128)}', space=vmem, size = 0x12000, scoped, tag = 'internal scratch']
  %s0 = inlined_call_operand.vmem [shape: f32[128,4], index: 0, kind: input, shape index: {}]
  %s1 = inlined_call_operand.vmem [shape: f32[128,4], index: 1, kind: input, shape index: {}]
  %s2 = inlined_call_operand.vmem [shape: f32[4,1280], index: 2, kind: input, shape index: {}]
  %s3 = inlined_call_operand.vmem [shape: f32[1,1280], index: 3, kind: input, shape index: {}]
  %s4 = inlined_call_operand.vmem [shape: f32[4,1280], index: 4, kind: input, shape index: {}]
  %s5 = inlined_call_operand.vmem [shape: f32[1,1280], index: 5, kind: input, shape index: {}]
  %s6 = inlined_call_operand.vmem [shape: f32[6,2560], index: 6, kind: input, shape index: {}]
  %s7 = inlined_call_operand.vmem [shape: f32[1,6], index: 7, kind: input, shape index: {}]
  %s8 = inlined_call_operand.hbm [shape: f32[2,6], index: 8, kind: output, shape index: {}]
  %s9 = sld [smem:[#allocation0]]
  $region42: #{dain_forward.1} parent=0
    _
  %s11 = ssub.s32 1, %s9
  %s12 = scalar_select 0, %s11, %s9
  $region1: #{dain_forward.1} parent=0
    #allocation2 [shape = 'u8[1024]{0}', space=vmem, size = 0x400, scoped, tag = 'output window, operand 0, single buffered']
    #allocation3 [shape = 's32[1]{0}', space=sflag, size = 0x4, scoped, tag = 'scoped memory for dain_forward.1']
    %13 = vsyncpa [#allocation3], 0
    // Predicated region
    $region2: #{dain_forward.1} parent=1 // pred_check
      _
    $region3: #{dain_forward.1} parent=1 // pred_check_branch
      %15 = sbr.rel (0) target = $region5
    $region4: #{dain_forward.1} parent=1 // pred_region
      _
    $region5: #{dain_forward.1} parent=1 // pred_fallthru
      _
    // Predicated region
    $region6: #{dain_forward.1} parent=1 // pred_check
      _
    $region7: #{dain_forward.1} parent=1 // pred_check_branch
      %17 = sbr.rel (0) target = $region9
    $region8: #{dain_forward.1} parent=1 // pred_region
      _
    $region9: #{dain_forward.1} parent=1 // pred_fallthru
      _
    // Predicated region
    $region10: #{dain_forward.1} parent=1 // pred_check
      _
    $region11: #{dain_forward.1} parent=1 // pred_check_branch
      %19 = sbr.rel (0) target = $region13
    $region12: #{dain_forward.1} parent=1 // pred_region
      _
    $region13: #{dain_forward.1} parent=1 // pred_fallthru
      _
    // Predicated region
    $region14: #{dain_forward.1} parent=1 // pred_check
      _
    $region15: #{dain_forward.1} parent=1 // pred_check_branch
      %21 = sbr.rel (0) target = $region17
    $region16: #{dain_forward.1} parent=1 // pred_region
      _
    $region17: #{dain_forward.1} parent=1 // pred_fallthru
      _
    // Predicated region
    $region18: #{dain_forward.1} parent=1 // pred_check
      _
    $region19: #{dain_forward.1} parent=1 // pred_check_branch
      %23 = sbr.rel (0) target = $region21
    $region20: #{dain_forward.1} parent=1 // pred_region
      _
    $region21: #{dain_forward.1} parent=1 // pred_fallthru
      _
    // Predicated region
    $region22: #{dain_forward.1} parent=1 // pred_check
      _
    $region23: #{dain_forward.1} parent=1 // pred_check_branch
      %25 = sbr.rel (0) target = $region25
    $region24: #{dain_forward.1} parent=1 // pred_region
      _
    $region25: #{dain_forward.1} parent=1 // pred_fallthru
      _
    // Predicated region
    $region26: #{dain_forward.1} parent=1 // pred_check
      _
    $region27: #{dain_forward.1} parent=1 // pred_check_branch
      %27 = sbr.rel (0) target = $region29
    $region28: #{dain_forward.1} parent=1 // pred_region
      _
    $region29: #{dain_forward.1} parent=1 // pred_fallthru
      _
    // Predicated region
    $region30: #{dain_forward.1} parent=1 // pred_check
      _
    $region31: #{dain_forward.1} parent=1 // pred_check_branch
      %29 = sbr.rel (0) target = $region33
    $region32: #{dain_forward.1} parent=1 // pred_region
      _
    $region33: #{dain_forward.1} parent=1 // pred_fallthru
      _
    %v30 = vlaneseq
    %v31 = vshrl.u32 %v30, 7
    %v32 = vlaneseq
    %v33 = vand.u32 %v32, 127
    %v34 = vmul.u32 %v31, 64
    %vm35 = vcmp.ge.s32.totalorder %v33, %v34
    %v36 = vadd.s32 %v31, 1
    %v37 = vmul.u32 %v36, 64
    %vm38 = vcmp.lt.s32.totalorder %v33, %v37
    %vm39 = vmand %vm35, %vm38
    %v40 = vsel %vm39, 0.015625, 0.0
    %v41 = vld [vmem:[%s0] sm:$0xff]
    %v42 = vld [vmem:[%s0 + $0x8] sm:$0xff]
    %v43 = vld [vmem:[%s0 + $0x10] sm:$0xff]
    %v44 = vld [vmem:[%s0 + $0x18] sm:$0xff]
    %v45 = vld [vmem:[%s0 + $0x20] sm:$0xff]
    %v46 = vld [vmem:[%s0 + $0x28] sm:$0xff]
    %v47 = vld [vmem:[%s0 + $0x30] sm:$0xff]
    %v48 = vld [vmem:[%s0 + $0x38] sm:$0xff]
    %v49 = vld [vmem:[%s0 + $0x40] sm:$0xff]
    %v50 = vld [vmem:[%s0 + $0x48] sm:$0xff]
    %v51 = vld [vmem:[%s0 + $0x50] sm:$0xff]
    %v52 = vld [vmem:[%s0 + $0x58] sm:$0xff]
    %v53 = vld [vmem:[%s0 + $0x60] sm:$0xff]
    %v54 = vld [vmem:[%s0 + $0x68] sm:$0xff]
    %v55 = vld [vmem:[%s0 + $0x70] sm:$0xff]
    %v56 = vld [vmem:[%s0 + $0x78] sm:$0xff]
    %v57 = vld [vmem:[%s2] sm:$0xff]
    %v58 = vld [vmem:[%s2 + $0x8] sm:$0xff]
    %v59 = vld [vmem:[%s2 + $0x10] sm:$0xff]
    %v60 = vld [vmem:[%s2 + $0x18] sm:$0xff]
    %v61 = vld [vmem:[%s2 + $0x20] sm:$0xff]
    %v62 = vld [vmem:[%s3] sm:$0xff]
    %v63 = vld [vmem:[%s3 + $0x8] sm:$0x3]
    %v66 = vlaneseq
    %v67 = vshrl.u32 %v66, 7
    %v68 = vsub.s32 0, %v67
    %v69 = vrot.slane %v62, %v68
    %v70 = vlaneseq
    %v71 = vshrl.u32 %v70, 7
    %v72 = vsub.s32 1, %v71
    %v73 = vrot.slane %v62, %v72
    %v74 = vlaneseq
    %v75 = vshrl.u32 %v74, 7
    %v76 = vsub.s32 2, %v75
    %v77 = vrot.slane %v62, %v76
    %v78 = vlaneseq
    %v79 = vshrl.u32 %v78, 7
    %v80 = vsub.s32 3, %v79
    %v81 = vrot.slane %v62, %v80
    %v82 = vlaneseq
    %v83 = vshrl.u32 %v82, 7
    %v84 = vsub.s32 4, %v83
    %v85 = vrot.slane %v62, %v84
    %v86 = vlaneseq
    %v87 = vshrl.u32 %v86, 7
    %v88 = vsub.s32 5, %v87
    %v89 = vrot.slane %v62, %v88
    %v90 = vlaneseq
    %v91 = vshrl.u32 %v90, 7
    %v92 = vsub.s32 6, %v91
    %v93 = vrot.slane %v62, %v92
    %v94 = vlaneseq
    %v95 = vshrl.u32 %v94, 7
    %v96 = vsub.s32 7, %v95
    %v97 = vrot.slane %v62, %v96
    %v98 = vlaneseq
    %v99 = vshrl.u32 %v98, 7
    %v100 = vsub.s32 0, %v99
    %v101 = vrot.slane %v63, %v100
    %v102 = vlaneseq
    %v103 = vshrl.u32 %v102, 7
    %v104 = vsub.s32 1, %v103
    %v105 = vrot.slane %v63, %v104
    %v121 = vcombine.high %v57, %v57
    %v122 = vcombine.high %v58, %v58
    %v123 = vcombine.high %v59, %v59
    %v124 = vcombine.high %v60, %v60
    %v125 = vcombine.high %v61, %v61
    %vm126 = vcmask 31744
    %v128 = vsel %vm126, %v41, 0
    %v131 = vsel %vm126, %v42, 0
    %v134 = vsel %vm126, %v43, 0
    %v137 = vsel %vm126, %v44, 0
    %v140 = vsel %vm126, %v45, 0
    %v143 = vsel %vm126, %v46, 0
    %v146 = vsel %vm126, %v47, 0
    %v149 = vsel %vm126, %v48, 0
    %v152 = vsel %vm126, %v49, 0
    %v155 = vsel %vm126, %v50, 0
    %v158 = vsel %vm126, %v51, 0
    %v161 = vsel %vm126, %v52, 0
    %v164 = vsel %vm126, %v53, 0
    %v167 = vsel %vm126, %v54, 0
    %v170 = vsel %vm126, %v55, 0
    %v173 = vsel %vm126, %v56, 0
    %vm175 = vcmask 1043456
    %v176 = vsel %vm175, %v57, 0
    %v178 = vsel %vm175, %v121, 0
    %v180 = vsel %vm175, %v58, 0
    %v182 = vsel %vm175, %v122, 0
    %v184 = vsel %vm175, %v59, 0
    %v186 = vsel %vm175, %v123, 0
    %v188 = vsel %vm175, %v60, 0
    %v190 = vsel %vm175, %v124, 0
    %v192 = vsel %vm175, %v61, 0
    %v194 = vsel %vm175, %v125, 0
    %196 = vmatprep.subr.mxu0 %v178
    %197 = vmatpush1.msra.mxu0 %v176
    %198 = vmatprep.subr.mxu0 0.0
    %199 = vmatpush1.msra.mxu0 0.0
    %200 = vmatprep.subr.mxu0 0.0
    %201 = vmatpush1.msra.mxu0 0.0
    %202 = vmatprep.subr.mxu0 0.0
    %203 = vmatpush1.msra.mxu0 0.0
    %204 = vmatprep.subr.mxu0 0.0
    %205 = vmatpush1.msra.mxu0 0.0
    %206 = vmatprep.subr.mxu0 0.0
    %207 = vmatpush1.msra.mxu0 0.0
    %208 = vmatprep.subr.mxu0 0.0
    %209 = vmatpush1.msra.mxu0 0.0
    %210 = vmatprep.subr.mxu0 0.0
    %211 = vmatpush1.msra.mxu0 0.0
    %212 = vmatprep.subr.mxu0 0.0
    %213 = vmatpush1.msra.mxu0 0.0
    %214 = vmatprep.subr.mxu0 0.0
    %215 = vmatpush1.msra.mxu0 0.0
    %216 = vmatprep.subr.mxu0 0.0
    %217 = vmatpush1.msra.mxu0 0.0
    %218 = vmatprep.subr.mxu0 0.0
    %219 = vmatpush1.msra.mxu0 0.0
    %220 = vmatprep.subr.mxu0 0.0
    %221 = vmatpush1.msra.mxu0 0.0
    %222 = vmatprep.subr.mxu0 0.0
    %223 = vmatpush1.msra.mxu0 0.0
    %224 = vmatprep.subr.mxu0 0.0
    %225 = vmatpush1.msra.mxu0 0.0
    %226 = vmatprep.subr.mxu0 0.0
    %227 = vmatpush1.msra.mxu0 0.0
    %228 = vmatprep.subr.mxu0 0.0
    %229 = vmatpush1.msra.mxu0 0.0
    %230 = vmatprep.subr.mxu0 0.0
    %231 = vmatpush1.msra.mxu0 0.0
    %232 = vmatprep.subr.mxu0 0.0
    %233 = vmatpush1.msra.mxu0 0.0
    %234 = vmatprep.subr.mxu0 0.0
    %235 = vmatpush1.msra.mxu0 0.0
    %236 = vmatprep.subr.mxu0 0.0
    %237 = vmatpush1.msra.mxu0 0.0
    %238 = vmatprep.subr.mxu0 0.0
    %239 = vmatpush1.msra.mxu0 0.0
    %240 = vmatprep.subr.mxu0 0.0
    %241 = vmatpush1.msra.mxu0 0.0
    %242 = vmatprep.subr.mxu0 0.0
    %243 = vmatpush1.msra.mxu0 0.0
    %244 = vmatprep.subr.mxu0 0.0
    %245 = vmatpush1.msra.mxu0 0.0
    %246 = vmatprep.subr.mxu0 0.0
    %247 = vmatpush1.msra.mxu0 0.0
    %248 = vmatprep.subr.mxu0 0.0
    %249 = vmatpush1.msra.mxu0 0.0
    %250 = vmatprep.subr.mxu0 0.0
    %251 = vmatpush1.msra.mxu0 0.0
    %252 = vmatprep.subr.mxu0 0.0
    %253 = vmatpush1.msra.mxu0 0.0
    %254 = vmatprep.subr.mxu0 0.0
    %255 = vmatpush1.msra.mxu0 0.0
    %256 = vmatprep.subr.mxu0 0.0
    %257 = vmatpush1.msra.mxu0 0.0
    %258 = vmatprep.subr.mxu0 0.0
    %259 = vmatpush1.msra.mxu0 0.0
    %260 = vmatprep.mubr.f32.mxu0 0.0
    %261 = vmatmul.mubr.f32.gmra.mrb[0].mxu0 %v128
    %v262 = vpop.f32.mrb[0].mxu0
    %v263 = vadd.f32 %v69, %v262
    %v264 = vpop.f32.mrb[0].mxu0
    %v265 = vadd.f32 %v73, %v264
    %266 = vmatprep.mubr.f32.mxu0 0.0
    %267 = vmatmul.mubr.f32.gmra.mrb[0].mxu0 %v131
    %v268 = vpop.f32.mrb[0].mxu0
    %v269 = vadd.f32 %v69, %v268
    %v270 = vpop.f32.mrb[0].mxu0
    %v271 = vadd.f32 %v73, %v270
    %272 = vmatprep.mubr.f32.mxu0 0.0
    %273 = vmatmul.mubr.f32.gmra.mrb[0].mxu0 %v134
    %v274 = vpop.f32.mrb[0].mxu0
    %v275 = vadd.f32 %v69, %v274
    %v276 = vpop.f32.mrb[0].mxu0
    %v277 = vadd.f32 %v73, %v276
    %278 = vmatprep.mubr.f32.mxu0 0.0
    %279 = vmatmul.mubr.f32.gmra.mrb[0].mxu0 %v137
    %v280 = vpop.f32.mrb[0].mxu0
    %v281 = vadd.f32 %v69, %v280
    %v282 = vpop.f32.mrb[0].mxu0
    %v283 = vadd.f32 %v73, %v282
    %284 = vmatprep.mubr.f32.mxu0 0.0
    %285 = vmatmul.mubr.f32.gmra.mrb[0].mxu0 %v140
    %v286 = vpop.f32.mrb[0].mxu0
    %v287 = vadd.f32 %v69, %v286
    %v288 = vpop.f32.mrb[0].mxu0
    %v289 = vadd.f32 %v73, %v288
    %290 = vmatprep.mubr.f32.mxu0 0.0
    %291 = vmatmul.mubr.f32.gmra.mrb[0].mxu0 %v143
    %v292 = vpop.f32.mrb[0].mxu0
    %v293 = vadd.f32 %v69, %v292
    %v294 = vpop.f32.mrb[0].mxu0
    %v295 = vadd.f32 %v73, %v294
    %296 = vmatprep.mubr.f32.mxu0 0.0
    %297 = vmatmul.mubr.f32.gmra.mrb[0].mxu0 %v146
    %v298 = vpop.f32.mrb[0].mxu0
    %v299 = vadd.f32 %v69, %v298
    %v300 = vpop.f32.mrb[0].mxu0
    %v301 = vadd.f32 %v73, %v300
    %302 = vmatprep.mubr.f32.mxu0 0.0
    %303 = vmatmul.mubr.f32.gmra.mrb[0].mxu0 %v149
    %v304 = vpop.f32.mrb[0].mxu0
    %v305 = vadd.f32 %v69, %v304
    %v306 = vpop.f32.mrb[0].mxu0
    %v307 = vadd.f32 %v73, %v306
    %308 = vmatprep.mubr.f32.mxu0 0.0
    %309 = vmatmul.mubr.f32.gmra.mrb[0].mxu0 %v152
    %v310 = vpop.f32.mrb[0].mxu0
    %v311 = vadd.f32 %v69, %v310
    %v312 = vpop.f32.mrb[0].mxu0
    %v313 = vadd.f32 %v73, %v312
    %314 = vmatprep.mubr.f32.mxu0 0.0
    %315 = vmatmul.mubr.f32.gmra.mrb[0].mxu0 %v155
    %v316 = vpop.f32.mrb[0].mxu0
    %v317 = vadd.f32 %v69, %v316
    %v318 = vpop.f32.mrb[0].mxu0
    %v319 = vadd.f32 %v73, %v318
    %320 = vmatprep.mubr.f32.mxu0 0.0
    %321 = vmatmul.mubr.f32.gmra.mrb[0].mxu0 %v158
    %v322 = vpop.f32.mrb[0].mxu0
    %v323 = vadd.f32 %v69, %v322
    %v324 = vpop.f32.mrb[0].mxu0
    %v325 = vadd.f32 %v73, %v324
    %326 = vmatprep.mubr.f32.mxu0 0.0
    %327 = vmatmul.mubr.f32.gmra.mrb[0].mxu0 %v161
    %v328 = vpop.f32.mrb[0].mxu0
    %v329 = vadd.f32 %v69, %v328
    %v330 = vpop.f32.mrb[0].mxu0
    %v331 = vadd.f32 %v73, %v330
    %332 = vmatprep.mubr.f32.mxu0 0.0
    %333 = vmatmul.mubr.f32.gmra.mrb[0].mxu0 %v164
    %v334 = vpop.f32.mrb[0].mxu0
    %v335 = vadd.f32 %v69, %v334
    %v336 = vpop.f32.mrb[0].mxu0
    %v337 = vadd.f32 %v73, %v336
    %338 = vmatprep.mubr.f32.mxu0 0.0
    %339 = vmatmul.mubr.f32.gmra.mrb[0].mxu0 %v167
    %v340 = vpop.f32.mrb[0].mxu0
    %v341 = vadd.f32 %v69, %v340
    %v342 = vpop.f32.mrb[0].mxu0
    %v343 = vadd.f32 %v73, %v342
    %344 = vmatprep.mubr.f32.mxu0 0.0
    %345 = vmatmul.mubr.f32.gmra.mrb[0].mxu0 %v170
    %v346 = vpop.f32.mrb[0].mxu0
    %v347 = vadd.f32 %v69, %v346
    %v348 = vpop.f32.mrb[0].mxu0
    %v349 = vadd.f32 %v73, %v348
    %350 = vmatprep.mubr.f32.mxu0 0.0
    %351 = vmatmul.mubr.f32.gmra.mrb[0].mxu0 %v173
    %v352 = vpop.f32.mrb[0].mxu0
    %v353 = vadd.f32 %v69, %v352
    %v354 = vpop.f32.mrb[0].mxu0
    %v355 = vadd.f32 %v73, %v354
    %356 = vdwg.mxu0
    %357 = vmatprep.subr.mxu0 %v182
    %358 = vmatpush1.msra.mxu0 %v180
    %359 = vmatprep.subr.mxu0 0.0
    %360 = vmatpush1.msra.mxu0 0.0
    %361 = vmatprep.subr.mxu0 0.0
    %362 = vmatpush1.msra.mxu0 0.0
    %363 = vmatprep.subr.mxu0 0.0
    %364 = vmatpush1.msra.mxu0 0.0
    %365 = vmatprep.subr.mxu0 0.0
    %366 = vmatpush1.msra.mxu0 0.0
    %367 = vmatprep.subr.mxu0 0.0
    %368 = vmatpush1.msra.mxu0 0.0
    %369 = vmatprep.subr.mxu0 0.0
    %370 = vmatpush1.msra.mxu0 0.0
    %371 = vmatprep.subr.mxu0 0.0
    %372 = vmatpush1.msra.mxu0 0.0
    %373 = vmatprep.subr.mxu0 0.0
    %374 = vmatpush1.msra.mxu0 0.0
    %375 = vmatprep.subr.mxu0 0.0
    %376 = vmatpush1.msra.mxu0 0.0
    %377 = vmatprep.subr.mxu0 0.0
    %378 = vmatpush1.msra.mxu0 0.0
    %379 = vmatprep.subr.mxu0 0.0
    %380 = vmatpush1.msra.mxu0 0.0
    %381 = vmatprep.subr.mxu0 0.0
    %382 = vmatpush1.msra.mxu0 0.0
    %383 = vmatprep.subr.mxu0 0.0
    %384 = vmatpush1.msra.mxu0 0.0
    %385 = vmatprep.subr.mxu0 0.0
    %386 = vmatpush1.msra.mxu0 0.0
    %387 = vmatprep.subr.mxu0 0.0
    %388 = vmatpush1.msra.mxu0 0.0
    %389 = vmatprep.subr.mxu0 0.0
    %390 = vmatpush1.msra.mxu0 0.0
    %391 = vmatprep.subr.mxu0 0.0
    %392 = vmatpush1.msra.mxu0 0.0
    %393 = vmatprep.subr.mxu0 0.0
    %394 = vmatpush1.msra.mxu0 0.0
    %395 = vmatprep.subr.mxu0 0.0
    %396 = vmatpush1.msra.mxu0 0.0
    %397 = vmatprep.subr.mxu0 0.0
    %398 = vmatpush1.msra.mxu0 0.0
    %399 = vmatprep.subr.mxu0 0.0
    %400 = vmatpush1.msra.mxu0 0.0
    %401 = vmatprep.subr.mxu0 0.0
    %402 = vmatpush1.msra.mxu0 0.0
    %403 = vmatprep.subr.mxu0 0.0
    %404 = vmatpush1.msra.mxu0 0.0
    %405 = vmatprep.subr.mxu0 0.0
    %406 = vmatpush1.msra.mxu0 0.0
    %407 = vmatprep.subr.mxu0 0.0
    %408 = vmatpush1.msra.mxu0 0.0
    %409 = vmatprep.subr.mxu0 0.0
    %410 = vmatpush1.msra.mxu0 0.0
    %411 = vmatprep.subr.mxu0 0.0
    %412 = vmatpush1.msra.mxu0 0.0
    %413 = vmatprep.subr.mxu0 0.0
    %414 = vmatpush1.msra.mxu0 0.0
    %415 = vmatprep.subr.mxu0 0.0
    %416 = vmatpush1.msra.mxu0 0.0
    %417 = vmatprep.subr.mxu0 0.0
    %418 = vmatpush1.msra.mxu0 0.0
    %419 = vmatprep.subr.mxu0 0.0
    %420 = vmatpush1.msra.mxu0 0.0
    %421 = vmatprep.mubr.f32.mxu0 0.0
    %422 = vmatmul.mubr.f32.gmra.mrb[0].mxu0 %v128
    %v423 = vpop.f32.mrb[0].mxu0
    %v424 = vadd.f32 %v77, %v423
    %v425 = vpop.f32.mrb[0].mxu0
    %v426 = vadd.f32 %v81, %v425
    %427 = vmatprep.mubr.f32.mxu0 0.0
    %428 = vmatmul.mubr.f32.gmra.mrb[0].mxu0 %v131
    %v429 = vpop.f32.mrb[0].mxu0
    %v430 = vadd.f32 %v77, %v429
    %v431 = vpop.f32.mrb[0].mxu0
    %v432 = vadd.f32 %v81, %v431
    %433 = vmatprep.mubr.f32.mxu0 0.0
    %434 = vmatmul.mubr.f32.gmra.mrb[0].mxu0 %v134
    %v435 = vpop.f32.mrb[0].mxu0
    %v436 = vadd.f32 %v77, %v435
    %v437 = vpop.f32.mrb[0].mxu0
    %v438 = vadd.f32 %v81, %v437
    %439 = vmatprep.mubr.f32.mxu0 0.0
    %440 = vmatmul.mubr.f32.gmra.mrb[0].mxu0 %v137
    %v441 = vpop.f32.mrb[0].mxu0
    %v442 = vadd.f32 %v77, %v441
    %v443 = vpop.f32.mrb[0].mxu0
    %v444 = vadd.f32 %v81, %v443
    %445 = vmatprep.mubr.f32.mxu0 0.0
    %446 = vmatmul.mubr.f32.gmra.mrb[0].mxu0 %v140
    %v447 = vpop.f32.mrb[0].mxu0
    %v448 = vadd.f32 %v77, %v447
    %v449 = vpop.f32.mrb[0].mxu0
    %v450 = vadd.f32 %v81, %v449
    %451 = vmatprep.mubr.f32.mxu0 0.0
    %452 = vmatmul.mubr.f32.gmra.mrb[0].mxu0 %v143
    %v453 = vpop.f32.mrb[0].mxu0
    %v454 = vadd.f32 %v77, %v453
    %v455 = vpop.f32.mrb[0].mxu0
    %v456 = vadd.f32 %v81, %v455
    %457 = vmatprep.mubr.f32.mxu0 0.0
    %458 = vmatmul.mubr.f32.gmra.mrb[0].mxu0 %v146
    %v459 = vpop.f32.mrb[0].mxu0
    %v460 = vadd.f32 %v77, %v459
    %v461 = vpop.f32.mrb[0].mxu0
    %v462 = vadd.f32 %v81, %v461
    %463 = vmatprep.mubr.f32.mxu0 0.0
    %464 = vmatmul.mubr.f32.gmra.mrb[0].mxu0 %v149
    %v465 = vpop.f32.mrb[0].mxu0
    %v466 = vadd.f32 %v77, %v465
    %v467 = vpop.f32.mrb[0].mxu0
    %v468 = vadd.f32 %v81, %v467
    %469 = vmatprep.mubr.f32.mxu0 0.0
    %470 = vmatmul.mubr.f32.gmra.mrb[0].mxu0 %v152
    %v471 = vpop.f32.mrb[0].mxu0
    %v472 = vadd.f32 %v77, %v471
    %v473 = vpop.f32.mrb[0].mxu0
    %v474 = vadd.f32 %v81, %v473
    %475 = vmatprep.mubr.f32.mxu0 0.0
    %476 = vmatmul.mubr.f32.gmra.mrb[0].mxu0 %v155
    %v477 = vpop.f32.mrb[0].mxu0
    %v478 = vadd.f32 %v77, %v477
    %v479 = vpop.f32.mrb[0].mxu0
    %v480 = vadd.f32 %v81, %v479
    %481 = vmatprep.mubr.f32.mxu0 0.0
    %482 = vmatmul.mubr.f32.gmra.mrb[0].mxu0 %v158
    %v483 = vpop.f32.mrb[0].mxu0
    %v484 = vadd.f32 %v77, %v483
    %v485 = vpop.f32.mrb[0].mxu0
    %v486 = vadd.f32 %v81, %v485
    %487 = vmatprep.mubr.f32.mxu0 0.0
    %488 = vmatmul.mubr.f32.gmra.mrb[0].mxu0 %v161
    %v489 = vpop.f32.mrb[0].mxu0
    %v490 = vadd.f32 %v77, %v489
    %v491 = vpop.f32.mrb[0].mxu0
    %v492 = vadd.f32 %v81, %v491
    %493 = vmatprep.mubr.f32.mxu0 0.0
    %494 = vmatmul.mubr.f32.gmra.mrb[0].mxu0 %v164
    %v495 = vpop.f32.mrb[0].mxu0
    %v496 = vadd.f32 %v77, %v495
    %v497 = vpop.f32.mrb[0].mxu0
    %v498 = vadd.f32 %v81, %v497
    %499 = vmatprep.mubr.f32.mxu0 0.0
    %500 = vmatmul.mubr.f32.gmra.mrb[0].mxu0 %v167
    %v501 = vpop.f32.mrb[0].mxu0
    %v502 = vadd.f32 %v77, %v501
    %v503 = vpop.f32.mrb[0].mxu0
    %v504 = vadd.f32 %v81, %v503
    %505 = vmatprep.mubr.f32.mxu0 0.0
    %506 = vmatmul.mubr.f32.gmra.mrb[0].mxu0 %v170
    %v507 = vpop.f32.mrb[0].mxu0
    %v508 = vadd.f32 %v77, %v507
    %v509 = vpop.f32.mrb[0].mxu0
    %v510 = vadd.f32 %v81, %v509
    %511 = vmatprep.mubr.f32.mxu0 0.0
    %512 = vmatmul.mubr.f32.gmra.mrb[0].mxu0 %v173
    %v513 = vpop.f32.mrb[0].mxu0
    %v514 = vadd.f32 %v77, %v513
    %v515 = vpop.f32.mrb[0].mxu0
    %v516 = vadd.f32 %v81, %v515
    %517 = vdwg.mxu0
    %518 = vmatprep.subr.mxu0 %v186
    %519 = vmatpush1.msra.mxu0 %v184
    %520 = vmatprep.subr.mxu0 0.0
    %521 = vmatpush1.msra.mxu0 0.0
    %522 = vmatprep.subr.mxu0 0.0
    %523 = vmatpush1.msra.mxu0 0.0
    %524 = vmatprep.subr.mxu0 0.0
    %525 = vmatpush1.msra.mxu0 0.0
    %526 = vmatprep.subr.mxu0 0.0
    %527 = vmatpush1.msra.mxu0 0.0
    %528 = vmatprep.subr.mxu0 0.0
    %529 = vmatpush1.msra.mxu0 0.0
    %530 = vmatprep.subr.mxu0 0.0
    %531 = vmatpush1.msra.mxu0 0.0
    %532 = vmatprep.subr.mxu0 0.0
    %533 = vmatpush1.msra.mxu0 0.0
    %534 = vmatprep.subr.mxu0 0.0
    %535 = vmatpush1.msra.mxu0 0.0
    %536 = vmatprep.subr.mxu0 0.0
    %537 = vmatpush1.msra.mxu0 0.0
    %538 = vmatprep.subr.mxu0 0.0
    %539 = vmatpush1.msra.mxu0 0.0
    %540 = vmatprep.subr.mxu0 0.0
    %541 = vmatpush1.msra.mxu0 0.0
    %542 = vmatprep.subr.mxu0 0.0
    %543 = vmatpush1.msra.mxu0 0.0
    %544 = vmatprep.subr.mxu0 0.0
    %545 = vmatpush1.msra.mxu0 0.0
    %546 = vmatprep.subr.mxu0 0.0
    %547 = vmatpush1.msra.mxu0 0.0
    %548 = vmatprep.subr.mxu0 0.0
    %549 = vmatpush1.msra.mxu0 0.0
    %550 = vmatprep.subr.mxu0 0.0
    %551 = vmatpush1.msra.mxu0 0.0
    %552 = vmatprep.subr.mxu0 0.0
    %553 = vmatpush1.msra.mxu0 0.0
    %554 = vmatprep.subr.mxu0 0.0
    %555 = vmatpush1.msra.mxu0 0.0
    %556 = vmatprep.subr.mxu0 0.0
    %557 = vmatpush1.msra.mxu0 0.0
    %558 = vmatprep.subr.mxu0 0.0
    %559 = vmatpush1.msra.mxu0 0.0
    %560 = vmatprep.subr.mxu0 0.0
    %561 = vmatpush1.msra.mxu0 0.0
    %562 = vmatprep.subr.mxu0 0.0
    %563 = vmatpush1.msra.mxu0 0.0
    %564 = vmatprep.subr.mxu0 0.0
    %565 = vmatpush1.msra.mxu0 0.0
    %566 = vmatprep.subr.mxu0 0.0
    %567 = vmatpush1.msra.mxu0 0.0
    %568 = vmatprep.subr.mxu0 0.0
    %569 = vmatpush1.msra.mxu0 0.0
    %570 = vmatprep.subr.mxu0 0.0
    %571 = vmatpush1.msra.mxu0 0.0
    %572 = vmatprep.subr.mxu0 0.0
    %573 = vmatpush1.msra.mxu0 0.0
    %574 = vmatprep.subr.mxu0 0.0
    %575 = vmatpush1.msra.mxu0 0.0
    %576 = vmatprep.subr.mxu0 0.0
    %577 = vmatpush1.msra.mxu0 0.0
    %578 = vmatprep.subr.mxu0 0.0
    %579 = vmatpush1.msra.mxu0 0.0
    %580 = vmatprep.subr.mxu0 0.0
    %581 = vmatpush1.msra.mxu0 0.0
    %582 = vmatprep.mubr.f32.mxu0 0.0
    %583 = vmatmul.mubr.f32.gmra.mrb[0].mxu0 %v128
    %v584 = vpop.f32.mrb[0].mxu0
    %v585 = vadd.f32 %v85, %v584
    %v586 = vpop.f32.mrb[0].mxu0
    %v587 = vadd.f32 %v89, %v586
    %588 = vmatprep.mubr.f32.mxu0 0.0
    %589 = vmatmul.mubr.f32.gmra.mrb[0].mxu0 %v131
    %v590 = vpop.f32.mrb[0].mxu0
    %v591 = vadd.f32 %v85, %v590
    %v592 = vpop.f32.mrb[0].mxu0
    %v593 = vadd.f32 %v89, %v592
    %594 = vmatprep.mubr.f32.mxu0 0.0
    %595 = vmatmul.mubr.f32.gmra.mrb[0].mxu0 %v134
    %v596 = vpop.f32.mrb[0].mxu0
    %v597 = vadd.f32 %v85, %v596
    %v598 = vpop.f32.mrb[0].mxu0
    %v599 = vadd.f32 %v89, %v598
    %600 = vmatprep.mubr.f32.mxu0 0.0
    %601 = vmatmul.mubr.f32.gmra.mrb[0].mxu0 %v137
    %v602 = vpop.f32.mrb[0].mxu0
    %v603 = vadd.f32 %v85, %v602
    %v604 = vpop.f32.mrb[0].mxu0
    %v605 = vadd.f32 %v89, %v604
    %606 = vmatprep.mubr.f32.mxu0 0.0
    %607 = vmatmul.mubr.f32.gmra.mrb[0].mxu0 %v140
    %v608 = vpop.f32.mrb[0].mxu0
    %v609 = vadd.f32 %v85, %v608
    %v610 = vpop.f32.mrb[0].mxu0
    %v611 = vadd.f32 %v89, %v610
    %612 = vmatprep.mubr.f32.mxu0 0.0
    %613 = vmatmul.mubr.f32.gmra.mrb[0].mxu0 %v143
    %v614 = vpop.f32.mrb[0].mxu0
    %v615 = vadd.f32 %v85, %v614
    %v616 = vpop.f32.mrb[0].mxu0
    %v617 = vadd.f32 %v89, %v616
    %618 = vmatprep.mubr.f32.mxu0 0.0
    %619 = vmatmul.mubr.f32.gmra.mrb[0].mxu0 %v146
    %v620 = vpop.f32.mrb[0].mxu0
    %v621 = vadd.f32 %v85, %v620
    %v622 = vpop.f32.mrb[0].mxu0
    %v623 = vadd.f32 %v89, %v622
    %624 = vmatprep.mubr.f32.mxu0 0.0
    %625 = vmatmul.mubr.f32.gmra.mrb[0].mxu0 %v149
    %v626 = vpop.f32.mrb[0].mxu0
    %v627 = vadd.f32 %v85, %v626
    %v628 = vpop.f32.mrb[0].mxu0
    %v629 = vadd.f32 %v89, %v628
    %630 = vmatprep.mubr.f32.mxu0 0.0
    %631 = vmatmul.mubr.f32.gmra.mrb[0].mxu0 %v152
    %v632 = vpop.f32.mrb[0].mxu0
    %v633 = vadd.f32 %v85, %v632
    %v634 = vpop.f32.mrb[0].mxu0
    %v635 = vadd.f32 %v89, %v634
    %636 = vmatprep.mubr.f32.mxu0 0.0
    %637 = vmatmul.mubr.f32.gmra.mrb[0].mxu0 %v155
    %v638 = vpop.f32.mrb[0].mxu0
    %v639 = vadd.f32 %v85, %v638
    %v640 = vpop.f32.mrb[0].mxu0
    %v641 = vadd.f32 %v89, %v640
    %642 = vmatprep.mubr.f32.mxu0 0.0
    %643 = vmatmul.mubr.f32.gmra.mrb[0].mxu0 %v158
    %v644 = vpop.f32.mrb[0].mxu0
    %v645 = vadd.f32 %v85, %v644
    %v646 = vpop.f32.mrb[0].mxu0
    %v647 = vadd.f32 %v89, %v646
    %648 = vmatprep.mubr.f32.mxu0 0.0
    %649 = vmatmul.mubr.f32.gmra.mrb[0].mxu0 %v161
    %v650 = vpop.f32.mrb[0].mxu0
    %v651 = vadd.f32 %v85, %v650
    %v652 = vpop.f32.mrb[0].mxu0
    %v653 = vadd.f32 %v89, %v652
    %654 = vmatprep.mubr.f32.mxu0 0.0
    %655 = vmatmul.mubr.f32.gmra.mrb[0].mxu0 %v164
    %v656 = vpop.f32.mrb[0].mxu0
    %v657 = vadd.f32 %v85, %v656
    %v658 = vpop.f32.mrb[0].mxu0
    %v659 = vadd.f32 %v89, %v658
    %660 = vmatprep.mubr.f32.mxu0 0.0
    %661 = vmatmul.mubr.f32.gmra.mrb[0].mxu0 %v167
    %v662 = vpop.f32.mrb[0].mxu0
    %v663 = vadd.f32 %v85, %v662
    %v664 = vpop.f32.mrb[0].mxu0
    %v665 = vadd.f32 %v89, %v664
    %666 = vmatprep.mubr.f32.mxu0 0.0
    %667 = vmatmul.mubr.f32.gmra.mrb[0].mxu0 %v170
    %v668 = vpop.f32.mrb[0].mxu0
    %v669 = vadd.f32 %v85, %v668
    %v670 = vpop.f32.mrb[0].mxu0
    %v671 = vadd.f32 %v89, %v670
    %672 = vmatprep.mubr.f32.mxu0 0.0
    %673 = vmatmul.mubr.f32.gmra.mrb[0].mxu0 %v173
    %v674 = vpop.f32.mrb[0].mxu0
    %v675 = vadd.f32 %v85, %v674
    %v676 = vpop.f32.mrb[0].mxu0
    %v677 = vadd.f32 %v89, %v676
    %678 = vdwg.mxu0
    %679 = vmatprep.subr.mxu0 %v190
    %680 = vmatpush1.msra.mxu0 %v188
    %681 = vmatprep.subr.mxu0 0.0
    %682 = vmatpush1.msra.mxu0 0.0
    %683 = vmatprep.subr.mxu0 0.0
    %684 = vmatpush1.msra.mxu0 0.0
    %685 = vmatprep.subr.mxu0 0.0
    %686 = vmatpush1.msra.mxu0 0.0
    %687 = vmatprep.subr.mxu0 0.0
    %688 = vmatpush1.msra.mxu0 0.0
    %689 = vmatprep.subr.mxu0 0.0
    %690 = vmatpush1.msra.mxu0 0.0
    %691 = vmatprep.subr.mxu0 0.0
    %692 = vmatpush1.msra.mxu0 0.0
    %693 = vmatprep.subr.mxu0 0.0
    %694 = vmatpush1.msra.mxu0 0.0
    %695 = vmatprep.subr.mxu0 0.0
    %696 = vmatpush1.msra.mxu0 0.0
    %697 = vmatprep.subr.mxu0 0.0
    %698 = vmatpush1.msra.mxu0 0.0
    %699 = vmatprep.subr.mxu0 0.0
    %700 = vmatpush1.msra.mxu0 0.0
    %701 = vmatprep.subr.mxu0 0.0
    %702 = vmatpush1.msra.mxu0 0.0
    %703 = vmatprep.subr.mxu0 0.0
    %704 = vmatpush1.msra.mxu0 0.0
    %705 = vmatprep.subr.mxu0 0.0
    %706 = vmatpush1.msra.mxu0 0.0
    %707 = vmatprep.subr.mxu0 0.0
    %708 = vmatpush1.msra.mxu0 0.0
    %709 = vmatprep.subr.mxu0 0.0
    %710 = vmatpush1.msra.mxu0 0.0
    %711 = vmatprep.subr.mxu0 0.0
    %712 = vmatpush1.msra.mxu0 0.0
    %713 = vmatprep.subr.mxu0 0.0
    %714 = vmatpush1.msra.mxu0 0.0
    %715 = vmatprep.subr.mxu0 0.0
    %716 = vmatpush1.msra.mxu0 0.0
    %717 = vmatprep.subr.mxu0 0.0
    %718 = vmatpush1.msra.mxu0 0.0
    %719 = vmatprep.subr.mxu0 0.0
    %720 = vmatpush1.msra.mxu0 0.0
    %721 = vmatprep.subr.mxu0 0.0
    %722 = vmatpush1.msra.mxu0 0.0
    %723 = vmatprep.subr.mxu0 0.0
    %724 = vmatpush1.msra.mxu0 0.0
    %725 = vmatprep.subr.mxu0 0.0
    %726 = vmatpush1.msra.mxu0 0.0
    %727 = vmatprep.subr.mxu0 0.0
    %728 = vmatpush1.msra.mxu0 0.0
    %729 = vmatprep.subr.mxu0 0.0
    %730 = vmatpush1.msra.mxu0 0.0
    %731 = vmatprep.subr.mxu0 0.0
    %732 = vmatpush1.msra.mxu0 0.0
    %733 = vmatprep.subr.mxu0 0.0
    %734 = vmatpush1.msra.mxu0 0.0
    %735 = vmatprep.subr.mxu0 0.0
    %736 = vmatpush1.msra.mxu0 0.0
    %737 = vmatprep.subr.mxu0 0.0
    %738 = vmatpush1.msra.mxu0 0.0
    %739 = vmatprep.subr.mxu0 0.0
    %740 = vmatpush1.msra.mxu0 0.0
    %741 = vmatprep.subr.mxu0 0.0
    %742 = vmatpush1.msra.mxu0 0.0
    %743 = vmatprep.mubr.f32.mxu0 0.0
    %744 = vmatmul.mubr.f32.gmra.mrb[0].mxu0 %v128
    %v745 = vpop.f32.mrb[0].mxu0
    %v746 = vadd.f32 %v93, %v745
    %v747 = vpop.f32.mrb[0].mxu0
    %v748 = vadd.f32 %v97, %v747
    %749 = vmatprep.mubr.f32.mxu0 0.0
    %750 = vmatmul.mubr.f32.gmra.mrb[0].mxu0 %v131
    %v751 = vpop.f32.mrb[0].mxu0
    %v752 = vadd.f32 %v93, %v751
    %v753 = vpop.f32.mrb[0].mxu0
    %v754 = vadd.f32 %v97, %v753
    %755 = vmatprep.mubr.f32.mxu0 0.0
    %756 = vmatmul.mubr.f32.gmra.mrb[0].mxu0 %v134
    %v757 = vpop.f32.mrb[0].mxu0
    %v758 = vadd.f32 %v93, %v757
    %v759 = vpop.f32.mrb[0].mxu0
    %v760 = vadd.f32 %v97, %v759
    %761 = vmatprep.mubr.f32.mxu0 0.0
    %762 = vmatmul.mubr.f32.gmra.mrb[0].mxu0 %v137
    %v763 = vpop.f32.mrb[0].mxu0
    %v764 = vadd.f32 %v93, %v763
    %v765 = vpop.f32.mrb[0].mxu0
    %v766 = vadd.f32 %v97, %v765
    %767 = vmatprep.mubr.f32.mxu0 0.0
    %768 = vmatmul.mubr.f32.gmra.mrb[0].mxu0 %v140
    %v769 = vpop.f32.mrb[0].mxu0
    %v770 = vadd.f32 %v93, %v769
    %v771 = vpop.f32.mrb[0].mxu0
    %v772 = vadd.f32 %v97, %v771
    %773 = vmatprep.mubr.f32.mxu0 0.0
    %774 = vmatmul.mubr.f32.gmra.mrb[0].mxu0 %v143
    %v775 = vpop.f32.mrb[0].mxu0
    %v776 = vadd.f32 %v93, %v775
    %v777 = vpop.f32.mrb[0].mxu0
    %v778 = vadd.f32 %v97, %v777
    %779 = vmatprep.mubr.f32.mxu0 0.0
    %780 = vmatmul.mubr.f32.gmra.mrb[0].mxu0 %v146
    %v781 = vpop.f32.mrb[0].mxu0
    %v782 = vadd.f32 %v93, %v781
    %v783 = vpop.f32.mrb[0].mxu0
    %v784 = vadd.f32 %v97, %v783
    %785 = vmatprep.mubr.f32.mxu0 0.0
    %786 = vmatmul.mubr.f32.gmra.mrb[0].mxu0 %v149
    %v787 = vpop.f32.mrb[0].mxu0
    %v788 = vadd.f32 %v93, %v787
    %v789 = vpop.f32.mrb[0].mxu0
    %v790 = vadd.f32 %v97, %v789
    %791 = vmatprep.mubr.f32.mxu0 0.0
    %792 = vmatmul.mubr.f32.gmra.mrb[0].mxu0 %v152
    %v793 = vpop.f32.mrb[0].mxu0
    %v794 = vadd.f32 %v93, %v793
    %v795 = vpop.f32.mrb[0].mxu0
    %v796 = vadd.f32 %v97, %v795
    %797 = vmatprep.mubr.f32.mxu0 0.0
    %798 = vmatmul.mubr.f32.gmra.mrb[0].mxu0 %v155
    %v799 = vpop.f32.mrb[0].mxu0
    %v800 = vadd.f32 %v93, %v799
    %v801 = vpop.f32.mrb[0].mxu0
    %v802 = vadd.f32 %v97, %v801
    %803 = vmatprep.mubr.f32.mxu0 0.0
    %804 = vmatmul.mubr.f32.gmra.mrb[0].mxu0 %v158
    %v805 = vpop.f32.mrb[0].mxu0
    %v806 = vadd.f32 %v93, %v805
    %v807 = vpop.f32.mrb[0].mxu0
    %v808 = vadd.f32 %v97, %v807
    %809 = vmatprep.mubr.f32.mxu0 0.0
    %810 = vmatmul.mubr.f32.gmra.mrb[0].mxu0 %v161
    %v811 = vpop.f32.mrb[0].mxu0
    %v812 = vadd.f32 %v93, %v811
    %v813 = vpop.f32.mrb[0].mxu0
    %v814 = vadd.f32 %v97, %v813
    %815 = vmatprep.mubr.f32.mxu0 0.0
    %816 = vmatmul.mubr.f32.gmra.mrb[0].mxu0 %v164
    %v817 = vpop.f32.mrb[0].mxu0
    %v818 = vadd.f32 %v93, %v817
    %v819 = vpop.f32.mrb[0].mxu0
    %v820 = vadd.f32 %v97, %v819
    %821 = vmatprep.mubr.f32.mxu0 0.0
    %822 = vmatmul.mubr.f32.gmra.mrb[0].mxu0 %v167
    %v823 = vpop.f32.mrb[0].mxu0
    %v824 = vadd.f32 %v93, %v823
    %v825 = vpop.f32.mrb[0].mxu0
    %v826 = vadd.f32 %v97, %v825
    %827 = vmatprep.mubr.f32.mxu0 0.0
    %828 = vmatmul.mubr.f32.gmra.mrb[0].mxu0 %v170
    %v829 = vpop.f32.mrb[0].mxu0
    %v830 = vadd.f32 %v93, %v829
    %v831 = vpop.f32.mrb[0].mxu0
    %v832 = vadd.f32 %v97, %v831
    %833 = vmatprep.mubr.f32.mxu0 0.0
    %834 = vmatmul.mubr.f32.gmra.mrb[0].mxu0 %v173
    %v835 = vpop.f32.mrb[0].mxu0
    %v836 = vadd.f32 %v93, %v835
    %v837 = vpop.f32.mrb[0].mxu0
    %v838 = vadd.f32 %v97, %v837
    %839 = vdwg.mxu0
    %840 = vmatprep.subr.mxu0 %v194
    %841 = vmatpush1.msra.mxu0 %v192
    %842 = vmatprep.subr.mxu0 0.0
    %843 = vmatpush1.msra.mxu0 0.0
    %844 = vmatprep.subr.mxu0 0.0
    %845 = vmatpush1.msra.mxu0 0.0
    %846 = vmatprep.subr.mxu0 0.0
    %847 = vmatpush1.msra.mxu0 0.0
    %848 = vmatprep.subr.mxu0 0.0
    %849 = vmatpush1.msra.mxu0 0.0
    %850 = vmatprep.subr.mxu0 0.0
    %851 = vmatpush1.msra.mxu0 0.0
    %852 = vmatprep.subr.mxu0 0.0
    %853 = vmatpush1.msra.mxu0 0.0
    %854 = vmatprep.subr.mxu0 0.0
    %855 = vmatpush1.msra.mxu0 0.0
    %856 = vmatprep.subr.mxu0 0.0
    %857 = vmatpush1.msra.mxu0 0.0
    %858 = vmatprep.subr.mxu0 0.0
    %859 = vmatpush1.msra.mxu0 0.0
    %860 = vmatprep.subr.mxu0 0.0
    %861 = vmatpush1.msra.mxu0 0.0
    %862 = vmatprep.subr.mxu0 0.0
    %863 = vmatpush1.msra.mxu0 0.0
    %864 = vmatprep.subr.mxu0 0.0
    %865 = vmatpush1.msra.mxu0 0.0
    %866 = vmatprep.subr.mxu0 0.0
    %867 = vmatpush1.msra.mxu0 0.0
    %868 = vmatprep.subr.mxu0 0.0
    %869 = vmatpush1.msra.mxu0 0.0
    %870 = vmatprep.subr.mxu0 0.0
    %871 = vmatpush1.msra.mxu0 0.0
    %872 = vmatprep.subr.mxu0 0.0
    %873 = vmatpush1.msra.mxu0 0.0
    %874 = vmatprep.subr.mxu0 0.0
    %875 = vmatpush1.msra.mxu0 0.0
    %876 = vmatprep.subr.mxu0 0.0
    %877 = vmatpush1.msra.mxu0 0.0
    %878 = vmatprep.subr.mxu0 0.0
    %879 = vmatpush1.msra.mxu0 0.0
    %880 = vmatprep.subr.mxu0 0.0
    %881 = vmatpush1.msra.mxu0 0.0
    %882 = vmatprep.subr.mxu0 0.0
    %883 = vmatpush1.msra.mxu0 0.0
    %884 = vmatprep.subr.mxu0 0.0
    %885 = vmatpush1.msra.mxu0 0.0
    %886 = vmatprep.subr.mxu0 0.0
    %887 = vmatpush1.msra.mxu0 0.0
    %888 = vmatprep.subr.mxu0 0.0
    %889 = vmatpush1.msra.mxu0 0.0
    %890 = vmatprep.subr.mxu0 0.0
    %891 = vmatpush1.msra.mxu0 0.0
    %892 = vmatprep.subr.mxu0 0.0
    %893 = vmatpush1.msra.mxu0 0.0
    %894 = vmatprep.subr.mxu0 0.0
    %895 = vmatpush1.msra.mxu0 0.0
    %896 = vmatprep.subr.mxu0 0.0
    %897 = vmatpush1.msra.mxu0 0.0
    %898 = vmatprep.subr.mxu0 0.0
    %899 = vmatpush1.msra.mxu0 0.0
    %900 = vmatprep.subr.mxu0 0.0
    %901 = vmatpush1.msra.mxu0 0.0
    %902 = vmatprep.subr.mxu0 0.0
    %903 = vmatpush1.msra.mxu0 0.0
    %904 = vmatprep.mubr.f32.mxu0 0.0
    %905 = vmatmul.mubr.f32.gmra.mrb[0].mxu0 %v128
    %v906 = vpop.f32.mrb[0].mxu0
    %v907 = vadd.f32 %v101, %v906
    %v908 = vpop.f32.mrb[0].mxu0
    %v909 = vadd.f32 %v105, %v908
    %910 = vmatprep.mubr.f32.mxu0 0.0
    %911 = vmatmul.mubr.f32.gmra.mrb[0].mxu0 %v131
    %v912 = vpop.f32.mrb[0].mxu0
    %v913 = vadd.f32 %v101, %v912
    %v914 = vpop.f32.mrb[0].mxu0
    %v915 = vadd.f32 %v105, %v914
    %916 = vmatprep.mubr.f32.mxu0 0.0
    %917 = vmatmul.mubr.f32.gmra.mrb[0].mxu0 %v134
    %v918 = vpop.f32.mrb[0].mxu0
    %v919 = vadd.f32 %v101, %v918
    %v920 = vpop.f32.mrb[0].mxu0
    %v921 = vadd.f32 %v105, %v920
    %922 = vmatprep.mubr.f32.mxu0 0.0
    %923 = vmatmul.mubr.f32.gmra.mrb[0].mxu0 %v137
    %v924 = vpop.f32.mrb[0].mxu0
    %v925 = vadd.f32 %v101, %v924
    %v926 = vpop.f32.mrb[0].mxu0
    %v927 = vadd.f32 %v105, %v926
    %928 = vmatprep.mubr.f32.mxu0 0.0
    %929 = vmatmul.mubr.f32.gmra.mrb[0].mxu0 %v140
    %v930 = vpop.f32.mrb[0].mxu0
    %v931 = vadd.f32 %v101, %v930
    %v932 = vpop.f32.mrb[0].mxu0
    %v933 = vadd.f32 %v105, %v932
    %934 = vmatprep.mubr.f32.mxu0 0.0
    %935 = vmatmul.mubr.f32.gmra.mrb[0].mxu0 %v143
    %v936 = vpop.f32.mrb[0].mxu0
    %v937 = vadd.f32 %v101, %v936
    %v938 = vpop.f32.mrb[0].mxu0
    %v939 = vadd.f32 %v105, %v938
    %940 = vmatprep.mubr.f32.mxu0 0.0
    %941 = vmatmul.mubr.f32.gmra.mrb[0].mxu0 %v146
    %v942 = vpop.f32.mrb[0].mxu0
    %v943 = vadd.f32 %v101, %v942
    %v944 = vpop.f32.mrb[0].mxu0
    %v945 = vadd.f32 %v105, %v944
    %946 = vmatprep.mubr.f32.mxu0 0.0
    %947 = vmatmul.mubr.f32.gmra.mrb[0].mxu0 %v149
    %v948 = vpop.f32.mrb[0].mxu0
    %v949 = vadd.f32 %v101, %v948
    %v950 = vpop.f32.mrb[0].mxu0
    %v951 = vadd.f32 %v105, %v950
    %952 = vmatprep.mubr.f32.mxu0 0.0
    %953 = vmatmul.mubr.f32.gmra.mrb[0].mxu0 %v152
    %v954 = vpop.f32.mrb[0].mxu0
    %v955 = vadd.f32 %v101, %v954
    %v956 = vpop.f32.mrb[0].mxu0
    %v957 = vadd.f32 %v105, %v956
    %958 = vmatprep.mubr.f32.mxu0 0.0
    %959 = vmatmul.mubr.f32.gmra.mrb[0].mxu0 %v155
    %v960 = vpop.f32.mrb[0].mxu0
    %v961 = vadd.f32 %v101, %v960
    %v962 = vpop.f32.mrb[0].mxu0
    %v963 = vadd.f32 %v105, %v962
    %964 = vmatprep.mubr.f32.mxu0 0.0
    %965 = vmatmul.mubr.f32.gmra.mrb[0].mxu0 %v158
    %v966 = vpop.f32.mrb[0].mxu0
    %v967 = vadd.f32 %v101, %v966
    %v968 = vpop.f32.mrb[0].mxu0
    %v969 = vadd.f32 %v105, %v968
    %970 = vmatprep.mubr.f32.mxu0 0.0
    %971 = vmatmul.mubr.f32.gmra.mrb[0].mxu0 %v161
    %v972 = vpop.f32.mrb[0].mxu0
    %v973 = vadd.f32 %v101, %v972
    %v974 = vpop.f32.mrb[0].mxu0
    %v975 = vadd.f32 %v105, %v974
    %976 = vmatprep.mubr.f32.mxu0 0.0
    %977 = vmatmul.mubr.f32.gmra.mrb[0].mxu0 %v164
    %v978 = vpop.f32.mrb[0].mxu0
    %v979 = vadd.f32 %v101, %v978
    %v980 = vpop.f32.mrb[0].mxu0
    %v981 = vadd.f32 %v105, %v980
    %982 = vmatprep.mubr.f32.mxu0 0.0
    %983 = vmatmul.mubr.f32.gmra.mrb[0].mxu0 %v167
    %v984 = vpop.f32.mrb[0].mxu0
    %v985 = vadd.f32 %v101, %v984
    %v986 = vpop.f32.mrb[0].mxu0
    %v987 = vadd.f32 %v105, %v986
    %988 = vmatprep.mubr.f32.mxu0 0.0
    %989 = vmatmul.mubr.f32.gmra.mrb[0].mxu0 %v170
    %v990 = vpop.f32.mrb[0].mxu0
    %v991 = vadd.f32 %v101, %v990
    %v992 = vpop.f32.mrb[0].mxu0
    %v993 = vadd.f32 %v105, %v992
    %994 = vmatprep.mubr.f32.mxu0 0.0
    %995 = vmatmul.mubr.f32.gmra.mrb[0].mxu0 %v173
    %v996 = vpop.f32.mrb[0].mxu0
    %v997 = vadd.f32 %v101, %v996
    %v998 = vpop.f32.mrb[0].mxu0
    %v999 = vadd.f32 %v105, %v998
    %1000 = vdwg.mxu0
    %v1001 = vmax.f32 %v263, 0.0
    %v1002 = vmax.f32 %v265, 0.0
    %v1003 = vmax.f32 %v424, 0.0
    %v1004 = vmax.f32 %v426, 0.0
    %v1005 = vmax.f32 %v585, 0.0
    %v1006 = vmax.f32 %v587, 0.0
    %v1007 = vmax.f32 %v746, 0.0
    %v1008 = vmax.f32 %v748, 0.0
    %v1009 = vmax.f32 %v907, 0.0
    %v1010 = vmax.f32 %v909, 0.0
    %v1011 = vmax.f32 %v269, 0.0
    %v1012 = vmax.f32 %v271, 0.0
    %v1013 = vmax.f32 %v430, 0.0
    %v1014 = vmax.f32 %v432, 0.0
    %v1015 = vmax.f32 %v591, 0.0
    %v1016 = vmax.f32 %v593, 0.0
    %v1017 = vmax.f32 %v752, 0.0
    %v1018 = vmax.f32 %v754, 0.0
    %v1019 = vmax.f32 %v913, 0.0
    %v1020 = vmax.f32 %v915, 0.0
    %v1021 = vmax.f32 %v275, 0.0
    %v1022 = vmax.f32 %v277, 0.0
    %v1023 = vmax.f32 %v436, 0.0
    %v1024 = vmax.f32 %v438, 0.0
    %v1025 = vmax.f32 %v597, 0.0
    %v1026 = vmax.f32 %v599, 0.0
    %v1027 = vmax.f32 %v758, 0.0
    %v1028 = vmax.f32 %v760, 0.0
    %v1029 = vmax.f32 %v919, 0.0
    %v1030 = vmax.f32 %v921, 0.0
    %v1031 = vmax.f32 %v281, 0.0
    %v1032 = vmax.f32 %v283, 0.0
    %v1033 = vmax.f32 %v442, 0.0
    %v1034 = vmax.f32 %v444, 0.0
    %v1035 = vmax.f32 %v603, 0.0
    %v1036 = vmax.f32 %v605, 0.0
    %v1037 = vmax.f32 %v764, 0.0
    %v1038 = vmax.f32 %v766, 0.0
    %v1039 = vmax.f32 %v925, 0.0
    %v1040 = vmax.f32 %v927, 0.0
    %v1041 = vmax.f32 %v287, 0.0
    %v1042 = vmax.f32 %v289, 0.0
    %v1043 = vmax.f32 %v448, 0.0
    %v1044 = vmax.f32 %v450, 0.0
    %v1045 = vmax.f32 %v609, 0.0
    %v1046 = vmax.f32 %v611, 0.0
    %v1047 = vmax.f32 %v770, 0.0
    %v1048 = vmax.f32 %v772, 0.0
    %v1049 = vmax.f32 %v931, 0.0
    %v1050 = vmax.f32 %v933, 0.0
    %v1051 = vmax.f32 %v293, 0.0
    %v1052 = vmax.f32 %v295, 0.0
    %v1053 = vmax.f32 %v454, 0.0
    %v1054 = vmax.f32 %v456, 0.0
    %v1055 = vmax.f32 %v615, 0.0
    %v1056 = vmax.f32 %v617, 0.0
    %v1057 = vmax.f32 %v776, 0.0
    %v1058 = vmax.f32 %v778, 0.0
    %v1059 = vmax.f32 %v937, 0.0
    %v1060 = vmax.f32 %v939, 0.0
    %v1061 = vmax.f32 %v299, 0.0
    %v1062 = vmax.f32 %v301, 0.0
    %v1063 = vmax.f32 %v460, 0.0
    %v1064 = vmax.f32 %v462, 0.0
    %v1065 = vmax.f32 %v621, 0.0
    %v1066 = vmax.f32 %v623, 0.0
    %v1067 = vmax.f32 %v782, 0.0
    %v1068 = vmax.f32 %v784, 0.0
    %v1069 = vmax.f32 %v943, 0.0
    %v1070 = vmax.f32 %v945, 0.0
    %v1071 = vmax.f32 %v305, 0.0
    %v1072 = vmax.f32 %v307, 0.0
    %v1073 = vmax.f32 %v466, 0.0
    %v1074 = vmax.f32 %v468, 0.0
    %v1075 = vmax.f32 %v627, 0.0
    %v1076 = vmax.f32 %v629, 0.0
    %v1077 = vmax.f32 %v788, 0.0
    %v1078 = vmax.f32 %v790, 0.0
    %v1079 = vmax.f32 %v949, 0.0
    %v1080 = vmax.f32 %v951, 0.0
    %v1081 = vmax.f32 %v311, 0.0
    %v1082 = vmax.f32 %v313, 0.0
    %v1083 = vmax.f32 %v472, 0.0
    %v1084 = vmax.f32 %v474, 0.0
    %v1085 = vmax.f32 %v633, 0.0
    %v1086 = vmax.f32 %v635, 0.0
    %v1087 = vmax.f32 %v794, 0.0
    %v1088 = vmax.f32 %v796, 0.0
    %v1089 = vmax.f32 %v955, 0.0
    %v1090 = vmax.f32 %v957, 0.0
    %v1091 = vmax.f32 %v317, 0.0
    %v1092 = vmax.f32 %v319, 0.0
    %v1093 = vmax.f32 %v478, 0.0
    %v1094 = vmax.f32 %v480, 0.0
    %v1095 = vmax.f32 %v639, 0.0
    %v1096 = vmax.f32 %v641, 0.0
    %v1097 = vmax.f32 %v800, 0.0
    %v1098 = vmax.f32 %v802, 0.0
    %v1099 = vmax.f32 %v961, 0.0
    %v1100 = vmax.f32 %v963, 0.0
    %v1101 = vmax.f32 %v323, 0.0
    %v1102 = vmax.f32 %v325, 0.0
    %v1103 = vmax.f32 %v484, 0.0
    %v1104 = vmax.f32 %v486, 0.0
    %v1105 = vmax.f32 %v645, 0.0
    %v1106 = vmax.f32 %v647, 0.0
    %v1107 = vmax.f32 %v806, 0.0
    %v1108 = vmax.f32 %v808, 0.0
    %v1109 = vmax.f32 %v967, 0.0
    %v1110 = vmax.f32 %v969, 0.0
    %v1111 = vmax.f32 %v329, 0.0
    %v1112 = vmax.f32 %v331, 0.0
    %v1113 = vmax.f32 %v490, 0.0
    %v1114 = vmax.f32 %v492, 0.0
    %v1115 = vmax.f32 %v651, 0.0
    %v1116 = vmax.f32 %v653, 0.0
    %v1117 = vmax.f32 %v812, 0.0
    %v1118 = vmax.f32 %v814, 0.0
    %v1119 = vmax.f32 %v973, 0.0
    %v1120 = vmax.f32 %v975, 0.0
    %v1121 = vmax.f32 %v335, 0.0
    %v1122 = vmax.f32 %v337, 0.0
    %v1123 = vmax.f32 %v496, 0.0
    %v1124 = vmax.f32 %v498, 0.0
    %v1125 = vmax.f32 %v657, 0.0
    %v1126 = vmax.f32 %v659, 0.0
    %v1127 = vmax.f32 %v818, 0.0
    %v1128 = vmax.f32 %v820, 0.0
    %v1129 = vmax.f32 %v979, 0.0
    %v1130 = vmax.f32 %v981, 0.0
    %v1131 = vmax.f32 %v341, 0.0
    %v1132 = vmax.f32 %v343, 0.0
    %v1133 = vmax.f32 %v502, 0.0
    %v1134 = vmax.f32 %v504, 0.0
    %v1135 = vmax.f32 %v663, 0.0
    %v1136 = vmax.f32 %v665, 0.0
    %v1137 = vmax.f32 %v824, 0.0
    %v1138 = vmax.f32 %v826, 0.0
    %v1139 = vmax.f32 %v985, 0.0
    %v1140 = vmax.f32 %v987, 0.0
    %v1141 = vmax.f32 %v347, 0.0
    %v1142 = vmax.f32 %v349, 0.0
    %v1143 = vmax.f32 %v508, 0.0
    %v1144 = vmax.f32 %v510, 0.0
    %v1145 = vmax.f32 %v669, 0.0
    %v1146 = vmax.f32 %v671, 0.0
    %v1147 = vmax.f32 %v830, 0.0
    %v1148 = vmax.f32 %v832, 0.0
    %v1149 = vmax.f32 %v991, 0.0
    %v1150 = vmax.f32 %v993, 0.0
    %v1151 = vmax.f32 %v353, 0.0
    %v1152 = vmax.f32 %v355, 0.0
    %v1153 = vmax.f32 %v514, 0.0
    %v1154 = vmax.f32 %v516, 0.0
    %v1155 = vmax.f32 %v675, 0.0
    %v1156 = vmax.f32 %v677, 0.0
    %v1157 = vmax.f32 %v836, 0.0
    %v1158 = vmax.f32 %v838, 0.0
    %v1159 = vmax.f32 %v997, 0.0
    %v1160 = vmax.f32 %v999, 0.0
    %1161 = vmatprep.subr.mxu0 %v1002
    %1162 = vmatpush1.msra.mxu0 %v1001
    %1163 = vmatprep.subr.mxu0 %v1012
    %1164 = vmatpush1.msra.mxu0 %v1011
    %1165 = vmatprep.subr.mxu0 %v1022
    %1166 = vmatpush1.msra.mxu0 %v1021
    %1167 = vmatprep.subr.mxu0 %v1032
    %1168 = vmatpush1.msra.mxu0 %v1031
    %1169 = vmatprep.subr.mxu0 %v1042
    %1170 = vmatpush1.msra.mxu0 %v1041
    %1171 = vmatprep.subr.mxu0 %v1052
    %1172 = vmatpush1.msra.mxu0 %v1051
    %1173 = vmatprep.subr.mxu0 %v1062
    %1174 = vmatpush1.msra.mxu0 %v1061
    %1175 = vmatprep.subr.mxu0 %v1072
    %1176 = vmatpush1.msra.mxu0 %v1071
    %1177 = vmatprep.subr.mxu0 %v1082
    %1178 = vmatpush1.msra.mxu0 %v1081
    %1179 = vmatprep.subr.mxu0 %v1092
    %1180 = vmatpush1.msra.mxu0 %v1091
    %1181 = vmatprep.subr.mxu0 %v1102
    %1182 = vmatpush1.msra.mxu0 %v1101
    %1183 = vmatprep.subr.mxu0 %v1112
    %1184 = vmatpush1.msra.mxu0 %v1111
    %1185 = vmatprep.subr.mxu0 %v1122
    %1186 = vmatpush1.msra.mxu0 %v1121
    %1187 = vmatprep.subr.mxu0 %v1132
    %1188 = vmatpush1.msra.mxu0 %v1131
    %1189 = vmatprep.subr.mxu0 %v1142
    %1190 = vmatpush1.msra.mxu0 %v1141
    %1191 = vmatprep.subr.mxu0 %v1152
    %1192 = vmatpush1.msra.mxu0 %v1151
    %1193 = vmatprep.subr.mxu0 0.0
    %1194 = vmatpush1.msra.mxu0 0.0
    %1195 = vmatprep.subr.mxu0 0.0
    %1196 = vmatpush1.msra.mxu0 0.0
    %1197 = vmatprep.subr.mxu0 0.0
    %1198 = vmatpush1.msra.mxu0 0.0
    %1199 = vmatprep.subr.mxu0 0.0
    %1200 = vmatpush1.msra.mxu0 0.0
    %1201 = vmatprep.subr.mxu0 0.0
    %1202 = vmatpush1.msra.mxu0 0.0
    %1203 = vmatprep.subr.mxu0 0.0
    %1204 = vmatpush1.msra.mxu0 0.0
    %1205 = vmatprep.subr.mxu0 0.0
    %1206 = vmatpush1.msra.mxu0 0.0
    %1207 = vmatprep.subr.mxu0 0.0
    %1208 = vmatpush1.msra.mxu0 0.0
    %1209 = vmatprep.subr.mxu0 0.0
    %1210 = vmatpush1.msra.mxu0 0.0
    %1211 = vmatprep.subr.mxu0 0.0
    %1212 = vmatpush1.msra.mxu0 0.0
    %1213 = vmatprep.subr.mxu0 0.0
    %1214 = vmatpush1.msra.mxu0 0.0
    %1215 = vmatprep.subr.mxu0 0.0
    %1216 = vmatpush1.msra.mxu0 0.0
    %1217 = vmatprep.subr.mxu0 0.0
    %1218 = vmatpush1.msra.mxu0 0.0
    %1219 = vmatprep.subr.mxu0 0.0
    %1220 = vmatpush1.msra.mxu0 0.0
    %1221 = vmatprep.subr.mxu0 0.0
    %1222 = vmatpush1.msra.mxu0 0.0
    %1223 = vmatprep.subr.mxu0 0.0
    %1224 = vmatpush1.msra.mxu0 0.0
    %1225 = vmatprep.mubr.f32.mxu0 0.0
    %1226 = vmatmul.mubr.f32.gmra.mrb[0].mxu0 %v40
    %v1227 = vpop.f32.mrb[0].mxu0
    %v1228 = vadd.f32 0.0, %v1227
    %v1229 = vpop.f32.mrb[0].mxu0
    %v1230 = vadd.f32 0.0, %v1229
    %1231 = vdwg.mxu0
    %1232 = vmatprep.subr.mxu0 %v1004
    %1233 = vmatpush1.msra.mxu0 %v1003
    %1234 = vmatprep.subr.mxu0 %v1014
    %1235 = vmatpush1.msra.mxu0 %v1013
    %1236 = vmatprep.subr.mxu0 %v1024
    %1237 = vmatpush1.msra.mxu0 %v1023
    %1238 = vmatprep.subr.mxu0 %v1034
    %1239 = vmatpush1.msra.mxu0 %v1033
    %1240 = vmatprep.subr.mxu0 %v1044
    %1241 = vmatpush1.msra.mxu0 %v1043
    %1242 = vmatprep.subr.mxu0 %v1054
    %1243 = vmatpush1.msra.mxu0 %v1053
    %1244 = vmatprep.subr.mxu0 %v1064
    %1245 = vmatpush1.msra.mxu0 %v1063
    %1246 = vmatprep.subr.mxu0 %v1074
    %1247 = vmatpush1.msra.mxu0 %v1073
    %1248 = vmatprep.subr.mxu0 %v1084
    %1249 = vmatpush1.msra.mxu0 %v1083
    %1250 = vmatprep.subr.mxu0 %v1094
    %1251 = vmatpush1.msra.mxu0 %v1093
    %1252 = vmatprep.subr.mxu0 %v1104
    %1253 = vmatpush1.msra.mxu0 %v1103
    %1254 = vmatprep.subr.mxu0 %v1114
    %1255 = vmatpush1.msra.mxu0 %v1113
    %1256 = vmatprep.subr.mxu0 %v1124
    %1257 = vmatpush1.msra.mxu0 %v1123
    %1258 = vmatprep.subr.mxu0 %v1134
    %1259 = vmatpush1.msra.mxu0 %v1133
    %1260 = vmatprep.subr.mxu0 %v1144
    %1261 = vmatpush1.msra.mxu0 %v1143
    %1262 = vmatprep.subr.mxu0 %v1154
    %1263 = vmatpush1.msra.mxu0 %v1153
    %1264 = vmatprep.subr.mxu0 0.0
    %1265 = vmatpush1.msra.mxu0 0.0
    %1266 = vmatprep.subr.mxu0 0.0
    %1267 = vmatpush1.msra.mxu0 0.0
    %1268 = vmatprep.subr.mxu0 0.0
    %1269 = vmatpush1.msra.mxu0 0.0
    %1270 = vmatprep.subr.mxu0 0.0
    %1271 = vmatpush1.msra.mxu0 0.0
    %1272 = vmatprep.subr.mxu0 0.0
    %1273 = vmatpush1.msra.mxu0 0.0
    %1274 = vmatprep.subr.mxu0 0.0
    %1275 = vmatpush1.msra.mxu0 0.0
    %1276 = vmatprep.subr.mxu0 0.0
    %1277 = vmatpush1.msra.mxu0 0.0
    %1278 = vmatprep.subr.mxu0 0.0
    %1279 = vmatpush1.msra.mxu0 0.0
    %1280 = vmatprep.subr.mxu0 0.0
    %1281 = vmatpush1.msra.mxu0 0.0
    %1282 = vmatprep.subr.mxu0 0.0
    %1283 = vmatpush1.msra.mxu0 0.0
    %1284 = vmatprep.subr.mxu0 0.0
    %1285 = vmatpush1.msra.mxu0 0.0
    %1286 = vmatprep.subr.mxu0 0.0
    %1287 = vmatpush1.msra.mxu0 0.0
    %1288 = vmatprep.subr.mxu0 0.0
    %1289 = vmatpush1.msra.mxu0 0.0
    %1290 = vmatprep.subr.mxu0 0.0
    %1291 = vmatpush1.msra.mxu0 0.0
    %1292 = vmatprep.subr.mxu0 0.0
    %1293 = vmatpush1.msra.mxu0 0.0
    %1294 = vmatprep.subr.mxu0 0.0
    %1295 = vmatpush1.msra.mxu0 0.0
    %1296 = vmatprep.mubr.f32.mxu0 0.0
    %1297 = vmatmul.mubr.f32.gmra.mrb[0].mxu0 %v40
    %v1298 = vpop.f32.mrb[0].mxu0
    %v1299 = vadd.f32 0.0, %v1298
    %v1300 = vpop.f32.mrb[0].mxu0
    %v1301 = vadd.f32 0.0, %v1300
    %1302 = vdwg.mxu0
    %1303 = vmatprep.subr.mxu0 %v1006
    %1304 = vmatpush1.msra.mxu0 %v1005
    %1305 = vmatprep.subr.mxu0 %v1016
    %1306 = vmatpush1.msra.mxu0 %v1015
    %1307 = vmatprep.subr.mxu0 %v1026
    %1308 = vmatpush1.msra.mxu0 %v1025
    %1309 = vmatprep.subr.mxu0 %v1036
    %1310 = vmatpush1.msra.mxu0 %v1035
    %1311 = vmatprep.subr.mxu0 %v1046
    %1312 = vmatpush1.msra.mxu0 %v1045
    %1313 = vmatprep.subr.mxu0 %v1056
    %1314 = vmatpush1.msra.mxu0 %v1055
    %1315 = vmatprep.subr.mxu0 %v1066
    %1316 = vmatpush1.msra.mxu0 %v1065
    %1317 = vmatprep.subr.mxu0 %v1076
    %1318 = vmatpush1.msra.mxu0 %v1075
    %1319 = vmatprep.subr.mxu0 %v1086
    %1320 = vmatpush1.msra.mxu0 %v1085
    %1321 = vmatprep.subr.mxu0 %v1096
    %1322 = vmatpush1.msra.mxu0 %v1095
    %1323 = vmatprep.subr.mxu0 %v1106
    %1324 = vmatpush1.msra.mxu0 %v1105
    %1325 = vmatprep.subr.mxu0 %v1116
    %1326 = vmatpush1.msra.mxu0 %v1115
    %1327 = vmatprep.subr.mxu0 %v1126
    %1328 = vmatpush1.msra.mxu0 %v1125
    %1329 = vmatprep.subr.mxu0 %v1136
    %1330 = vmatpush1.msra.mxu0 %v1135
    %1331 = vmatprep.subr.mxu0 %v1146
    %1332 = vmatpush1.msra.mxu0 %v1145
    %1333 = vmatprep.subr.mxu0 %v1156
    %1334 = vmatpush1.msra.mxu0 %v1155
    %1335 = vmatprep.subr.mxu0 0.0
    %1336 = vmatpush1.msra.mxu0 0.0
    %1337 = vmatprep.subr.mxu0 0.0
    %1338 = vmatpush1.msra.mxu0 0.0
    %1339 = vmatprep.subr.mxu0 0.0
    %1340 = vmatpush1.msra.mxu0 0.0
    %1341 = vmatprep.subr.mxu0 0.0
    %1342 = vmatpush1.msra.mxu0 0.0
    %1343 = vmatprep.subr.mxu0 0.0
    %1344 = vmatpush1.msra.mxu0 0.0
    %1345 = vmatprep.subr.mxu0 0.0
    %1346 = vmatpush1.msra.mxu0 0.0
    %1347 = vmatprep.subr.mxu0 0.0
    %1348 = vmatpush1.msra.mxu0 0.0
    %1349 = vmatprep.subr.mxu0 0.0
    %1350 = vmatpush1.msra.mxu0 0.0
    %1351 = vmatprep.subr.mxu0 0.0
    %1352 = vmatpush1.msra.mxu0 0.0
    %1353 = vmatprep.subr.mxu0 0.0
    %1354 = vmatpush1.msra.mxu0 0.0
    %1355 = vmatprep.subr.mxu0 0.0
    %1356 = vmatpush1.msra.mxu0 0.0
    %1357 = vmatprep.subr.mxu0 0.0
    %1358 = vmatpush1.msra.mxu0 0.0
    %1359 = vmatprep.subr.mxu0 0.0
    %1360 = vmatpush1.msra.mxu0 0.0
    %1361 = vmatprep.subr.mxu0 0.0
    %1362 = vmatpush1.msra.mxu0 0.0
    %1363 = vmatprep.subr.mxu0 0.0
    %1364 = vmatpush1.msra.mxu0 0.0
    %1365 = vmatprep.subr.mxu0 0.0
    %1366 = vmatpush1.msra.mxu0 0.0
    %1367 = vmatprep.mubr.f32.mxu0 0.0
    %1368 = vmatmul.mubr.f32.gmra.mrb[0].mxu0 %v40
    %v1369 = vpop.f32.mrb[0].mxu0
    %v1370 = vadd.f32 0.0, %v1369
    %v1371 = vpop.f32.mrb[0].mxu0
    %v1372 = vadd.f32 0.0, %v1371
    %1373 = vdwg.mxu0
    %1374 = vmatprep.subr.mxu0 %v1008
    %1375 = vmatpush1.msra.mxu0 %v1007
    %1376 = vmatprep.subr.mxu0 %v1018
    %1377 = vmatpush1.msra.mxu0 %v1017
    %1378 = vmatprep.subr.mxu0 %v1028
    %1379 = vmatpush1.msra.mxu0 %v1027
    %1380 = vmatprep.subr.mxu0 %v1038
    %1381 = vmatpush1.msra.mxu0 %v1037
    %1382 = vmatprep.subr.mxu0 %v1048
    %1383 = vmatpush1.msra.mxu0 %v1047
    %1384 = vmatprep.subr.mxu0 %v1058
    %1385 = vmatpush1.msra.mxu0 %v1057
    %1386 = vmatprep.subr.mxu0 %v1068
    %1387 = vmatpush1.msra.mxu0 %v1067
    %1388 = vmatprep.subr.mxu0 %v1078
    %1389 = vmatpush1.msra.mxu0 %v1077
    %1390 = vmatprep.subr.mxu0 %v1088
    %1391 = vmatpush1.msra.mxu0 %v1087
    %1392 = vmatprep.subr.mxu0 %v1098
    %1393 = vmatpush1.msra.mxu0 %v1097
    %1394 = vmatprep.subr.mxu0 %v1108
    %1395 = vmatpush1.msra.mxu0 %v1107
    %1396 = vmatprep.subr.mxu0 %v1118
    %1397 = vmatpush1.msra.mxu0 %v1117
    %1398 = vmatprep.subr.mxu0 %v1128
    %1399 = vmatpush1.msra.mxu0 %v1127
    %1400 = vmatprep.subr.mxu0 %v1138
    %1401 = vmatpush1.msra.mxu0 %v1137
    %1402 = vmatprep.subr.mxu0 %v1148
    %1403 = vmatpush1.msra.mxu0 %v1147
    %1404 = vmatprep.subr.mxu0 %v1158
    %1405 = vmatpush1.msra.mxu0 %v1157
    %1406 = vmatprep.subr.mxu0 0.0
    %1407 = vmatpush1.msra.mxu0 0.0
    %1408 = vmatprep.subr.mxu0 0.0
    %1409 = vmatpush1.msra.mxu0 0.0
    %1410 = vmatprep.subr.mxu0 0.0
    %1411 = vmatpush1.msra.mxu0 0.0
    %1412 = vmatprep.subr.mxu0 0.0
    %1413 = vmatpush1.msra.mxu0 0.0
    %1414 = vmatprep.subr.mxu0 0.0
    %1415 = vmatpush1.msra.mxu0 0.0
    %1416 = vmatprep.subr.mxu0 0.0
    %1417 = vmatpush1.msra.mxu0 0.0
    %1418 = vmatprep.subr.mxu0 0.0
    %1419 = vmatpush1.msra.mxu0 0.0
    %1420 = vmatprep.subr.mxu0 0.0
    %1421 = vmatpush1.msra.mxu0 0.0
    %1422 = vmatprep.subr.mxu0 0.0
    %1423 = vmatpush1.msra.mxu0 0.0
    %1424 = vmatprep.subr.mxu0 0.0
    %1425 = vmatpush1.msra.mxu0 0.0
    %1426 = vmatprep.subr.mxu0 0.0
    %1427 = vmatpush1.msra.mxu0 0.0
    %1428 = vmatprep.subr.mxu0 0.0
    %1429 = vmatpush1.msra.mxu0 0.0
    %1430 = vmatprep.subr.mxu0 0.0
    %1431 = vmatpush1.msra.mxu0 0.0
    %1432 = vmatprep.subr.mxu0 0.0
    %1433 = vmatpush1.msra.mxu0 0.0
    %1434 = vmatprep.subr.mxu0 0.0
    %1435 = vmatpush1.msra.mxu0 0.0
    %1436 = vmatprep.subr.mxu0 0.0
    %1437 = vmatpush1.msra.mxu0 0.0
    %1438 = vmatprep.mubr.f32.mxu0 0.0
    %1439 = vmatmul.mubr.f32.gmra.mrb[0].mxu0 %v40
    %v1440 = vpop.f32.mrb[0].mxu0
    %v1441 = vadd.f32 0.0, %v1440
    %v1442 = vpop.f32.mrb[0].mxu0
    %v1443 = vadd.f32 0.0, %v1442
    %1444 = vdwg.mxu0
    %1445 = vmatprep.subr.mxu0 %v1010
    %1446 = vmatpush1.msra.mxu0 %v1009
    %1447 = vmatprep.subr.mxu0 %v1020
    %1448 = vmatpush1.msra.mxu0 %v1019
    %1449 = vmatprep.subr.mxu0 %v1030
    %1450 = vmatpush1.msra.mxu0 %v1029
    %1451 = vmatprep.subr.mxu0 %v1040
    %1452 = vmatpush1.msra.mxu0 %v1039
    %1453 = vmatprep.subr.mxu0 %v1050
    %1454 = vmatpush1.msra.mxu0 %v1049
    %1455 = vmatprep.subr.mxu0 %v1060
    %1456 = vmatpush1.msra.mxu0 %v1059
    %1457 = vmatprep.subr.mxu0 %v1070
    %1458 = vmatpush1.msra.mxu0 %v1069
    %1459 = vmatprep.subr.mxu0 %v1080
    %1460 = vmatpush1.msra.mxu0 %v1079
    %1461 = vmatprep.subr.mxu0 %v1090
    %1462 = vmatpush1.msra.mxu0 %v1089
    %1463 = vmatprep.subr.mxu0 %v1100
    %1464 = vmatpush1.msra.mxu0 %v1099
    %1465 = vmatprep.subr.mxu0 %v1110
    %1466 = vmatpush1.msra.mxu0 %v1109
    %1467 = vmatprep.subr.mxu0 %v1120
    %1468 = vmatpush1.msra.mxu0 %v1119
    %1469 = vmatprep.subr.mxu0 %v1130
    %1470 = vmatpush1.msra.mxu0 %v1129
    %1471 = vmatprep.subr.mxu0 %v1140
    %1472 = vmatpush1.msra.mxu0 %v1139
    %1473 = vmatprep.subr.mxu0 %v1150
    %1474 = vmatpush1.msra.mxu0 %v1149
    %1475 = vmatprep.subr.mxu0 %v1160
    %1476 = vmatpush1.msra.mxu0 %v1159
    %1477 = vmatprep.subr.mxu0 0.0
    %1478 = vmatpush1.msra.mxu0 0.0
    %1479 = vmatprep.subr.mxu0 0.0
    %1480 = vmatpush1.msra.mxu0 0.0
    %1481 = vmatprep.subr.mxu0 0.0
    %1482 = vmatpush1.msra.mxu0 0.0
    %1483 = vmatprep.subr.mxu0 0.0
    %1484 = vmatpush1.msra.mxu0 0.0
    %1485 = vmatprep.subr.mxu0 0.0
    %1486 = vmatpush1.msra.mxu0 0.0
    %1487 = vmatprep.subr.mxu0 0.0
    %1488 = vmatpush1.msra.mxu0 0.0
    %1489 = vmatprep.subr.mxu0 0.0
    %1490 = vmatpush1.msra.mxu0 0.0
    %1491 = vmatprep.subr.mxu0 0.0
    %1492 = vmatpush1.msra.mxu0 0.0
    %1493 = vmatprep.subr.mxu0 0.0
    %1494 = vmatpush1.msra.mxu0 0.0
    %1495 = vmatprep.subr.mxu0 0.0
    %1496 = vmatpush1.msra.mxu0 0.0
    %1497 = vmatprep.subr.mxu0 0.0
    %1498 = vmatpush1.msra.mxu0 0.0
    %1499 = vmatprep.subr.mxu0 0.0
    %1500 = vmatpush1.msra.mxu0 0.0
    %1501 = vmatprep.subr.mxu0 0.0
    %1502 = vmatpush1.msra.mxu0 0.0
    %1503 = vmatprep.subr.mxu0 0.0
    %1504 = vmatpush1.msra.mxu0 0.0
    %1505 = vmatprep.subr.mxu0 0.0
    %1506 = vmatpush1.msra.mxu0 0.0
    %1507 = vmatprep.subr.mxu0 0.0
    %1508 = vmatpush1.msra.mxu0 0.0
    %1509 = vmatprep.mubr.f32.mxu0 0.0
    %1510 = vmatmul.mubr.f32.gmra.mrb[0].mxu0 %v40
    %v1511 = vpop.f32.mrb[0].mxu0
    %v1512 = vadd.f32 0.0, %v1511
    %v1513 = vpop.f32.mrb[0].mxu0
    %v1514 = vadd.f32 0.0, %v1513
    %1515 = vdwg.mxu0
    %v1516 = vld [vmem:[%s1] sm:$0xff]
    %v1517 = vld [vmem:[%s1 + $0x8] sm:$0xff]
    %v1518 = vld [vmem:[%s1 + $0x10] sm:$0xff]
    %v1519 = vld [vmem:[%s1 + $0x18] sm:$0xff]
    %v1520 = vld [vmem:[%s1 + $0x20] sm:$0xff]
    %v1521 = vld [vmem:[%s1 + $0x28] sm:$0xff]
    %v1522 = vld [vmem:[%s1 + $0x30] sm:$0xff]
    %v1523 = vld [vmem:[%s1 + $0x38] sm:$0xff]
    %v1524 = vld [vmem:[%s1 + $0x40] sm:$0xff]
    %v1525 = vld [vmem:[%s1 + $0x48] sm:$0xff]
    %v1526 = vld [vmem:[%s1 + $0x50] sm:$0xff]
    %v1527 = vld [vmem:[%s1 + $0x58] sm:$0xff]
    %v1528 = vld [vmem:[%s1 + $0x60] sm:$0xff]
    %v1529 = vld [vmem:[%s1 + $0x68] sm:$0xff]
    %v1530 = vld [vmem:[%s1 + $0x70] sm:$0xff]
    %v1531 = vld [vmem:[%s1 + $0x78] sm:$0xff]
    %v1532 = vld [vmem:[%s4] sm:$0xff]
    %v1533 = vld [vmem:[%s4 + $0x8] sm:$0xff]
    %v1534 = vld [vmem:[%s4 + $0x10] sm:$0xff]
    %v1535 = vld [vmem:[%s4 + $0x18] sm:$0xff]
    %v1536 = vld [vmem:[%s4 + $0x20] sm:$0xff]
    %v1537 = vld [vmem:[%s5] sm:$0xff]
    %v1538 = vld [vmem:[%s5 + $0x8] sm:$0x3]
    %v1541 = vlaneseq
    %v1542 = vshrl.u32 %v1541, 7
    %v1543 = vsub.s32 0, %v1542
    %v1544 = vrot.slane %v1537, %v1543
    %v1545 = vlaneseq
    %v1546 = vshrl.u32 %v1545, 7
    %v1547 = vsub.s32 1, %v1546
    %v1548 = vrot.slane %v1537, %v1547
    %v1549 = vlaneseq
    %v1550 = vshrl.u32 %v1549, 7
    %v1551 = vsub.s32 2, %v1550
    %v1552 = vrot.slane %v1537, %v1551
    %v1553 = vlaneseq
    %v1554 = vshrl.u32 %v1553, 7
    %v1555 = vsub.s32 3, %v1554
    %v1556 = vrot.slane %v1537, %v1555
    %v1557 = vlaneseq
    %v1558 = vshrl.u32 %v1557, 7
    %v1559 = vsub.s32 4, %v1558
    %v1560 = vrot.slane %v1537, %v1559
    %v1561 = vlaneseq
    %v1562 = vshrl.u32 %v1561, 7
    %v1563 = vsub.s32 5, %v1562
    %v1564 = vrot.slane %v1537, %v1563
    %v1565 = vlaneseq
    %v1566 = vshrl.u32 %v1565, 7
    %v1567 = vsub.s32 6, %v1566
    %v1568 = vrot.slane %v1537, %v1567
    %v1569 = vlaneseq
    %v1570 = vshrl.u32 %v1569, 7
    %v1571 = vsub.s32 7, %v1570
    %v1572 = vrot.slane %v1537, %v1571
    %v1573 = vlaneseq
    %v1574 = vshrl.u32 %v1573, 7
    %v1575 = vsub.s32 0, %v1574
    %v1576 = vrot.slane %v1538, %v1575
    %v1577 = vlaneseq
    %v1578 = vshrl.u32 %v1577, 7
    %v1579 = vsub.s32 1, %v1578
    %v1580 = vrot.slane %v1538, %v1579
    %v1596 = vcombine.high %v1532, %v1532
    %v1597 = vcombine.high %v1533, %v1533
    %v1598 = vcombine.high %v1534, %v1534
    %v1599 = vcombine.high %v1535, %v1535
    %v1600 = vcombine.high %v1536, %v1536
    %v1602 = vsel %vm126, %v1516, 0
    %v1605 = vsel %vm126, %v1517, 0
    %v1608 = vsel %vm126, %v1518, 0
    %v1611 = vsel %vm126, %v1519, 0
    %v1614 = vsel %vm126, %v1520, 0
    %v1617 = vsel %vm126, %v1521, 0
    %v1620 = vsel %vm126, %v1522, 0
    %v1623 = vsel %vm126, %v1523, 0
    %v1626 = vsel %vm126, %v1524, 0
    %v1629 = vsel %vm126, %v1525, 0
    %v1632 = vsel %vm126, %v1526, 0
    %v1635 = vsel %vm126, %v1527, 0
    %v1638 = vsel %vm126, %v1528, 0
    %v1641 = vsel %vm126, %v1529, 0
    %v1644 = vsel %vm126, %v1530, 0
    %v1647 = vsel %vm126, %v1531, 0
    %v1649 = vsel %vm175, %v1532, 0
    %v1651 = vsel %vm175, %v1596, 0
    %v1653 = vsel %vm175, %v1533, 0
    %v1655 = vsel %vm175, %v1597, 0
    %v1657 = vsel %vm175, %v1534, 0
    %v1659 = vsel %vm175, %v1598, 0
    %v1661 = vsel %vm175, %v1535, 0
    %v1663 = vsel %vm175, %v1599, 0
    %v1665 = vsel %vm175, %v1536, 0
    %v1667 = vsel %vm175, %v1600, 0
    %1669 = vmatprep.subr.mxu0 %v1651
    %1670 = vmatpush1.msra.mxu0 %v1649
    %1671 = vmatprep.subr.mxu0 0.0
    %1672 = vmatpush1.msra.mxu0 0.0
    %1673 = vmatprep.subr.mxu0 0.0
    %1674 = vmatpush1.msra.mxu0 0.0
    %1675 = vmatprep.subr.mxu0 0.0
    %1676 = vmatpush1.msra.mxu0 0.0
    %1677 = vmatprep.subr.mxu0 0.0
    %1678 = vmatpush1.msra.mxu0 0.0
    %1679 = vmatprep.subr.mxu0 0.0
    %1680 = vmatpush1.msra.mxu0 0.0
    %1681 = vmatprep.subr.mxu0 0.0
    %1682 = vmatpush1.msra.mxu0 0.0
    %1683 = vmatprep.subr.mxu0 0.0
    %1684 = vmatpush1.msra.mxu0 0.0
    %1685 = vmatprep.subr.mxu0 0.0
    %1686 = vmatpush1.msra.mxu0 0.0
    %1687 = vmatprep.subr.mxu0 0.0
    %1688 = vmatpush1.msra.mxu0 0.0
    %1689 = vmatprep.subr.mxu0 0.0
    %1690 = vmatpush1.msra.mxu0 0.0
    %1691 = vmatprep.subr.mxu0 0.0
    %1692 = vmatpush1.msra.mxu0 0.0
    %1693 = vmatprep.subr.mxu0 0.0
    %1694 = vmatpush1.msra.mxu0 0.0
    %1695 = vmatprep.subr.mxu0 0.0
    %1696 = vmatpush1.msra.mxu0 0.0
    %1697 = vmatprep.subr.mxu0 0.0
    %1698 = vmatpush1.msra.mxu0 0.0
    %1699 = vmatprep.subr.mxu0 0.0
    %1700 = vmatpush1.msra.mxu0 0.0
    %1701 = vmatprep.subr.mxu0 0.0
    %1702 = vmatpush1.msra.mxu0 0.0
    %1703 = vmatprep.subr.mxu0 0.0
    %1704 = vmatpush1.msra.mxu0 0.0
    %1705 = vmatprep.subr.mxu0 0.0
    %1706 = vmatpush1.msra.mxu0 0.0
    %1707 = vmatprep.subr.mxu0 0.0
    %1708 = vmatpush1.msra.mxu0 0.0
    %1709 = vmatprep.subr.mxu0 0.0
    %1710 = vmatpush1.msra.mxu0 0.0
    %1711 = vmatprep.subr.mxu0 0.0
    %1712 = vmatpush1.msra.mxu0 0.0
    %1713 = vmatprep.subr.mxu0 0.0
    %1714 = vmatpush1.msra.mxu0 0.0
    %1715 = vmatprep.subr.mxu0 0.0
    %1716 = vmatpush1.msra.mxu0 0.0
    %1717 = vmatprep.subr.mxu0 0.0
    %1718 = vmatpush1.msra.mxu0 0.0
    %1719 = vmatprep.subr.mxu0 0.0
    %1720 = vmatpush1.msra.mxu0 0.0
    %1721 = vmatprep.subr.mxu0 0.0
    %1722 = vmatpush1.msra.mxu0 0.0
    %1723 = vmatprep.subr.mxu0 0.0
    %1724 = vmatpush1.msra.mxu0 0.0
    %1725 = vmatprep.subr.mxu0 0.0
    %1726 = vmatpush1.msra.mxu0 0.0
    %1727 = vmatprep.subr.mxu0 0.0
    %1728 = vmatpush1.msra.mxu0 0.0
    %1729 = vmatprep.subr.mxu0 0.0
    %1730 = vmatpush1.msra.mxu0 0.0
    %1731 = vmatprep.subr.mxu0 0.0
    %1732 = vmatpush1.msra.mxu0 0.0
    %1733 = vmatprep.mubr.f32.mxu0 0.0
    %1734 = vmatmul.mubr.f32.gmra.mrb[0].mxu0 %v1602
    %v1735 = vpop.f32.mrb[0].mxu0
    %v1736 = vadd.f32 %v1544, %v1735
    %v1737 = vpop.f32.mrb[0].mxu0
    %v1738 = vadd.f32 %v1548, %v1737
    %1739 = vmatprep.mubr.f32.mxu0 0.0
    %1740 = vmatmul.mubr.f32.gmra.mrb[0].mxu0 %v1605
    %v1741 = vpop.f32.mrb[0].mxu0
    %v1742 = vadd.f32 %v1544, %v1741
    %v1743 = vpop.f32.mrb[0].mxu0
    %v1744 = vadd.f32 %v1548, %v1743
    %1745 = vmatprep.mubr.f32.mxu0 0.0
    %1746 = vmatmul.mubr.f32.gmra.mrb[0].mxu0 %v1608
    %v1747 = vpop.f32.mrb[0].mxu0
    %v1748 = vadd.f32 %v1544, %v1747
    %v1749 = vpop.f32.mrb[0].mxu0
    %v1750 = vadd.f32 %v1548, %v1749
    %1751 = vmatprep.mubr.f32.mxu0 0.0
    %1752 = vmatmul.mubr.f32.gmra.mrb[0].mxu0 %v1611
    %v1753 = vpop.f32.mrb[0].mxu0
    %v1754 = vadd.f32 %v1544, %v1753
    %v1755 = vpop.f32.mrb[0].mxu0
    %v1756 = vadd.f32 %v1548, %v1755
    %1757 = vmatprep.mubr.f32.mxu0 0.0
    %1758 = vmatmul.mubr.f32.gmra.mrb[0].mxu0 %v1614
    %v1759 = vpop.f32.mrb[0].mxu0
    %v1760 = vadd.f32 %v1544, %v1759
    %v1761 = vpop.f32.mrb[0].mxu0
    %v1762 = vadd.f32 %v1548, %v1761
    %1763 = vmatprep.mubr.f32.mxu0 0.0
    %1764 = vmatmul.mubr.f32.gmra.mrb[0].mxu0 %v1617
    %v1765 = vpop.f32.mrb[0].mxu0
    %v1766 = vadd.f32 %v1544, %v1765
    %v1767 = vpop.f32.mrb[0].mxu0
    %v1768 = vadd.f32 %v1548, %v1767
    %1769 = vmatprep.mubr.f32.mxu0 0.0
    %1770 = vmatmul.mubr.f32.gmra.mrb[0].mxu0 %v1620
    %v1771 = vpop.f32.mrb[0].mxu0
    %v1772 = vadd.f32 %v1544, %v1771
    %v1773 = vpop.f32.mrb[0].mxu0
    %v1774 = vadd.f32 %v1548, %v1773
    %1775 = vmatprep.mubr.f32.mxu0 0.0
    %1776 = vmatmul.mubr.f32.gmra.mrb[0].mxu0 %v1623
    %v1777 = vpop.f32.mrb[0].mxu0
    %v1778 = vadd.f32 %v1544, %v1777
    %v1779 = vpop.f32.mrb[0].mxu0
    %v1780 = vadd.f32 %v1548, %v1779
    %1781 = vmatprep.mubr.f32.mxu0 0.0
    %1782 = vmatmul.mubr.f32.gmra.mrb[0].mxu0 %v1626
    %v1783 = vpop.f32.mrb[0].mxu0
    %v1784 = vadd.f32 %v1544, %v1783
    %v1785 = vpop.f32.mrb[0].mxu0
    %v1786 = vadd.f32 %v1548, %v1785
    %1787 = vmatprep.mubr.f32.mxu0 0.0
    %1788 = vmatmul.mubr.f32.gmra.mrb[0].mxu0 %v1629
    %v1789 = vpop.f32.mrb[0].mxu0
    %v1790 = vadd.f32 %v1544, %v1789
    %v1791 = vpop.f32.mrb[0].mxu0
    %v1792 = vadd.f32 %v1548, %v1791
    %1793 = vmatprep.mubr.f32.mxu0 0.0
    %1794 = vmatmul.mubr.f32.gmra.mrb[0].mxu0 %v1632
    %v1795 = vpop.f32.mrb[0].mxu0
    %v1796 = vadd.f32 %v1544, %v1795
    %v1797 = vpop.f32.mrb[0].mxu0
    %v1798 = vadd.f32 %v1548, %v1797
    %1799 = vmatprep.mubr.f32.mxu0 0.0
    %1800 = vmatmul.mubr.f32.gmra.mrb[0].mxu0 %v1635
    %v1801 = vpop.f32.mrb[0].mxu0
    %v1802 = vadd.f32 %v1544, %v1801
    %v1803 = vpop.f32.mrb[0].mxu0
    %v1804 = vadd.f32 %v1548, %v1803
    %1805 = vmatprep.mubr.f32.mxu0 0.0
    %1806 = vmatmul.mubr.f32.gmra.mrb[0].mxu0 %v1638
    %v1807 = vpop.f32.mrb[0].mxu0
    %v1808 = vadd.f32 %v1544, %v1807
    %v1809 = vpop.f32.mrb[0].mxu0
    %v1810 = vadd.f32 %v1548, %v1809
    %1811 = vmatprep.mubr.f32.mxu0 0.0
    %1812 = vmatmul.mubr.f32.gmra.mrb[0].mxu0 %v1641
    %v1813 = vpop.f32.mrb[0].mxu0
    %v1814 = vadd.f32 %v1544, %v1813
    %v1815 = vpop.f32.mrb[0].mxu0
    %v1816 = vadd.f32 %v1548, %v1815
    %1817 = vmatprep.mubr.f32.mxu0 0.0
    %1818 = vmatmul.mubr.f32.gmra.mrb[0].mxu0 %v1644
    %v1819 = vpop.f32.mrb[0].mxu0
    %v1820 = vadd.f32 %v1544, %v1819
    %v1821 = vpop.f32.mrb[0].mxu0
    %v1822 = vadd.f32 %v1548, %v1821
    %1823 = vmatprep.mubr.f32.mxu0 0.0
    %1824 = vmatmul.mubr.f32.gmra.mrb[0].mxu0 %v1647
    %v1825 = vpop.f32.mrb[0].mxu0
    %v1826 = vadd.f32 %v1544, %v1825
    %v1827 = vpop.f32.mrb[0].mxu0
    %v1828 = vadd.f32 %v1548, %v1827
    %1829 = vdwg.mxu0
    %1830 = vmatprep.subr.mxu0 %v1655
    %1831 = vmatpush1.msra.mxu0 %v1653
    %1832 = vmatprep.subr.mxu0 0.0
    %1833 = vmatpush1.msra.mxu0 0.0
    %1834 = vmatprep.subr.mxu0 0.0
    %1835 = vmatpush1.msra.mxu0 0.0
    %1836 = vmatprep.subr.mxu0 0.0
    %1837 = vmatpush1.msra.mxu0 0.0
    %1838 = vmatprep.subr.mxu0 0.0
    %1839 = vmatpush1.msra.mxu0 0.0
    %1840 = vmatprep.subr.mxu0 0.0
    %1841 = vmatpush1.msra.mxu0 0.0
    %1842 = vmatprep.subr.mxu0 0.0
    %1843 = vmatpush1.msra.mxu0 0.0
    %1844 = vmatprep.subr.mxu0 0.0
    %1845 = vmatpush1.msra.mxu0 0.0
    %1846 = vmatprep.subr.mxu0 0.0
    %1847 = vmatpush1.msra.mxu0 0.0
    %1848 = vmatprep.subr.mxu0 0.0
    %1849 = vmatpush1.msra.mxu0 0.0
    %1850 = vmatprep.subr.mxu0 0.0
    %1851 = vmatpush1.msra.mxu0 0.0
    %1852 = vmatprep.subr.mxu0 0.0
    %1853 = vmatpush1.msra.mxu0 0.0
    %1854 = vmatprep.subr.mxu0 0.0
    %1855 = vmatpush1.msra.mxu0 0.0
    %1856 = vmatprep.subr.mxu0 0.0
    %1857 = vmatpush1.msra.mxu0 0.0
    %1858 = vmatprep.subr.mxu0 0.0
    %1859 = vmatpush1.msra.mxu0 0.0
    %1860 = vmatprep.subr.mxu0 0.0
    %1861 = vmatpush1.msra.mxu0 0.0
    %1862 = vmatprep.subr.mxu0 0.0
    %1863 = vmatpush1.msra.mxu0 0.0
    %1864 = vmatprep.subr.mxu0 0.0
    %1865 = vmatpush1.msra.mxu0 0.0
    %1866 = vmatprep.subr.mxu0 0.0
    %1867 = vmatpush1.msra.mxu0 0.0
    %1868 = vmatprep.subr.mxu0 0.0
    %1869 = vmatpush1.msra.mxu0 0.0
    %1870 = vmatprep.subr.mxu0 0.0
    %1871 = vmatpush1.msra.mxu0 0.0
    %1872 = vmatprep.subr.mxu0 0.0
    %1873 = vmatpush1.msra.mxu0 0.0
    %1874 = vmatprep.subr.mxu0 0.0
    %1875 = vmatpush1.msra.mxu0 0.0
    %1876 = vmatprep.subr.mxu0 0.0
    %1877 = vmatpush1.msra.mxu0 0.0
    %1878 = vmatprep.subr.mxu0 0.0
    %1879 = vmatpush1.msra.mxu0 0.0
    %1880 = vmatprep.subr.mxu0 0.0
    %1881 = vmatpush1.msra.mxu0 0.0
    %1882 = vmatprep.subr.mxu0 0.0
    %1883 = vmatpush1.msra.mxu0 0.0
    %1884 = vmatprep.subr.mxu0 0.0
    %1885 = vmatpush1.msra.mxu0 0.0
    %1886 = vmatprep.subr.mxu0 0.0
    %1887 = vmatpush1.msra.mxu0 0.0
    %1888 = vmatprep.subr.mxu0 0.0
    %1889 = vmatpush1.msra.mxu0 0.0
    %1890 = vmatprep.subr.mxu0 0.0
    %1891 = vmatpush1.msra.mxu0 0.0
    %1892 = vmatprep.subr.mxu0 0.0
    %1893 = vmatpush1.msra.mxu0 0.0
    %1894 = vmatprep.mubr.f32.mxu0 0.0
    %1895 = vmatmul.mubr.f32.gmra.mrb[0].mxu0 %v1602
    %v1896 = vpop.f32.mrb[0].mxu0
    %v1897 = vadd.f32 %v1552, %v1896
    %v1898 = vpop.f32.mrb[0].mxu0
    %v1899 = vadd.f32 %v1556, %v1898
    %1900 = vmatprep.mubr.f32.mxu0 0.0
    %1901 = vmatmul.mubr.f32.gmra.mrb[0].mxu0 %v1605
    %v1902 = vpop.f32.mrb[0].mxu0
    %v1903 = vadd.f32 %v1552, %v1902
    %v1904 = vpop.f32.mrb[0].mxu0
    %v1905 = vadd.f32 %v1556, %v1904
    %1906 = vmatprep.mubr.f32.mxu0 0.0
    %1907 = vmatmul.mubr.f32.gmra.mrb[0].mxu0 %v1608
    %v1908 = vpop.f32.mrb[0].mxu0
    %v1909 = vadd.f32 %v1552, %v1908
    %v1910 = vpop.f32.mrb[0].mxu0
    %v1911 = vadd.f32 %v1556, %v1910
    %1912 = vmatprep.mubr.f32.mxu0 0.0
    %1913 = vmatmul.mubr.f32.gmra.mrb[0].mxu0 %v1611
    %v1914 = vpop.f32.mrb[0].mxu0
    %v1915 = vadd.f32 %v1552, %v1914
    %v1916 = vpop.f32.mrb[0].mxu0
    %v1917 = vadd.f32 %v1556, %v1916
    %1918 = vmatprep.mubr.f32.mxu0 0.0
    %1919 = vmatmul.mubr.f32.gmra.mrb[0].mxu0 %v1614
    %v1920 = vpop.f32.mrb[0].mxu0
    %v1921 = vadd.f32 %v1552, %v1920
    %v1922 = vpop.f32.mrb[0].mxu0
    %v1923 = vadd.f32 %v1556, %v1922
    %1924 = vmatprep.mubr.f32.mxu0 0.0
    %1925 = vmatmul.mubr.f32.gmra.mrb[0].mxu0 %v1617
    %v1926 = vpop.f32.mrb[0].mxu0
    %v1927 = vadd.f32 %v1552, %v1926
    %v1928 = vpop.f32.mrb[0].mxu0
    %v1929 = vadd.f32 %v1556, %v1928
    %1930 = vmatprep.mubr.f32.mxu0 0.0
    %1931 = vmatmul.mubr.f32.gmra.mrb[0].mxu0 %v1620
    %v1932 = vpop.f32.mrb[0].mxu0
    %v1933 = vadd.f32 %v1552, %v1932
    %v1934 = vpop.f32.mrb[0].mxu0
    %v1935 = vadd.f32 %v1556, %v1934
    %1936 = vmatprep.mubr.f32.mxu0 0.0
    %1937 = vmatmul.mubr.f32.gmra.mrb[0].mxu0 %v1623
    %v1938 = vpop.f32.mrb[0].mxu0
    %v1939 = vadd.f32 %v1552, %v1938
    %v1940 = vpop.f32.mrb[0].mxu0
    %v1941 = vadd.f32 %v1556, %v1940
    %1942 = vmatprep.mubr.f32.mxu0 0.0
    %1943 = vmatmul.mubr.f32.gmra.mrb[0].mxu0 %v1626
    %v1944 = vpop.f32.mrb[0].mxu0
    %v1945 = vadd.f32 %v1552, %v1944
    %v1946 = vpop.f32.mrb[0].mxu0
    %v1947 = vadd.f32 %v1556, %v1946
    %1948 = vmatprep.mubr.f32.mxu0 0.0
    %1949 = vmatmul.mubr.f32.gmra.mrb[0].mxu0 %v1629
    %v1950 = vpop.f32.mrb[0].mxu0
    %v1951 = vadd.f32 %v1552, %v1950
    %v1952 = vpop.f32.mrb[0].mxu0
    %v1953 = vadd.f32 %v1556, %v1952
    %1954 = vmatprep.mubr.f32.mxu0 0.0
    %1955 = vmatmul.mubr.f32.gmra.mrb[0].mxu0 %v1632
    %v1956 = vpop.f32.mrb[0].mxu0
    %v1957 = vadd.f32 %v1552, %v1956
    %v1958 = vpop.f32.mrb[0].mxu0
    %v1959 = vadd.f32 %v1556, %v1958
    %1960 = vmatprep.mubr.f32.mxu0 0.0
    %1961 = vmatmul.mubr.f32.gmra.mrb[0].mxu0 %v1635
    %v1962 = vpop.f32.mrb[0].mxu0
    %v1963 = vadd.f32 %v1552, %v1962
    %v1964 = vpop.f32.mrb[0].mxu0
    %v1965 = vadd.f32 %v1556, %v1964
    %1966 = vmatprep.mubr.f32.mxu0 0.0
    %1967 = vmatmul.mubr.f32.gmra.mrb[0].mxu0 %v1638
    %v1968 = vpop.f32.mrb[0].mxu0
    %v1969 = vadd.f32 %v1552, %v1968
    %v1970 = vpop.f32.mrb[0].mxu0
    %v1971 = vadd.f32 %v1556, %v1970
    %1972 = vmatprep.mubr.f32.mxu0 0.0
    %1973 = vmatmul.mubr.f32.gmra.mrb[0].mxu0 %v1641
    %v1974 = vpop.f32.mrb[0].mxu0
    %v1975 = vadd.f32 %v1552, %v1974
    %v1976 = vpop.f32.mrb[0].mxu0
    %v1977 = vadd.f32 %v1556, %v1976
    %1978 = vmatprep.mubr.f32.mxu0 0.0
    %1979 = vmatmul.mubr.f32.gmra.mrb[0].mxu0 %v1644
    %v1980 = vpop.f32.mrb[0].mxu0
    %v1981 = vadd.f32 %v1552, %v1980
    %v1982 = vpop.f32.mrb[0].mxu0
    %v1983 = vadd.f32 %v1556, %v1982
    %1984 = vmatprep.mubr.f32.mxu0 0.0
    %1985 = vmatmul.mubr.f32.gmra.mrb[0].mxu0 %v1647
    %v1986 = vpop.f32.mrb[0].mxu0
    %v1987 = vadd.f32 %v1552, %v1986
    %v1988 = vpop.f32.mrb[0].mxu0
    %v1989 = vadd.f32 %v1556, %v1988
    %1990 = vdwg.mxu0
    %1991 = vmatprep.subr.mxu0 %v1659
    %1992 = vmatpush1.msra.mxu0 %v1657
    %1993 = vmatprep.subr.mxu0 0.0
    %1994 = vmatpush1.msra.mxu0 0.0
    %1995 = vmatprep.subr.mxu0 0.0
    %1996 = vmatpush1.msra.mxu0 0.0
    %1997 = vmatprep.subr.mxu0 0.0
    %1998 = vmatpush1.msra.mxu0 0.0
    %1999 = vmatprep.subr.mxu0 0.0
    %2000 = vmatpush1.msra.mxu0 0.0
    %2001 = vmatprep.subr.mxu0 0.0
    %2002 = vmatpush1.msra.mxu0 0.0
    %2003 = vmatprep.subr.mxu0 0.0
    %2004 = vmatpush1.msra.mxu0 0.0
    %2005 = vmatprep.subr.mxu0 0.0
    %2006 = vmatpush1.msra.mxu0 0.0
    %2007 = vmatprep.subr.mxu0 0.0
    %2008 = vmatpush1.msra.mxu0 0.0
    %2009 = vmatprep.subr.mxu0 0.0
    %2010 = vmatpush1.msra.mxu0 0.0
    %2011 = vmatprep.subr.mxu0 0.0
    %2012 = vmatpush1.msra.mxu0 0.0
    %2013 = vmatprep.subr.mxu0 0.0
    %2014 = vmatpush1.msra.mxu0 0.0
    %2015 = vmatprep.subr.mxu0 0.0
    %2016 = vmatpush1.msra.mxu0 0.0
    %2017 = vmatprep.subr.mxu0 0.0
    %2018 = vmatpush1.msra.mxu0 0.0
    %2019 = vmatprep.subr.mxu0 0.0
    %2020 = vmatpush1.msra.mxu0 0.0
    %2021 = vmatprep.subr.mxu0 0.0
    %2022 = vmatpush1.msra.mxu0 0.0
    %2023 = vmatprep.subr.mxu0 0.0
    %2024 = vmatpush1.msra.mxu0 0.0
    %2025 = vmatprep.subr.mxu0 0.0
    %2026 = vmatpush1.msra.mxu0 0.0
    %2027 = vmatprep.subr.mxu0 0.0
    %2028 = vmatpush1.msra.mxu0 0.0
    %2029 = vmatprep.subr.mxu0 0.0
    %2030 = vmatpush1.msra.mxu0 0.0
    %2031 = vmatprep.subr.mxu0 0.0
    %2032 = vmatpush1.msra.mxu0 0.0
    %2033 = vmatprep.subr.mxu0 0.0
    %2034 = vmatpush1.msra.mxu0 0.0
    %2035 = vmatprep.subr.mxu0 0.0
    %2036 = vmatpush1.msra.mxu0 0.0
    %2037 = vmatprep.subr.mxu0 0.0
    %2038 = vmatpush1.msra.mxu0 0.0
    %2039 = vmatprep.subr.mxu0 0.0
    %2040 = vmatpush1.msra.mxu0 0.0
    %2041 = vmatprep.subr.mxu0 0.0
    %2042 = vmatpush1.msra.mxu0 0.0
    %2043 = vmatprep.subr.mxu0 0.0
    %2044 = vmatpush1.msra.mxu0 0.0
    %2045 = vmatprep.subr.mxu0 0.0
    %2046 = vmatpush1.msra.mxu0 0.0
    %2047 = vmatprep.subr.mxu0 0.0
    %2048 = vmatpush1.msra.mxu0 0.0
    %2049 = vmatprep.subr.mxu0 0.0
    %2050 = vmatpush1.msra.mxu0 0.0
    %2051 = vmatprep.subr.mxu0 0.0
    %2052 = vmatpush1.msra.mxu0 0.0
    %2053 = vmatprep.subr.mxu0 0.0
    %2054 = vmatpush1.msra.mxu0 0.0
    %2055 = vmatprep.mubr.f32.mxu0 0.0
    %2056 = vmatmul.mubr.f32.gmra.mrb[0].mxu0 %v1602
    %v2057 = vpop.f32.mrb[0].mxu0
    %v2058 = vadd.f32 %v1560, %v2057
    %v2059 = vpop.f32.mrb[0].mxu0
    %v2060 = vadd.f32 %v1564, %v2059
    %2061 = vmatprep.mubr.f32.mxu0 0.0
    %2062 = vmatmul.mubr.f32.gmra.mrb[0].mxu0 %v1605
    %v2063 = vpop.f32.mrb[0].mxu0
    %v2064 = vadd.f32 %v1560, %v2063
    %v2065 = vpop.f32.mrb[0].mxu0
    %v2066 = vadd.f32 %v1564, %v2065
    %2067 = vmatprep.mubr.f32.mxu0 0.0
    %2068 = vmatmul.mubr.f32.gmra.mrb[0].mxu0 %v1608
    %v2069 = vpop.f32.mrb[0].mxu0
    %v2070 = vadd.f32 %v1560, %v2069
    %v2071 = vpop.f32.mrb[0].mxu0
    %v2072 = vadd.f32 %v1564, %v2071
    %2073 = vmatprep.mubr.f32.mxu0 0.0
    %2074 = vmatmul.mubr.f32.gmra.mrb[0].mxu0 %v1611
    %v2075 = vpop.f32.mrb[0].mxu0
    %v2076 = vadd.f32 %v1560, %v2075
    %v2077 = vpop.f32.mrb[0].mxu0
    %v2078 = vadd.f32 %v1564, %v2077
    %2079 = vmatprep.mubr.f32.mxu0 0.0
    %2080 = vmatmul.mubr.f32.gmra.mrb[0].mxu0 %v1614
    %v2081 = vpop.f32.mrb[0].mxu0
    %v2082 = vadd.f32 %v1560, %v2081
    %v2083 = vpop.f32.mrb[0].mxu0
    %v2084 = vadd.f32 %v1564, %v2083
    %2085 = vmatprep.mubr.f32.mxu0 0.0
    %2086 = vmatmul.mubr.f32.gmra.mrb[0].mxu0 %v1617
    %v2087 = vpop.f32.mrb[0].mxu0
    %v2088 = vadd.f32 %v1560, %v2087
    %v2089 = vpop.f32.mrb[0].mxu0
    %v2090 = vadd.f32 %v1564, %v2089
    %2091 = vmatprep.mubr.f32.mxu0 0.0
    %2092 = vmatmul.mubr.f32.gmra.mrb[0].mxu0 %v1620
    %v2093 = vpop.f32.mrb[0].mxu0
    %v2094 = vadd.f32 %v1560, %v2093
    %v2095 = vpop.f32.mrb[0].mxu0
    %v2096 = vadd.f32 %v1564, %v2095
    %2097 = vmatprep.mubr.f32.mxu0 0.0
    %2098 = vmatmul.mubr.f32.gmra.mrb[0].mxu0 %v1623
    %v2099 = vpop.f32.mrb[0].mxu0
    %v2100 = vadd.f32 %v1560, %v2099
    %v2101 = vpop.f32.mrb[0].mxu0
    %v2102 = vadd.f32 %v1564, %v2101
    %2103 = vmatprep.mubr.f32.mxu0 0.0
    %2104 = vmatmul.mubr.f32.gmra.mrb[0].mxu0 %v1626
    %v2105 = vpop.f32.mrb[0].mxu0
    %v2106 = vadd.f32 %v1560, %v2105
    %v2107 = vpop.f32.mrb[0].mxu0
    %v2108 = vadd.f32 %v1564, %v2107
    %2109 = vmatprep.mubr.f32.mxu0 0.0
    %2110 = vmatmul.mubr.f32.gmra.mrb[0].mxu0 %v1629
    %v2111 = vpop.f32.mrb[0].mxu0
    %v2112 = vadd.f32 %v1560, %v2111
    %v2113 = vpop.f32.mrb[0].mxu0
    %v2114 = vadd.f32 %v1564, %v2113
    %2115 = vmatprep.mubr.f32.mxu0 0.0
    %2116 = vmatmul.mubr.f32.gmra.mrb[0].mxu0 %v1632
    %v2117 = vpop.f32.mrb[0].mxu0
    %v2118 = vadd.f32 %v1560, %v2117
    %v2119 = vpop.f32.mrb[0].mxu0
    %v2120 = vadd.f32 %v1564, %v2119
    %2121 = vmatprep.mubr.f32.mxu0 0.0
    %2122 = vmatmul.mubr.f32.gmra.mrb[0].mxu0 %v1635
    %v2123 = vpop.f32.mrb[0].mxu0
    %v2124 = vadd.f32 %v1560, %v2123
    %v2125 = vpop.f32.mrb[0].mxu0
    %v2126 = vadd.f32 %v1564, %v2125
    %2127 = vmatprep.mubr.f32.mxu0 0.0
    %2128 = vmatmul.mubr.f32.gmra.mrb[0].mxu0 %v1638
    %v2129 = vpop.f32.mrb[0].mxu0
    %v2130 = vadd.f32 %v1560, %v2129
    %v2131 = vpop.f32.mrb[0].mxu0
    %v2132 = vadd.f32 %v1564, %v2131
    %2133 = vmatprep.mubr.f32.mxu0 0.0
    %2134 = vmatmul.mubr.f32.gmra.mrb[0].mxu0 %v1641
    %v2135 = vpop.f32.mrb[0].mxu0
    %v2136 = vadd.f32 %v1560, %v2135
    %v2137 = vpop.f32.mrb[0].mxu0
    %v2138 = vadd.f32 %v1564, %v2137
    %2139 = vmatprep.mubr.f32.mxu0 0.0
    %2140 = vmatmul.mubr.f32.gmra.mrb[0].mxu0 %v1644
    %v2141 = vpop.f32.mrb[0].mxu0
    %v2142 = vadd.f32 %v1560, %v2141
    %v2143 = vpop.f32.mrb[0].mxu0
    %v2144 = vadd.f32 %v1564, %v2143
    %2145 = vmatprep.mubr.f32.mxu0 0.0
    %2146 = vmatmul.mubr.f32.gmra.mrb[0].mxu0 %v1647
    %v2147 = vpop.f32.mrb[0].mxu0
    %v2148 = vadd.f32 %v1560, %v2147
    %v2149 = vpop.f32.mrb[0].mxu0
    %v2150 = vadd.f32 %v1564, %v2149
    %2151 = vdwg.mxu0
    %2152 = vmatprep.subr.mxu0 %v1663
    %2153 = vmatpush1.msra.mxu0 %v1661
    %2154 = vmatprep.subr.mxu0 0.0
    %2155 = vmatpush1.msra.mxu0 0.0
    %2156 = vmatprep.subr.mxu0 0.0
    %2157 = vmatpush1.msra.mxu0 0.0
    %2158 = vmatprep.subr.mxu0 0.0
    %2159 = vmatpush1.msra.mxu0 0.0
    %2160 = vmatprep.subr.mxu0 0.0
    %2161 = vmatpush1.msra.mxu0 0.0
    %2162 = vmatprep.subr.mxu0 0.0
    %2163 = vmatpush1.msra.mxu0 0.0
    %2164 = vmatprep.subr.mxu0 0.0
    %2165 = vmatpush1.msra.mxu0 0.0
    %2166 = vmatprep.subr.mxu0 0.0
    %2167 = vmatpush1.msra.mxu0 0.0
    %2168 = vmatprep.subr.mxu0 0.0
    %2169 = vmatpush1.msra.mxu0 0.0
    %2170 = vmatprep.subr.mxu0 0.0
    %2171 = vmatpush1.msra.mxu0 0.0
    %2172 = vmatprep.subr.mxu0 0.0
    %2173 = vmatpush1.msra.mxu0 0.0
    %2174 = vmatprep.subr.mxu0 0.0
    %2175 = vmatpush1.msra.mxu0 0.0
    %2176 = vmatprep.subr.mxu0 0.0
    %2177 = vmatpush1.msra.mxu0 0.0
    %2178 = vmatprep.subr.mxu0 0.0
    %2179 = vmatpush1.msra.mxu0 0.0
    %2180 = vmatprep.subr.mxu0 0.0
    %2181 = vmatpush1.msra.mxu0 0.0
    %2182 = vmatprep.subr.mxu0 0.0
    %2183 = vmatpush1.msra.mxu0 0.0
    %2184 = vmatprep.subr.mxu0 0.0
    %2185 = vmatpush1.msra.mxu0 0.0
    %2186 = vmatprep.subr.mxu0 0.0
    %2187 = vmatpush1.msra.mxu0 0.0
    %2188 = vmatprep.subr.mxu0 0.0
    %2189 = vmatpush1.msra.mxu0 0.0
    %2190 = vmatprep.subr.mxu0 0.0
    %2191 = vmatpush1.msra.mxu0 0.0
    %2192 = vmatprep.subr.mxu0 0.0
    %2193 = vmatpush1.msra.mxu0 0.0
    %2194 = vmatprep.subr.mxu0 0.0
    %2195 = vmatpush1.msra.mxu0 0.0
    %2196 = vmatprep.subr.mxu0 0.0
    %2197 = vmatpush1.msra.mxu0 0.0
    %2198 = vmatprep.subr.mxu0 0.0
    %2199 = vmatpush1.msra.mxu0 0.0
    %2200 = vmatprep.subr.mxu0 0.0
    %2201 = vmatpush1.msra.mxu0 0.0
    %2202 = vmatprep.subr.mxu0 0.0
    %2203 = vmatpush1.msra.mxu0 0.0
    %2204 = vmatprep.subr.mxu0 0.0
    %2205 = vmatpush1.msra.mxu0 0.0
    %2206 = vmatprep.subr.mxu0 0.0
    %2207 = vmatpush1.msra.mxu0 0.0
    %2208 = vmatprep.subr.mxu0 0.0
    %2209 = vmatpush1.msra.mxu0 0.0
    %2210 = vmatprep.subr.mxu0 0.0
    %2211 = vmatpush1.msra.mxu0 0.0
    %2212 = vmatprep.subr.mxu0 0.0
    %2213 = vmatpush1.msra.mxu0 0.0
    %2214 = vmatprep.subr.mxu0 0.0
    %2215 = vmatpush1.msra.mxu0 0.0
    %2216 = vmatprep.mubr.f32.mxu0 0.0
    %2217 = vmatmul.mubr.f32.gmra.mrb[0].mxu0 %v1602
    %v2218 = vpop.f32.mrb[0].mxu0
    %v2219 = vadd.f32 %v1568, %v2218
    %v2220 = vpop.f32.mrb[0].mxu0
    %v2221 = vadd.f32 %v1572, %v2220
    %2222 = vmatprep.mubr.f32.mxu0 0.0
    %2223 = vmatmul.mubr.f32.gmra.mrb[0].mxu0 %v1605
    %v2224 = vpop.f32.mrb[0].mxu0
    %v2225 = vadd.f32 %v1568, %v2224
    %v2226 = vpop.f32.mrb[0].mxu0
    %v2227 = vadd.f32 %v1572, %v2226
    %2228 = vmatprep.mubr.f32.mxu0 0.0
    %2229 = vmatmul.mubr.f32.gmra.mrb[0].mxu0 %v1608
    %v2230 = vpop.f32.mrb[0].mxu0
    %v2231 = vadd.f32 %v1568, %v2230
    %v2232 = vpop.f32.mrb[0].mxu0
    %v2233 = vadd.f32 %v1572, %v2232
    %2234 = vmatprep.mubr.f32.mxu0 0.0
    %2235 = vmatmul.mubr.f32.gmra.mrb[0].mxu0 %v1611
    %v2236 = vpop.f32.mrb[0].mxu0
    %v2237 = vadd.f32 %v1568, %v2236
    %v2238 = vpop.f32.mrb[0].mxu0
    %v2239 = vadd.f32 %v1572, %v2238
    %2240 = vmatprep.mubr.f32.mxu0 0.0
    %2241 = vmatmul.mubr.f32.gmra.mrb[0].mxu0 %v1614
    %v2242 = vpop.f32.mrb[0].mxu0
    %v2243 = vadd.f32 %v1568, %v2242
    %v2244 = vpop.f32.mrb[0].mxu0
    %v2245 = vadd.f32 %v1572, %v2244
    %2246 = vmatprep.mubr.f32.mxu0 0.0
    %2247 = vmatmul.mubr.f32.gmra.mrb[0].mxu0 %v1617
    %v2248 = vpop.f32.mrb[0].mxu0
    %v2249 = vadd.f32 %v1568, %v2248
    %v2250 = vpop.f32.mrb[0].mxu0
    %v2251 = vadd.f32 %v1572, %v2250
    %2252 = vmatprep.mubr.f32.mxu0 0.0
    %2253 = vmatmul.mubr.f32.gmra.mrb[0].mxu0 %v1620
    %v2254 = vpop.f32.mrb[0].mxu0
    %v2255 = vadd.f32 %v1568, %v2254
    %v2256 = vpop.f32.mrb[0].mxu0
    %v2257 = vadd.f32 %v1572, %v2256
    %2258 = vmatprep.mubr.f32.mxu0 0.0
    %2259 = vmatmul.mubr.f32.gmra.mrb[0].mxu0 %v1623
    %v2260 = vpop.f32.mrb[0].mxu0
    %v2261 = vadd.f32 %v1568, %v2260
    %v2262 = vpop.f32.mrb[0].mxu0
    %v2263 = vadd.f32 %v1572, %v2262
    %2264 = vmatprep.mubr.f32.mxu0 0.0
    %2265 = vmatmul.mubr.f32.gmra.mrb[0].mxu0 %v1626
    %v2266 = vpop.f32.mrb[0].mxu0
    %v2267 = vadd.f32 %v1568, %v2266
    %v2268 = vpop.f32.mrb[0].mxu0
    %v2269 = vadd.f32 %v1572, %v2268
    %2270 = vmatprep.mubr.f32.mxu0 0.0
    %2271 = vmatmul.mubr.f32.gmra.mrb[0].mxu0 %v1629
    %v2272 = vpop.f32.mrb[0].mxu0
    %v2273 = vadd.f32 %v1568, %v2272
    %v2274 = vpop.f32.mrb[0].mxu0
    %v2275 = vadd.f32 %v1572, %v2274
    %2276 = vmatprep.mubr.f32.mxu0 0.0
    %2277 = vmatmul.mubr.f32.gmra.mrb[0].mxu0 %v1632
    %v2278 = vpop.f32.mrb[0].mxu0
    %v2279 = vadd.f32 %v1568, %v2278
    %v2280 = vpop.f32.mrb[0].mxu0
    %v2281 = vadd.f32 %v1572, %v2280
    %2282 = vmatprep.mubr.f32.mxu0 0.0
    %2283 = vmatmul.mubr.f32.gmra.mrb[0].mxu0 %v1635
    %v2284 = vpop.f32.mrb[0].mxu0
    %v2285 = vadd.f32 %v1568, %v2284
    %v2286 = vpop.f32.mrb[0].mxu0
    %v2287 = vadd.f32 %v1572, %v2286
    %2288 = vmatprep.mubr.f32.mxu0 0.0
    %2289 = vmatmul.mubr.f32.gmra.mrb[0].mxu0 %v1638
    %v2290 = vpop.f32.mrb[0].mxu0
    %v2291 = vadd.f32 %v1568, %v2290
    %v2292 = vpop.f32.mrb[0].mxu0
    %v2293 = vadd.f32 %v1572, %v2292
    %2294 = vmatprep.mubr.f32.mxu0 0.0
    %2295 = vmatmul.mubr.f32.gmra.mrb[0].mxu0 %v1641
    %v2296 = vpop.f32.mrb[0].mxu0
    %v2297 = vadd.f32 %v1568, %v2296
    %v2298 = vpop.f32.mrb[0].mxu0
    %v2299 = vadd.f32 %v1572, %v2298
    %2300 = vmatprep.mubr.f32.mxu0 0.0
    %2301 = vmatmul.mubr.f32.gmra.mrb[0].mxu0 %v1644
    %v2302 = vpop.f32.mrb[0].mxu0
    %v2303 = vadd.f32 %v1568, %v2302
    %v2304 = vpop.f32.mrb[0].mxu0
    %v2305 = vadd.f32 %v1572, %v2304
    %2306 = vmatprep.mubr.f32.mxu0 0.0
    %2307 = vmatmul.mubr.f32.gmra.mrb[0].mxu0 %v1647
    %v2308 = vpop.f32.mrb[0].mxu0
    %v2309 = vadd.f32 %v1568, %v2308
    %v2310 = vpop.f32.mrb[0].mxu0
    %v2311 = vadd.f32 %v1572, %v2310
    %2312 = vdwg.mxu0
    %2313 = vmatprep.subr.mxu0 %v1667
    %2314 = vmatpush1.msra.mxu0 %v1665
    %2315 = vmatprep.subr.mxu0 0.0
    %2316 = vmatpush1.msra.mxu0 0.0
    %2317 = vmatprep.subr.mxu0 0.0
    %2318 = vmatpush1.msra.mxu0 0.0
    %2319 = vmatprep.subr.mxu0 0.0
    %2320 = vmatpush1.msra.mxu0 0.0
    %2321 = vmatprep.subr.mxu0 0.0
    %2322 = vmatpush1.msra.mxu0 0.0
    %2323 = vmatprep.subr.mxu0 0.0
    %2324 = vmatpush1.msra.mxu0 0.0
    %2325 = vmatprep.subr.mxu0 0.0
    %2326 = vmatpush1.msra.mxu0 0.0
    %2327 = vmatprep.subr.mxu0 0.0
    %2328 = vmatpush1.msra.mxu0 0.0
    %2329 = vmatprep.subr.mxu0 0.0
    %2330 = vmatpush1.msra.mxu0 0.0
    %2331 = vmatprep.subr.mxu0 0.0
    %2332 = vmatpush1.msra.mxu0 0.0
    %2333 = vmatprep.subr.mxu0 0.0
    %2334 = vmatpush1.msra.mxu0 0.0
    %2335 = vmatprep.subr.mxu0 0.0
    %2336 = vmatpush1.msra.mxu0 0.0
    %2337 = vmatprep.subr.mxu0 0.0
    %2338 = vmatpush1.msra.mxu0 0.0
    %2339 = vmatprep.subr.mxu0 0.0
    %2340 = vmatpush1.msra.mxu0 0.0
    %2341 = vmatprep.subr.mxu0 0.0
    %2342 = vmatpush1.msra.mxu0 0.0
    %2343 = vmatprep.subr.mxu0 0.0
    %2344 = vmatpush1.msra.mxu0 0.0
    %2345 = vmatprep.subr.mxu0 0.0
    %2346 = vmatpush1.msra.mxu0 0.0
    %2347 = vmatprep.subr.mxu0 0.0
    %2348 = vmatpush1.msra.mxu0 0.0
    %2349 = vmatprep.subr.mxu0 0.0
    %2350 = vmatpush1.msra.mxu0 0.0
    %2351 = vmatprep.subr.mxu0 0.0
    %2352 = vmatpush1.msra.mxu0 0.0
    %2353 = vmatprep.subr.mxu0 0.0
    %2354 = vmatpush1.msra.mxu0 0.0
    %2355 = vmatprep.subr.mxu0 0.0
    %2356 = vmatpush1.msra.mxu0 0.0
    %2357 = vmatprep.subr.mxu0 0.0
    %2358 = vmatpush1.msra.mxu0 0.0
    %2359 = vmatprep.subr.mxu0 0.0
    %2360 = vmatpush1.msra.mxu0 0.0
    %2361 = vmatprep.subr.mxu0 0.0
    %2362 = vmatpush1.msra.mxu0 0.0
    %2363 = vmatprep.subr.mxu0 0.0
    %2364 = vmatpush1.msra.mxu0 0.0
    %2365 = vmatprep.subr.mxu0 0.0
    %2366 = vmatpush1.msra.mxu0 0.0
    %2367 = vmatprep.subr.mxu0 0.0
    %2368 = vmatpush1.msra.mxu0 0.0
    %2369 = vmatprep.subr.mxu0 0.0
    %2370 = vmatpush1.msra.mxu0 0.0
    %2371 = vmatprep.subr.mxu0 0.0
    %2372 = vmatpush1.msra.mxu0 0.0
    %2373 = vmatprep.subr.mxu0 0.0
    %2374 = vmatpush1.msra.mxu0 0.0
    %2375 = vmatprep.subr.mxu0 0.0
    %2376 = vmatpush1.msra.mxu0 0.0
    %2377 = vmatprep.mubr.f32.mxu0 0.0
    %2378 = vmatmul.mubr.f32.gmra.mrb[0].mxu0 %v1602
    %v2379 = vpop.f32.mrb[0].mxu0
    %v2380 = vadd.f32 %v1576, %v2379
    %v2381 = vpop.f32.mrb[0].mxu0
    %v2382 = vadd.f32 %v1580, %v2381
    %2383 = vmatprep.mubr.f32.mxu0 0.0
    %2384 = vmatmul.mubr.f32.gmra.mrb[0].mxu0 %v1605
    %v2385 = vpop.f32.mrb[0].mxu0
    %v2386 = vadd.f32 %v1576, %v2385
    %v2387 = vpop.f32.mrb[0].mxu0
    %v2388 = vadd.f32 %v1580, %v2387
    %2389 = vmatprep.mubr.f32.mxu0 0.0
    %2390 = vmatmul.mubr.f32.gmra.mrb[0].mxu0 %v1608
    %v2391 = vpop.f32.mrb[0].mxu0
    %v2392 = vadd.f32 %v1576, %v2391
    %v2393 = vpop.f32.mrb[0].mxu0
    %v2394 = vadd.f32 %v1580, %v2393
    %2395 = vmatprep.mubr.f32.mxu0 0.0
    %2396 = vmatmul.mubr.f32.gmra.mrb[0].mxu0 %v1611
    %v2397 = vpop.f32.mrb[0].mxu0
    %v2398 = vadd.f32 %v1576, %v2397
    %v2399 = vpop.f32.mrb[0].mxu0
    %v2400 = vadd.f32 %v1580, %v2399
    %2401 = vmatprep.mubr.f32.mxu0 0.0
    %2402 = vmatmul.mubr.f32.gmra.mrb[0].mxu0 %v1614
    %v2403 = vpop.f32.mrb[0].mxu0
    %v2404 = vadd.f32 %v1576, %v2403
    %v2405 = vpop.f32.mrb[0].mxu0
    %v2406 = vadd.f32 %v1580, %v2405
    %2407 = vmatprep.mubr.f32.mxu0 0.0
    %2408 = vmatmul.mubr.f32.gmra.mrb[0].mxu0 %v1617
    %v2409 = vpop.f32.mrb[0].mxu0
    %v2410 = vadd.f32 %v1576, %v2409
    %v2411 = vpop.f32.mrb[0].mxu0
    %v2412 = vadd.f32 %v1580, %v2411
    %2413 = vmatprep.mubr.f32.mxu0 0.0
    %2414 = vmatmul.mubr.f32.gmra.mrb[0].mxu0 %v1620
    %v2415 = vpop.f32.mrb[0].mxu0
    %v2416 = vadd.f32 %v1576, %v2415
    %v2417 = vpop.f32.mrb[0].mxu0
    %v2418 = vadd.f32 %v1580, %v2417
    %2419 = vmatprep.mubr.f32.mxu0 0.0
    %2420 = vmatmul.mubr.f32.gmra.mrb[0].mxu0 %v1623
    %v2421 = vpop.f32.mrb[0].mxu0
    %v2422 = vadd.f32 %v1576, %v2421
    %v2423 = vpop.f32.mrb[0].mxu0
    %v2424 = vadd.f32 %v1580, %v2423
    %2425 = vmatprep.mubr.f32.mxu0 0.0
    %2426 = vmatmul.mubr.f32.gmra.mrb[0].mxu0 %v1626
    %v2427 = vpop.f32.mrb[0].mxu0
    %v2428 = vadd.f32 %v1576, %v2427
    %v2429 = vpop.f32.mrb[0].mxu0
    %v2430 = vadd.f32 %v1580, %v2429
    %2431 = vmatprep.mubr.f32.mxu0 0.0
    %2432 = vmatmul.mubr.f32.gmra.mrb[0].mxu0 %v1629
    %v2433 = vpop.f32.mrb[0].mxu0
    %v2434 = vadd.f32 %v1576, %v2433
    %v2435 = vpop.f32.mrb[0].mxu0
    %v2436 = vadd.f32 %v1580, %v2435
    %2437 = vmatprep.mubr.f32.mxu0 0.0
    %2438 = vmatmul.mubr.f32.gmra.mrb[0].mxu0 %v1632
    %v2439 = vpop.f32.mrb[0].mxu0
    %v2440 = vadd.f32 %v1576, %v2439
    %v2441 = vpop.f32.mrb[0].mxu0
    %v2442 = vadd.f32 %v1580, %v2441
    %2443 = vmatprep.mubr.f32.mxu0 0.0
    %2444 = vmatmul.mubr.f32.gmra.mrb[0].mxu0 %v1635
    %v2445 = vpop.f32.mrb[0].mxu0
    %v2446 = vadd.f32 %v1576, %v2445
    %v2447 = vpop.f32.mrb[0].mxu0
    %v2448 = vadd.f32 %v1580, %v2447
    %2449 = vmatprep.mubr.f32.mxu0 0.0
    %2450 = vmatmul.mubr.f32.gmra.mrb[0].mxu0 %v1638
    %v2451 = vpop.f32.mrb[0].mxu0
    %v2452 = vadd.f32 %v1576, %v2451
    %v2453 = vpop.f32.mrb[0].mxu0
    %v2454 = vadd.f32 %v1580, %v2453
    %2455 = vmatprep.mubr.f32.mxu0 0.0
    %2456 = vmatmul.mubr.f32.gmra.mrb[0].mxu0 %v1641
    %v2457 = vpop.f32.mrb[0].mxu0
    %v2458 = vadd.f32 %v1576, %v2457
    %v2459 = vpop.f32.mrb[0].mxu0
    %v2460 = vadd.f32 %v1580, %v2459
    %2461 = vmatprep.mubr.f32.mxu0 0.0
    %2462 = vmatmul.mubr.f32.gmra.mrb[0].mxu0 %v1644
    %v2463 = vpop.f32.mrb[0].mxu0
    %v2464 = vadd.f32 %v1576, %v2463
    %v2465 = vpop.f32.mrb[0].mxu0
    %v2466 = vadd.f32 %v1580, %v2465
    %2467 = vmatprep.mubr.f32.mxu0 0.0
    %2468 = vmatmul.mubr.f32.gmra.mrb[0].mxu0 %v1647
    %v2469 = vpop.f32.mrb[0].mxu0
    %v2470 = vadd.f32 %v1576, %v2469
    %v2471 = vpop.f32.mrb[0].mxu0
    %v2472 = vadd.f32 %v1580, %v2471
    %2473 = vdwg.mxu0
    %v2474 = vmax.f32 %v1736, 0.0
    %v2475 = vmax.f32 %v1738, 0.0
    %v2476 = vmax.f32 %v1897, 0.0
    %v2477 = vmax.f32 %v1899, 0.0
    %v2478 = vmax.f32 %v2058, 0.0
    %v2479 = vmax.f32 %v2060, 0.0
    %v2480 = vmax.f32 %v2219, 0.0
    %v2481 = vmax.f32 %v2221, 0.0
    %v2482 = vmax.f32 %v2380, 0.0
    %v2483 = vmax.f32 %v2382, 0.0
    %v2484 = vmax.f32 %v1742, 0.0
    %v2485 = vmax.f32 %v1744, 0.0
    %v2486 = vmax.f32 %v1903, 0.0
    %v2487 = vmax.f32 %v1905, 0.0
    %v2488 = vmax.f32 %v2064, 0.0
    %v2489 = vmax.f32 %v2066, 0.0
    %v2490 = vmax.f32 %v2225, 0.0
    %v2491 = vmax.f32 %v2227, 0.0
    %v2492 = vmax.f32 %v2386, 0.0
    %v2493 = vmax.f32 %v2388, 0.0
    %v2494 = vmax.f32 %v1748, 0.0
    %v2495 = vmax.f32 %v1750, 0.0
    %v2496 = vmax.f32 %v1909, 0.0
    %v2497 = vmax.f32 %v1911, 0.0
    %v2498 = vmax.f32 %v2070, 0.0
    %v2499 = vmax.f32 %v2072, 0.0
    %v2500 = vmax.f32 %v2231, 0.0
    %v2501 = vmax.f32 %v2233, 0.0
    %v2502 = vmax.f32 %v2392, 0.0
    %v2503 = vmax.f32 %v2394, 0.0
    %v2504 = vmax.f32 %v1754, 0.0
    %v2505 = vmax.f32 %v1756, 0.0
    %v2506 = vmax.f32 %v1915, 0.0
    %v2507 = vmax.f32 %v1917, 0.0
    %v2508 = vmax.f32 %v2076, 0.0
    %v2509 = vmax.f32 %v2078, 0.0
    %v2510 = vmax.f32 %v2237, 0.0
    %v2511 = vmax.f32 %v2239, 0.0
    %v2512 = vmax.f32 %v2398, 0.0
    %v2513 = vmax.f32 %v2400, 0.0
    %v2514 = vmax.f32 %v1760, 0.0
    %v2515 = vmax.f32 %v1762, 0.0
    %v2516 = vmax.f32 %v1921, 0.0
    %v2517 = vmax.f32 %v1923, 0.0
    %v2518 = vmax.f32 %v2082, 0.0
    %v2519 = vmax.f32 %v2084, 0.0
    %v2520 = vmax.f32 %v2243, 0.0
    %v2521 = vmax.f32 %v2245, 0.0
    %v2522 = vmax.f32 %v2404, 0.0
    %v2523 = vmax.f32 %v2406, 0.0
    %v2524 = vmax.f32 %v1766, 0.0
    %v2525 = vmax.f32 %v1768, 0.0
    %v2526 = vmax.f32 %v1927, 0.0
    %v2527 = vmax.f32 %v1929, 0.0
    %v2528 = vmax.f32 %v2088, 0.0
    %v2529 = vmax.f32 %v2090, 0.0
    %v2530 = vmax.f32 %v2249, 0.0
    %v2531 = vmax.f32 %v2251, 0.0
    %v2532 = vmax.f32 %v2410, 0.0
    %v2533 = vmax.f32 %v2412, 0.0
    %v2534 = vmax.f32 %v1772, 0.0
    %v2535 = vmax.f32 %v1774, 0.0
    %v2536 = vmax.f32 %v1933, 0.0
    %v2537 = vmax.f32 %v1935, 0.0
    %v2538 = vmax.f32 %v2094, 0.0
    %v2539 = vmax.f32 %v2096, 0.0
    %v2540 = vmax.f32 %v2255, 0.0
    %v2541 = vmax.f32 %v2257, 0.0
    %v2542 = vmax.f32 %v2416, 0.0
    %v2543 = vmax.f32 %v2418, 0.0
    %v2544 = vmax.f32 %v1778, 0.0
    %v2545 = vmax.f32 %v1780, 0.0
    %v2546 = vmax.f32 %v1939, 0.0
    %v2547 = vmax.f32 %v1941, 0.0
    %v2548 = vmax.f32 %v2100, 0.0
    %v2549 = vmax.f32 %v2102, 0.0
    %v2550 = vmax.f32 %v2261, 0.0
    %v2551 = vmax.f32 %v2263, 0.0
    %v2552 = vmax.f32 %v2422, 0.0
    %v2553 = vmax.f32 %v2424, 0.0
    %v2554 = vmax.f32 %v1784, 0.0
    %v2555 = vmax.f32 %v1786, 0.0
    %v2556 = vmax.f32 %v1945, 0.0
    %v2557 = vmax.f32 %v1947, 0.0
    %v2558 = vmax.f32 %v2106, 0.0
    %v2559 = vmax.f32 %v2108, 0.0
    %v2560 = vmax.f32 %v2267, 0.0
    %v2561 = vmax.f32 %v2269, 0.0
    %v2562 = vmax.f32 %v2428, 0.0
    %v2563 = vmax.f32 %v2430, 0.0
    %v2564 = vmax.f32 %v1790, 0.0
    %v2565 = vmax.f32 %v1792, 0.0
    %v2566 = vmax.f32 %v1951, 0.0
    %v2567 = vmax.f32 %v1953, 0.0
    %v2568 = vmax.f32 %v2112, 0.0
    %v2569 = vmax.f32 %v2114, 0.0
    %v2570 = vmax.f32 %v2273, 0.0
    %v2571 = vmax.f32 %v2275, 0.0
    %v2572 = vmax.f32 %v2434, 0.0
    %v2573 = vmax.f32 %v2436, 0.0
    %v2574 = vmax.f32 %v1796, 0.0
    %v2575 = vmax.f32 %v1798, 0.0
    %v2576 = vmax.f32 %v1957, 0.0
    %v2577 = vmax.f32 %v1959, 0.0
    %v2578 = vmax.f32 %v2118, 0.0
    %v2579 = vmax.f32 %v2120, 0.0
    %v2580 = vmax.f32 %v2279, 0.0
    %v2581 = vmax.f32 %v2281, 0.0
    %v2582 = vmax.f32 %v2440, 0.0
    %v2583 = vmax.f32 %v2442, 0.0
    %v2584 = vmax.f32 %v1802, 0.0
    %v2585 = vmax.f32 %v1804, 0.0
    %v2586 = vmax.f32 %v1963, 0.0
    %v2587 = vmax.f32 %v1965, 0.0
    %v2588 = vmax.f32 %v2124, 0.0
    %v2589 = vmax.f32 %v2126, 0.0
    %v2590 = vmax.f32 %v2285, 0.0
    %v2591 = vmax.f32 %v2287, 0.0
    %v2592 = vmax.f32 %v2446, 0.0
    %v2593 = vmax.f32 %v2448, 0.0
    %v2594 = vmax.f32 %v1808, 0.0
    %v2595 = vmax.f32 %v1810, 0.0
    %v2596 = vmax.f32 %v1969, 0.0
    %v2597 = vmax.f32 %v1971, 0.0
    %v2598 = vmax.f32 %v2130, 0.0
    %v2599 = vmax.f32 %v2132, 0.0
    %v2600 = vmax.f32 %v2291, 0.0
    %v2601 = vmax.f32 %v2293, 0.0
    %v2602 = vmax.f32 %v2452, 0.0
    %v2603 = vmax.f32 %v2454, 0.0
    %v2604 = vmax.f32 %v1814, 0.0
    %v2605 = vmax.f32 %v1816, 0.0
    %v2606 = vmax.f32 %v1975, 0.0
    %v2607 = vmax.f32 %v1977, 0.0
    %v2608 = vmax.f32 %v2136, 0.0
    %v2609 = vmax.f32 %v2138, 0.0
    %v2610 = vmax.f32 %v2297, 0.0
    %v2611 = vmax.f32 %v2299, 0.0
    %v2612 = vmax.f32 %v2458, 0.0
    %v2613 = vmax.f32 %v2460, 0.0
    %v2614 = vmax.f32 %v1820, 0.0
    %v2615 = vmax.f32 %v1822, 0.0
    %v2616 = vmax.f32 %v1981, 0.0
    %v2617 = vmax.f32 %v1983, 0.0
    %v2618 = vmax.f32 %v2142, 0.0
    %v2619 = vmax.f32 %v2144, 0.0
    %v2620 = vmax.f32 %v2303, 0.0
    %v2621 = vmax.f32 %v2305, 0.0
    %v2622 = vmax.f32 %v2464, 0.0
    %v2623 = vmax.f32 %v2466, 0.0
    %v2624 = vmax.f32 %v1826, 0.0
    %v2625 = vmax.f32 %v1828, 0.0
    %v2626 = vmax.f32 %v1987, 0.0
    %v2627 = vmax.f32 %v1989, 0.0
    %v2628 = vmax.f32 %v2148, 0.0
    %v2629 = vmax.f32 %v2150, 0.0
    %v2630 = vmax.f32 %v2309, 0.0
    %v2631 = vmax.f32 %v2311, 0.0
    %v2632 = vmax.f32 %v2470, 0.0
    %v2633 = vmax.f32 %v2472, 0.0
    %2634 = vmatprep.subr.mxu0 %v2475
    %2635 = vmatpush1.msra.mxu0 %v2474
    %2636 = vmatprep.subr.mxu0 %v2485
    %2637 = vmatpush1.msra.mxu0 %v2484
    %2638 = vmatprep.subr.mxu0 %v2495
    %2639 = vmatpush1.msra.mxu0 %v2494
    %2640 = vmatprep.subr.mxu0 %v2505
    %2641 = vmatpush1.msra.mxu0 %v2504
    %2642 = vmatprep.subr.mxu0 %v2515
    %2643 = vmatpush1.msra.mxu0 %v2514
    %2644 = vmatprep.subr.mxu0 %v2525
    %2645 = vmatpush1.msra.mxu0 %v2524
    %2646 = vmatprep.subr.mxu0 %v2535
    %2647 = vmatpush1.msra.mxu0 %v2534
    %2648 = vmatprep.subr.mxu0 %v2545
    %2649 = vmatpush1.msra.mxu0 %v2544
    %2650 = vmatprep.subr.mxu0 %v2555
    %2651 = vmatpush1.msra.mxu0 %v2554
    %2652 = vmatprep.subr.mxu0 %v2565
    %2653 = vmatpush1.msra.mxu0 %v2564
    %2654 = vmatprep.subr.mxu0 %v2575
    %2655 = vmatpush1.msra.mxu0 %v2574
    %2656 = vmatprep.subr.mxu0 %v2585
    %2657 = vmatpush1.msra.mxu0 %v2584
    %2658 = vmatprep.subr.mxu0 %v2595
    %2659 = vmatpush1.msra.mxu0 %v2594
    %2660 = vmatprep.subr.mxu0 %v2605
    %2661 = vmatpush1.msra.mxu0 %v2604
    %2662 = vmatprep.subr.mxu0 %v2615
    %2663 = vmatpush1.msra.mxu0 %v2614
    %2664 = vmatprep.subr.mxu0 %v2625
    %2665 = vmatpush1.msra.mxu0 %v2624
    %2666 = vmatprep.subr.mxu0 0.0
    %2667 = vmatpush1.msra.mxu0 0.0
    %2668 = vmatprep.subr.mxu0 0.0
    %2669 = vmatpush1.msra.mxu0 0.0
    %2670 = vmatprep.subr.mxu0 0.0
    %2671 = vmatpush1.msra.mxu0 0.0
    %2672 = vmatprep.subr.mxu0 0.0
    %2673 = vmatpush1.msra.mxu0 0.0
    %2674 = vmatprep.subr.mxu0 0.0
    %2675 = vmatpush1.msra.mxu0 0.0
    %2676 = vmatprep.subr.mxu0 0.0
    %2677 = vmatpush1.msra.mxu0 0.0
    %2678 = vmatprep.subr.mxu0 0.0
    %2679 = vmatpush1.msra.mxu0 0.0
    %2680 = vmatprep.subr.mxu0 0.0
    %2681 = vmatpush1.msra.mxu0 0.0
    %2682 = vmatprep.subr.mxu0 0.0
    %2683 = vmatpush1.msra.mxu0 0.0
    %2684 = vmatprep.subr.mxu0 0.0
    %2685 = vmatpush1.msra.mxu0 0.0
    %2686 = vmatprep.subr.mxu0 0.0
    %2687 = vmatpush1.msra.mxu0 0.0
    %2688 = vmatprep.subr.mxu0 0.0
    %2689 = vmatpush1.msra.mxu0 0.0
    %2690 = vmatprep.subr.mxu0 0.0
    %2691 = vmatpush1.msra.mxu0 0.0
    %2692 = vmatprep.subr.mxu0 0.0
    %2693 = vmatpush1.msra.mxu0 0.0
    %2694 = vmatprep.subr.mxu0 0.0
    %2695 = vmatpush1.msra.mxu0 0.0
    %2696 = vmatprep.subr.mxu0 0.0
    %2697 = vmatpush1.msra.mxu0 0.0
    %2698 = vmatprep.mubr.f32.mxu0 0.0
    %2699 = vmatmul.mubr.f32.gmra.mrb[0].mxu0 %v40
    %v2700 = vpop.f32.mrb[0].mxu0
    %v2701 = vadd.f32 0.0, %v2700
    %v2702 = vpop.f32.mrb[0].mxu0
    %v2703 = vadd.f32 0.0, %v2702
    %2704 = vdwg.mxu0
    %2705 = vmatprep.subr.mxu0 %v2477
    %2706 = vmatpush1.msra.mxu0 %v2476
    %2707 = vmatprep.subr.mxu0 %v2487
    %2708 = vmatpush1.msra.mxu0 %v2486
    %2709 = vmatprep.subr.mxu0 %v2497
    %2710 = vmatpush1.msra.mxu0 %v2496
    %2711 = vmatprep.subr.mxu0 %v2507
    %2712 = vmatpush1.msra.mxu0 %v2506
    %2713 = vmatprep.subr.mxu0 %v2517
    %2714 = vmatpush1.msra.mxu0 %v2516
    %2715 = vmatprep.subr.mxu0 %v2527
    %2716 = vmatpush1.msra.mxu0 %v2526
    %2717 = vmatprep.subr.mxu0 %v2537
    %2718 = vmatpush1.msra.mxu0 %v2536
    %2719 = vmatprep.subr.mxu0 %v2547
    %2720 = vmatpush1.msra.mxu0 %v2546
    %2721 = vmatprep.subr.mxu0 %v2557
    %2722 = vmatpush1.msra.mxu0 %v2556
    %2723 = vmatprep.subr.mxu0 %v2567
    %2724 = vmatpush1.msra.mxu0 %v2566
    %2725 = vmatprep.subr.mxu0 %v2577
    %2726 = vmatpush1.msra.mxu0 %v2576
    %2727 = vmatprep.subr.mxu0 %v2587
    %2728 = vmatpush1.msra.mxu0 %v2586
    %2729 = vmatprep.subr.mxu0 %v2597
    %2730 = vmatpush1.msra.mxu0 %v2596
    %2731 = vmatprep.subr.mxu0 %v2607
    %2732 = vmatpush1.msra.mxu0 %v2606
    %2733 = vmatprep.subr.mxu0 %v2617
    %2734 = vmatpush1.msra.mxu0 %v2616
    %2735 = vmatprep.subr.mxu0 %v2627
    %2736 = vmatpush1.msra.mxu0 %v2626
    %2737 = vmatprep.subr.mxu0 0.0
    %2738 = vmatpush1.msra.mxu0 0.0
    %2739 = vmatprep.subr.mxu0 0.0
    %2740 = vmatpush1.msra.mxu0 0.0
    %2741 = vmatprep.subr.mxu0 0.0
    %2742 = vmatpush1.msra.mxu0 0.0
    %2743 = vmatprep.subr.mxu0 0.0
    %2744 = vmatpush1.msra.mxu0 0.0
    %2745 = vmatprep.subr.mxu0 0.0
    %2746 = vmatpush1.msra.mxu0 0.0
    %2747 = vmatprep.subr.mxu0 0.0
    %2748 = vmatpush1.msra.mxu0 0.0
    %2749 = vmatprep.subr.mxu0 0.0
    %2750 = vmatpush1.msra.mxu0 0.0
    %2751 = vmatprep.subr.mxu0 0.0
    %2752 = vmatpush1.msra.mxu0 0.0
    %2753 = vmatprep.subr.mxu0 0.0
    %2754 = vmatpush1.msra.mxu0 0.0
    %2755 = vmatprep.subr.mxu0 0.0
    %2756 = vmatpush1.msra.mxu0 0.0
    %2757 = vmatprep.subr.mxu0 0.0
    %2758 = vmatpush1.msra.mxu0 0.0
    %2759 = vmatprep.subr.mxu0 0.0
    %2760 = vmatpush1.msra.mxu0 0.0
    %2761 = vmatprep.subr.mxu0 0.0
    %2762 = vmatpush1.msra.mxu0 0.0
    %2763 = vmatprep.subr.mxu0 0.0
    %2764 = vmatpush1.msra.mxu0 0.0
    %2765 = vmatprep.subr.mxu0 0.0
    %2766 = vmatpush1.msra.mxu0 0.0
    %2767 = vmatprep.subr.mxu0 0.0
    %2768 = vmatpush1.msra.mxu0 0.0
    %2769 = vmatprep.mubr.f32.mxu0 0.0
    %2770 = vmatmul.mubr.f32.gmra.mrb[0].mxu0 %v40
    %v2771 = vpop.f32.mrb[0].mxu0
    %v2772 = vadd.f32 0.0, %v2771
    %v2773 = vpop.f32.mrb[0].mxu0
    %v2774 = vadd.f32 0.0, %v2773
    %2775 = vdwg.mxu0
    %2776 = vmatprep.subr.mxu0 %v2479
    %2777 = vmatpush1.msra.mxu0 %v2478
    %2778 = vmatprep.subr.mxu0 %v2489
    %2779 = vmatpush1.msra.mxu0 %v2488
    %2780 = vmatprep.subr.mxu0 %v2499
    %2781 = vmatpush1.msra.mxu0 %v2498
    %2782 = vmatprep.subr.mxu0 %v2509
    %2783 = vmatpush1.msra.mxu0 %v2508
    %2784 = vmatprep.subr.mxu0 %v2519
    %2785 = vmatpush1.msra.mxu0 %v2518
    %2786 = vmatprep.subr.mxu0 %v2529
    %2787 = vmatpush1.msra.mxu0 %v2528
    %2788 = vmatprep.subr.mxu0 %v2539
    %2789 = vmatpush1.msra.mxu0 %v2538
    %2790 = vmatprep.subr.mxu0 %v2549
    %2791 = vmatpush1.msra.mxu0 %v2548
    %2792 = vmatprep.subr.mxu0 %v2559
    %2793 = vmatpush1.msra.mxu0 %v2558
    %2794 = vmatprep.subr.mxu0 %v2569
    %2795 = vmatpush1.msra.mxu0 %v2568
    %2796 = vmatprep.subr.mxu0 %v2579
    %2797 = vmatpush1.msra.mxu0 %v2578
    %2798 = vmatprep.subr.mxu0 %v2589
    %2799 = vmatpush1.msra.mxu0 %v2588
    %2800 = vmatprep.subr.mxu0 %v2599
    %2801 = vmatpush1.msra.mxu0 %v2598
    %2802 = vmatprep.subr.mxu0 %v2609
    %2803 = vmatpush1.msra.mxu0 %v2608
    %2804 = vmatprep.subr.mxu0 %v2619
    %2805 = vmatpush1.msra.mxu0 %v2618
    %2806 = vmatprep.subr.mxu0 %v2629
    %2807 = vmatpush1.msra.mxu0 %v2628
    %2808 = vmatprep.subr.mxu0 0.0
    %2809 = vmatpush1.msra.mxu0 0.0
    %2810 = vmatprep.subr.mxu0 0.0
    %2811 = vmatpush1.msra.mxu0 0.0
    %2812 = vmatprep.subr.mxu0 0.0
    %2813 = vmatpush1.msra.mxu0 0.0
    %2814 = vmatprep.subr.mxu0 0.0
    %2815 = vmatpush1.msra.mxu0 0.0
    %2816 = vmatprep.subr.mxu0 0.0
    %2817 = vmatpush1.msra.mxu0 0.0
    %2818 = vmatprep.subr.mxu0 0.0
    %2819 = vmatpush1.msra.mxu0 0.0
    %2820 = vmatprep.subr.mxu0 0.0
    %2821 = vmatpush1.msra.mxu0 0.0
    %2822 = vmatprep.subr.mxu0 0.0
    %2823 = vmatpush1.msra.mxu0 0.0
    %2824 = vmatprep.subr.mxu0 0.0
    %2825 = vmatpush1.msra.mxu0 0.0
    %2826 = vmatprep.subr.mxu0 0.0
    %2827 = vmatpush1.msra.mxu0 0.0
    %2828 = vmatprep.subr.mxu0 0.0
    %2829 = vmatpush1.msra.mxu0 0.0
    %2830 = vmatprep.subr.mxu0 0.0
    %2831 = vmatpush1.msra.mxu0 0.0
    %2832 = vmatprep.subr.mxu0 0.0
    %2833 = vmatpush1.msra.mxu0 0.0
    %2834 = vmatprep.subr.mxu0 0.0
    %2835 = vmatpush1.msra.mxu0 0.0
    %2836 = vmatprep.subr.mxu0 0.0
    %2837 = vmatpush1.msra.mxu0 0.0
    %2838 = vmatprep.subr.mxu0 0.0
    %2839 = vmatpush1.msra.mxu0 0.0
    %2840 = vmatprep.mubr.f32.mxu0 0.0
    %2841 = vmatmul.mubr.f32.gmra.mrb[0].mxu0 %v40
    %v2842 = vpop.f32.mrb[0].mxu0
    %v2843 = vadd.f32 0.0, %v2842
    %v2844 = vpop.f32.mrb[0].mxu0
    %v2845 = vadd.f32 0.0, %v2844
    %2846 = vdwg.mxu0
    %2847 = vmatprep.subr.mxu0 %v2481
    %2848 = vmatpush1.msra.mxu0 %v2480
    %2849 = vmatprep.subr.mxu0 %v2491
    %2850 = vmatpush1.msra.mxu0 %v2490
    %2851 = vmatprep.subr.mxu0 %v2501
    %2852 = vmatpush1.msra.mxu0 %v2500
    %2853 = vmatprep.subr.mxu0 %v2511
    %2854 = vmatpush1.msra.mxu0 %v2510
    %2855 = vmatprep.subr.mxu0 %v2521
    %2856 = vmatpush1.msra.mxu0 %v2520
    %2857 = vmatprep.subr.mxu0 %v2531
    %2858 = vmatpush1.msra.mxu0 %v2530
    %2859 = vmatprep.subr.mxu0 %v2541
    %2860 = vmatpush1.msra.mxu0 %v2540
    %2861 = vmatprep.subr.mxu0 %v2551
    %2862 = vmatpush1.msra.mxu0 %v2550
    %2863 = vmatprep.subr.mxu0 %v2561
    %2864 = vmatpush1.msra.mxu0 %v2560
    %2865 = vmatprep.subr.mxu0 %v2571
    %2866 = vmatpush1.msra.mxu0 %v2570
    %2867 = vmatprep.subr.mxu0 %v2581
    %2868 = vmatpush1.msra.mxu0 %v2580
    %2869 = vmatprep.subr.mxu0 %v2591
    %2870 = vmatpush1.msra.mxu0 %v2590
    %2871 = vmatprep.subr.mxu0 %v2601
    %2872 = vmatpush1.msra.mxu0 %v2600
    %2873 = vmatprep.subr.mxu0 %v2611
    %2874 = vmatpush1.msra.mxu0 %v2610
    %2875 = vmatprep.subr.mxu0 %v2621
    %2876 = vmatpush1.msra.mxu0 %v2620
    %2877 = vmatprep.subr.mxu0 %v2631
    %2878 = vmatpush1.msra.mxu0 %v2630
    %2879 = vmatprep.subr.mxu0 0.0
    %2880 = vmatpush1.msra.mxu0 0.0
    %2881 = vmatprep.subr.mxu0 0.0
    %2882 = vmatpush1.msra.mxu0 0.0
    %2883 = vmatprep.subr.mxu0 0.0
    %2884 = vmatpush1.msra.mxu0 0.0
    %2885 = vmatprep.subr.mxu0 0.0
    %2886 = vmatpush1.msra.mxu0 0.0
    %2887 = vmatprep.subr.mxu0 0.0
    %2888 = vmatpush1.msra.mxu0 0.0
    %2889 = vmatprep.subr.mxu0 0.0
    %2890 = vmatpush1.msra.mxu0 0.0
    %2891 = vmatprep.subr.mxu0 0.0
    %2892 = vmatpush1.msra.mxu0 0.0
    %2893 = vmatprep.subr.mxu0 0.0
    %2894 = vmatpush1.msra.mxu0 0.0
    %2895 = vmatprep.subr.mxu0 0.0
    %2896 = vmatpush1.msra.mxu0 0.0
    %2897 = vmatprep.subr.mxu0 0.0
    %2898 = vmatpush1.msra.mxu0 0.0
    %2899 = vmatprep.subr.mxu0 0.0
    %2900 = vmatpush1.msra.mxu0 0.0
    %2901 = vmatprep.subr.mxu0 0.0
    %2902 = vmatpush1.msra.mxu0 0.0
    %2903 = vmatprep.subr.mxu0 0.0
    %2904 = vmatpush1.msra.mxu0 0.0
    %2905 = vmatprep.subr.mxu0 0.0
    %2906 = vmatpush1.msra.mxu0 0.0
    %2907 = vmatprep.subr.mxu0 0.0
    %2908 = vmatpush1.msra.mxu0 0.0
    %2909 = vmatprep.subr.mxu0 0.0
    %2910 = vmatpush1.msra.mxu0 0.0
    %2911 = vmatprep.mubr.f32.mxu0 0.0
    %2912 = vmatmul.mubr.f32.gmra.mrb[0].mxu0 %v40
    %v2913 = vpop.f32.mrb[0].mxu0
    %v2914 = vadd.f32 0.0, %v2913
    %v2915 = vpop.f32.mrb[0].mxu0
    %v2916 = vadd.f32 0.0, %v2915
    %2917 = vdwg.mxu0
    %2918 = vmatprep.subr.mxu0 %v2483
    %2919 = vmatpush1.msra.mxu0 %v2482
    %2920 = vmatprep.subr.mxu0 %v2493
    %2921 = vmatpush1.msra.mxu0 %v2492
    %2922 = vmatprep.subr.mxu0 %v2503
    %2923 = vmatpush1.msra.mxu0 %v2502
    %2924 = vmatprep.subr.mxu0 %v2513
    %2925 = vmatpush1.msra.mxu0 %v2512
    %2926 = vmatprep.subr.mxu0 %v2523
    %2927 = vmatpush1.msra.mxu0 %v2522
    %2928 = vmatprep.subr.mxu0 %v2533
    %2929 = vmatpush1.msra.mxu0 %v2532
    %2930 = vmatprep.subr.mxu0 %v2543
    %2931 = vmatpush1.msra.mxu0 %v2542
    %2932 = vmatprep.subr.mxu0 %v2553
    %2933 = vmatpush1.msra.mxu0 %v2552
    %2934 = vmatprep.subr.mxu0 %v2563
    %2935 = vmatpush1.msra.mxu0 %v2562
    %2936 = vmatprep.subr.mxu0 %v2573
    %2937 = vmatpush1.msra.mxu0 %v2572
    %2938 = vmatprep.subr.mxu0 %v2583
    %2939 = vmatpush1.msra.mxu0 %v2582
    %2940 = vmatprep.subr.mxu0 %v2593
    %2941 = vmatpush1.msra.mxu0 %v2592
    %2942 = vmatprep.subr.mxu0 %v2603
    %2943 = vmatpush1.msra.mxu0 %v2602
    %2944 = vmatprep.subr.mxu0 %v2613
    %2945 = vmatpush1.msra.mxu0 %v2612
    %2946 = vmatprep.subr.mxu0 %v2623
    %2947 = vmatpush1.msra.mxu0 %v2622
    %2948 = vmatprep.subr.mxu0 %v2633
    %2949 = vmatpush1.msra.mxu0 %v2632
    %2950 = vmatprep.subr.mxu0 0.0
    %2951 = vmatpush1.msra.mxu0 0.0
    %2952 = vmatprep.subr.mxu0 0.0
    %2953 = vmatpush1.msra.mxu0 0.0
    %2954 = vmatprep.subr.mxu0 0.0
    %2955 = vmatpush1.msra.mxu0 0.0
    %2956 = vmatprep.subr.mxu0 0.0
    %2957 = vmatpush1.msra.mxu0 0.0
    %2958 = vmatprep.subr.mxu0 0.0
    %2959 = vmatpush1.msra.mxu0 0.0
    %2960 = vmatprep.subr.mxu0 0.0
    %2961 = vmatpush1.msra.mxu0 0.0
    %2962 = vmatprep.subr.mxu0 0.0
    %2963 = vmatpush1.msra.mxu0 0.0
    %2964 = vmatprep.subr.mxu0 0.0
    %2965 = vmatpush1.msra.mxu0 0.0
    %2966 = vmatprep.subr.mxu0 0.0
    %2967 = vmatpush1.msra.mxu0 0.0
    %2968 = vmatprep.subr.mxu0 0.0
    %2969 = vmatpush1.msra.mxu0 0.0
    %2970 = vmatprep.subr.mxu0 0.0
    %2971 = vmatpush1.msra.mxu0 0.0
    %2972 = vmatprep.subr.mxu0 0.0
    %2973 = vmatpush1.msra.mxu0 0.0
    %2974 = vmatprep.subr.mxu0 0.0
    %2975 = vmatpush1.msra.mxu0 0.0
    %2976 = vmatprep.subr.mxu0 0.0
    %2977 = vmatpush1.msra.mxu0 0.0
    %2978 = vmatprep.subr.mxu0 0.0
    %2979 = vmatpush1.msra.mxu0 0.0
    %2980 = vmatprep.subr.mxu0 0.0
    %2981 = vmatpush1.msra.mxu0 0.0
    %2982 = vmatprep.mubr.f32.mxu0 0.0
    %2983 = vmatmul.mubr.f32.gmra.mrb[0].mxu0 %v40
    %v2984 = vpop.f32.mrb[0].mxu0
    %v2985 = vadd.f32 0.0, %v2984
    %v2986 = vpop.f32.mrb[0].mxu0
    %v2987 = vadd.f32 0.0, %v2986
    %2988 = vdwg.mxu0
    %v2989 = vld [vmem:[%s6] sm:$0x3f]
    %v2990 = vld [vmem:[%s6 + $0x8] sm:$0x3f]
    %v2991 = vld [vmem:[%s6 + $0x10] sm:$0x3f]
    %v2992 = vld [vmem:[%s6 + $0x18] sm:$0x3f]
    %v2993 = vld [vmem:[%s6 + $0x20] sm:$0x3f]
    %v2994 = vld [vmem:[%s6 + $0x28] sm:$0x3f]
    %v2995 = vld [vmem:[%s6 + $0x30] sm:$0x3f]
    %v2996 = vld [vmem:[%s6 + $0x38] sm:$0x3f]
    %v2997 = vld [vmem:[%s6 + $0x40] sm:$0x3f]
    %v2998 = vld [vmem:[%s6 + $0x48] sm:$0x3f]
    %v2999 = vld [vmem:[%s6 + $0x50] sm:$0x3f]
    %v3000 = vld [vmem:[%s6 + $0x58] sm:$0x3f]
    %v3001 = vld [vmem:[%s6 + $0x60] sm:$0x3f]
    %v3002 = vld [vmem:[%s6 + $0x68] sm:$0x3f]
    %v3003 = vld [vmem:[%s6 + $0x70] sm:$0x3f]
    %v3004 = vld [vmem:[%s6 + $0x78] sm:$0x3f]
    %v3005 = vld [vmem:[%s6 + $0x80] sm:$0x3f]
    %v3006 = vld [vmem:[%s6 + $0x88] sm:$0x3f]
    %v3007 = vld [vmem:[%s6 + $0x90] sm:$0x3f]
    %v3008 = vld [vmem:[%s6 + $0x98] sm:$0x3f]
    %v3009 = vadd.f32 %v2989, %v2999
    %v3010 = vadd.f32 %v2990, %v3000
    %v3011 = vadd.f32 %v2991, %v3001
    %v3012 = vadd.f32 %v2992, %v3002
    %v3013 = vadd.f32 %v2993, %v3003
    %v3014 = vadd.f32 %v2994, %v3004
    %v3015 = vadd.f32 %v2995, %v3005
    %v3016 = vadd.f32 %v2996, %v3006
    %v3017 = vadd.f32 %v2997, %v3007
    %v3018 = vadd.f32 %v2998, %v3008
    %3019 = vmatprep.subr.mxu0 %v3000
    %3020 = vmatpush1.xpose.msra.mxu0 %v2999
    %3021 = vmatprep.subr.mxu0 0.0
    %3022 = vmatpush1.xpose.msra.mxu0 0.0
    %3023 = vmatprep.subr.mxu0 0.0
    %3024 = vmatpush1.xpose.msra.mxu0 0.0
    %3025 = vmatprep.subr.mxu0 0.0
    %3026 = vmatpush1.xpose.msra.mxu0 0.0
    %3027 = vmatprep.subr.mxu0 0.0
    %3028 = vmatpush1.xpose.msra.mxu0 0.0
    %3029 = vmatprep.subr.mxu0 0.0
    %3030 = vmatpush1.xpose.msra.mxu0 0.0
    %3031 = vmatprep.subr.mxu0 0.0
    %3032 = vmatpush1.xpose.msra.mxu0 0.0
    %3033 = vmatprep.subr.mxu0 0.0
    %3034 = vmatpush1.xpose.msra.mxu0 0.0
    %3035 = vmatprep.subr.mxu0 0.0
    %3036 = vmatpush1.xpose.msra.mxu0 0.0
    %3037 = vmatprep.subr.mxu0 0.0
    %3038 = vmatpush1.xpose.msra.mxu0 0.0
    %3039 = vmatprep.subr.mxu0 0.0
    %3040 = vmatpush1.xpose.msra.mxu0 0.0
    %3041 = vmatprep.subr.mxu0 0.0
    %3042 = vmatpush1.xpose.msra.mxu0 0.0
    %3043 = vmatprep.subr.mxu0 0.0
    %3044 = vmatpush1.xpose.msra.mxu0 0.0
    %3045 = vmatprep.subr.mxu0 0.0
    %3046 = vmatpush1.xpose.msra.mxu0 0.0
    %3047 = vmatprep.subr.mxu0 0.0
    %3048 = vmatpush1.xpose.msra.mxu0 0.0
    %3049 = vmatprep.subr.mxu0 0.0
    %3050 = vmatpush1.xpose.msra.mxu0 0.0
    %3051 = vmatprep.subr.mxu0 0.0
    %3052 = vmatpush1.xpose.msra.mxu0 0.0
    %3053 = vmatprep.subr.mxu0 0.0
    %3054 = vmatpush1.xpose.msra.mxu0 0.0
    %3055 = vmatprep.subr.mxu0 0.0
    %3056 = vmatpush1.xpose.msra.mxu0 0.0
    %3057 = vmatprep.subr.mxu0 0.0
    %3058 = vmatpush1.xpose.msra.mxu0 0.0
    %3059 = vmatprep.subr.mxu0 0.0
    %3060 = vmatpush1.xpose.msra.mxu0 0.0
    %3061 = vmatprep.subr.mxu0 0.0
    %3062 = vmatpush1.xpose.msra.mxu0 0.0
    %3063 = vmatprep.subr.mxu0 0.0
    %3064 = vmatpush1.xpose.msra.mxu0 0.0
    %3065 = vmatprep.subr.mxu0 0.0
    %3066 = vmatpush1.xpose.msra.mxu0 0.0
    %3067 = vmatprep.subr.mxu0 0.0
    %3068 = vmatpush1.xpose.msra.mxu0 0.0
    %3069 = vmatprep.subr.mxu0 0.0
    %3070 = vmatpush1.xpose.msra.mxu0 0.0
    %3071 = vmatprep.subr.mxu0 0.0
    %3072 = vmatpush1.xpose.msra.mxu0 0.0
    %3073 = vmatprep.subr.mxu0 0.0
    %3074 = vmatpush1.xpose.msra.mxu0 0.0
    %3075 = vmatprep.subr.mxu0 0.0
    %3076 = vmatpush1.xpose.msra.mxu0 0.0
    %3077 = vmatprep.subr.mxu0 0.0
    %3078 = vmatpush1.xpose.msra.mxu0 0.0
    %3079 = vmatprep.subr.mxu0 0.0
    %3080 = vmatpush1.xpose.msra.mxu0 0.0
    %3081 = vmatprep.subr.mxu0 0.0
    %3082 = vmatpush1.xpose.msra.mxu0 0.0
    %3083 = vmatprep.mubr.f32.mxu0 %v2703
    %3084 = vmatmul.mubr.f32.gmra.mrb[0].mxu0 %v2701
    %v3085 = vpop.f32.mrb[0].mxu0
    %v3086 = vadd.f32 0.0, %v3085
    %v3087 = vpop.f32.mrb[0].mxu0
    %3088 = vdwg.mxu0
    %3089 = vmatprep.subr.mxu0 %v3002
    %3090 = vmatpush1.xpose.msra.mxu0 %v3001
    %3091 = vmatprep.subr.mxu0 0.0
    %3092 = vmatpush1.xpose.msra.mxu0 0.0
    %3093 = vmatprep.subr.mxu0 0.0
    %3094 = vmatpush1.xpose.msra.mxu0 0.0
    %3095 = vmatprep.subr.mxu0 0.0
    %3096 = vmatpush1.xpose.msra.mxu0 0.0
    %3097 = vmatprep.subr.mxu0 0.0
    %3098 = vmatpush1.xpose.msra.mxu0 0.0
    %3099 = vmatprep.subr.mxu0 0.0
    %3100 = vmatpush1.xpose.msra.mxu0 0.0
    %3101 = vmatprep.subr.mxu0 0.0
    %3102 = vmatpush1.xpose.msra.mxu0 0.0
    %3103 = vmatprep.subr.mxu0 0.0
    %3104 = vmatpush1.xpose.msra.mxu0 0.0
    %3105 = vmatprep.subr.mxu0 0.0
    %3106 = vmatpush1.xpose.msra.mxu0 0.0
    %3107 = vmatprep.subr.mxu0 0.0
    %3108 = vmatpush1.xpose.msra.mxu0 0.0
    %3109 = vmatprep.subr.mxu0 0.0
    %3110 = vmatpush1.xpose.msra.mxu0 0.0
    %3111 = vmatprep.subr.mxu0 0.0
    %3112 = vmatpush1.xpose.msra.mxu0 0.0
    %3113 = vmatprep.subr.mxu0 0.0
    %3114 = vmatpush1.xpose.msra.mxu0 0.0
    %3115 = vmatprep.subr.mxu0 0.0
    %3116 = vmatpush1.xpose.msra.mxu0 0.0
    %3117 = vmatprep.subr.mxu0 0.0
    %3118 = vmatpush1.xpose.msra.mxu0 0.0
    %3119 = vmatprep.subr.mxu0 0.0
    %3120 = vmatpush1.xpose.msra.mxu0 0.0
    %3121 = vmatprep.subr.mxu0 0.0
    %3122 = vmatpush1.xpose.msra.mxu0 0.0
    %3123 = vmatprep.subr.mxu0 0.0
    %3124 = vmatpush1.xpose.msra.mxu0 0.0
    %3125 = vmatprep.subr.mxu0 0.0
    %3126 = vmatpush1.xpose.msra.mxu0 0.0
    %3127 = vmatprep.subr.mxu0 0.0
    %3128 = vmatpush1.xpose.msra.mxu0 0.0
    %3129 = vmatprep.subr.mxu0 0.0
    %3130 = vmatpush1.xpose.msra.mxu0 0.0
    %3131 = vmatprep.subr.mxu0 0.0
    %3132 = vmatpush1.xpose.msra.mxu0 0.0
    %3133 = vmatprep.subr.mxu0 0.0
    %3134 = vmatpush1.xpose.msra.mxu0 0.0
    %3135 = vmatprep.subr.mxu0 0.0
    %3136 = vmatpush1.xpose.msra.mxu0 0.0
    %3137 = vmatprep.subr.mxu0 0.0
    %3138 = vmatpush1.xpose.msra.mxu0 0.0
    %3139 = vmatprep.subr.mxu0 0.0
    %3140 = vmatpush1.xpose.msra.mxu0 0.0
    %3141 = vmatprep.subr.mxu0 0.0
    %3142 = vmatpush1.xpose.msra.mxu0 0.0
    %3143 = vmatprep.subr.mxu0 0.0
    %3144 = vmatpush1.xpose.msra.mxu0 0.0
    %3145 = vmatprep.subr.mxu0 0.0
    %3146 = vmatpush1.xpose.msra.mxu0 0.0
    %3147 = vmatprep.subr.mxu0 0.0
    %3148 = vmatpush1.xpose.msra.mxu0 0.0
    %3149 = vmatprep.subr.mxu0 0.0
    %3150 = vmatpush1.xpose.msra.mxu0 0.0
    %3151 = vmatprep.subr.mxu0 0.0
    %3152 = vmatpush1.xpose.msra.mxu0 0.0
    %3153 = vmatprep.mubr.f32.mxu0 %v2774
    %3154 = vmatmul.mubr.f32.gmra.mrb[0].mxu0 %v2772
    %v3155 = vpop.f32.mrb[0].mxu0
    %v3156 = vadd.f32 %v3086, %v3155
    %v3157 = vpop.f32.mrb[0].mxu0
    %3158 = vdwg.mxu0
    %3159 = vmatprep.subr.mxu0 %v3004
    %3160 = vmatpush1.xpose.msra.mxu0 %v3003
    %3161 = vmatprep.subr.mxu0 0.0
    %3162 = vmatpush1.xpose.msra.mxu0 0.0
    %3163 = vmatprep.subr.mxu0 0.0
    %3164 = vmatpush1.xpose.msra.mxu0 0.0
    %3165 = vmatprep.subr.mxu0 0.0
    %3166 = vmatpush1.xpose.msra.mxu0 0.0
    %3167 = vmatprep.subr.mxu0 0.0
    %3168 = vmatpush1.xpose.msra.mxu0 0.0
    %3169 = vmatprep.subr.mxu0 0.0
    %3170 = vmatpush1.xpose.msra.mxu0 0.0
    %3171 = vmatprep.subr.mxu0 0.0
    %3172 = vmatpush1.xpose.msra.mxu0 0.0
    %3173 = vmatprep.subr.mxu0 0.0
    %3174 = vmatpush1.xpose.msra.mxu0 0.0
    %3175 = vmatprep.subr.mxu0 0.0
    %3176 = vmatpush1.xpose.msra.mxu0 0.0
    %3177 = vmatprep.subr.mxu0 0.0
    %3178 = vmatpush1.xpose.msra.mxu0 0.0
    %3179 = vmatprep.subr.mxu0 0.0
    %3180 = vmatpush1.xpose.msra.mxu0 0.0
    %3181 = vmatprep.subr.mxu0 0.0
    %3182 = vmatpush1.xpose.msra.mxu0 0.0
    %3183 = vmatprep.subr.mxu0 0.0
    %3184 = vmatpush1.xpose.msra.mxu0 0.0
    %3185 = vmatprep.subr.mxu0 0.0
    %3186 = vmatpush1.xpose.msra.mxu0 0.0
    %3187 = vmatprep.subr.mxu0 0.0
    %3188 = vmatpush1.xpose.msra.mxu0 0.0
    %3189 = vmatprep.subr.mxu0 0.0
    %3190 = vmatpush1.xpose.msra.mxu0 0.0
    %3191 = vmatprep.subr.mxu0 0.0
    %3192 = vmatpush1.xpose.msra.mxu0 0.0
    %3193 = vmatprep.subr.mxu0 0.0
    %3194 = vmatpush1.xpose.msra.mxu0 0.0
    %3195 = vmatprep.subr.mxu0 0.0
    %3196 = vmatpush1.xpose.msra.mxu0 0.0
    %3197 = vmatprep.subr.mxu0 0.0
    %3198 = vmatpush1.xpose.msra.mxu0 0.0
    %3199 = vmatprep.subr.mxu0 0.0
    %3200 = vmatpush1.xpose.msra.mxu0 0.0
    %3201 = vmatprep.subr.mxu0 0.0
    %3202 = vmatpush1.xpose.msra.mxu0 0.0
    %3203 = vmatprep.subr.mxu0 0.0
    %3204 = vmatpush1.xpose.msra.mxu0 0.0
    %3205 = vmatprep.subr.mxu0 0.0
    %3206 = vmatpush1.xpose.msra.mxu0 0.0
    %3207 = vmatprep.subr.mxu0 0.0
    %3208 = vmatpush1.xpose.msra.mxu0 0.0
    %3209 = vmatprep.subr.mxu0 0.0
    %3210 = vmatpush1.xpose.msra.mxu0 0.0
    %3211 = vmatprep.subr.mxu0 0.0
    %3212 = vmatpush1.xpose.msra.mxu0 0.0
    %3213 = vmatprep.subr.mxu0 0.0
    %3214 = vmatpush1.xpose.msra.mxu0 0.0
    %3215 = vmatprep.subr.mxu0 0.0
    %3216 = vmatpush1.xpose.msra.mxu0 0.0
    %3217 = vmatprep.subr.mxu0 0.0
    %3218 = vmatpush1.xpose.msra.mxu0 0.0
    %3219 = vmatprep.subr.mxu0 0.0
    %3220 = vmatpush1.xpose.msra.mxu0 0.0
    %3221 = vmatprep.subr.mxu0 0.0
    %3222 = vmatpush1.xpose.msra.mxu0 0.0
    %3223 = vmatprep.mubr.f32.mxu0 %v2845
    %3224 = vmatmul.mubr.f32.gmra.mrb[0].mxu0 %v2843
    %v3225 = vpop.f32.mrb[0].mxu0
    %v3226 = vadd.f32 %v3156, %v3225
    %v3227 = vpop.f32.mrb[0].mxu0
    %3228 = vdwg.mxu0
    %3229 = vmatprep.subr.mxu0 %v3006
    %3230 = vmatpush1.xpose.msra.mxu0 %v3005
    %3231 = vmatprep.subr.mxu0 0.0
    %3232 = vmatpush1.xpose.msra.mxu0 0.0
    %3233 = vmatprep.subr.mxu0 0.0
    %3234 = vmatpush1.xpose.msra.mxu0 0.0
    %3235 = vmatprep.subr.mxu0 0.0
    %3236 = vmatpush1.xpose.msra.mxu0 0.0
    %3237 = vmatprep.subr.mxu0 0.0
    %3238 = vmatpush1.xpose.msra.mxu0 0.0
    %3239 = vmatprep.subr.mxu0 0.0
    %3240 = vmatpush1.xpose.msra.mxu0 0.0
    %3241 = vmatprep.subr.mxu0 0.0
    %3242 = vmatpush1.xpose.msra.mxu0 0.0
    %3243 = vmatprep.subr.mxu0 0.0
    %3244 = vmatpush1.xpose.msra.mxu0 0.0
    %3245 = vmatprep.subr.mxu0 0.0
    %3246 = vmatpush1.xpose.msra.mxu0 0.0
    %3247 = vmatprep.subr.mxu0 0.0
    %3248 = vmatpush1.xpose.msra.mxu0 0.0
    %3249 = vmatprep.subr.mxu0 0.0
    %3250 = vmatpush1.xpose.msra.mxu0 0.0
    %3251 = vmatprep.subr.mxu0 0.0
    %3252 = vmatpush1.xpose.msra.mxu0 0.0
    %3253 = vmatprep.subr.mxu0 0.0
    %3254 = vmatpush1.xpose.msra.mxu0 0.0
    %3255 = vmatprep.subr.mxu0 0.0
    %3256 = vmatpush1.xpose.msra.mxu0 0.0
    %3257 = vmatprep.subr.mxu0 0.0
    %3258 = vmatpush1.xpose.msra.mxu0 0.0
    %3259 = vmatprep.subr.mxu0 0.0
    %3260 = vmatpush1.xpose.msra.mxu0 0.0
    %3261 = vmatprep.subr.mxu0 0.0
    %3262 = vmatpush1.xpose.msra.mxu0 0.0
    %3263 = vmatprep.subr.mxu0 0.0
    %3264 = vmatpush1.xpose.msra.mxu0 0.0
    %3265 = vmatprep.subr.mxu0 0.0
    %3266 = vmatpush1.xpose.msra.mxu0 0.0
    %3267 = vmatprep.subr.mxu0 0.0
    %3268 = vmatpush1.xpose.msra.mxu0 0.0
    %3269 = vmatprep.subr.mxu0 0.0
    %3270 = vmatpush1.xpose.msra.mxu0 0.0
    %3271 = vmatprep.subr.mxu0 0.0
    %3272 = vmatpush1.xpose.msra.mxu0 0.0
    %3273 = vmatprep.subr.mxu0 0.0
    %3274 = vmatpush1.xpose.msra.mxu0 0.0
    %3275 = vmatprep.subr.mxu0 0.0
    %3276 = vmatpush1.xpose.msra.mxu0 0.0
    %3277 = vmatprep.subr.mxu0 0.0
    %3278 = vmatpush1.xpose.msra.mxu0 0.0
    %3279 = vmatprep.subr.mxu0 0.0
    %3280 = vmatpush1.xpose.msra.mxu0 0.0
    %3281 = vmatprep.subr.mxu0 0.0
    %3282 = vmatpush1.xpose.msra.mxu0 0.0
    %3283 = vmatprep.subr.mxu0 0.0
    %3284 = vmatpush1.xpose.msra.mxu0 0.0
    %3285 = vmatprep.subr.mxu0 0.0
    %3286 = vmatpush1.xpose.msra.mxu0 0.0
    %3287 = vmatprep.subr.mxu0 0.0
    %3288 = vmatpush1.xpose.msra.mxu0 0.0
    %3289 = vmatprep.subr.mxu0 0.0
    %3290 = vmatpush1.xpose.msra.mxu0 0.0
    %3291 = vmatprep.subr.mxu0 0.0
    %3292 = vmatpush1.xpose.msra.mxu0 0.0
    %3293 = vmatprep.mubr.f32.mxu0 %v2916
    %3294 = vmatmul.mubr.f32.gmra.mrb[0].mxu0 %v2914
    %v3295 = vpop.f32.mrb[0].mxu0
    %v3296 = vadd.f32 %v3226, %v3295
    %v3297 = vpop.f32.mrb[0].mxu0
    %3298 = vdwg.mxu0
    %3299 = vmatprep.subr.mxu0 %v3008
    %3300 = vmatpush1.xpose.msra.mxu0 %v3007
    %3301 = vmatprep.subr.mxu0 0.0
    %3302 = vmatpush1.xpose.msra.mxu0 0.0
    %3303 = vmatprep.subr.mxu0 0.0
    %3304 = vmatpush1.xpose.msra.mxu0 0.0
    %3305 = vmatprep.subr.mxu0 0.0
    %3306 = vmatpush1.xpose.msra.mxu0 0.0
    %3307 = vmatprep.subr.mxu0 0.0
    %3308 = vmatpush1.xpose.msra.mxu0 0.0
    %3309 = vmatprep.subr.mxu0 0.0
    %3310 = vmatpush1.xpose.msra.mxu0 0.0
    %3311 = vmatprep.subr.mxu0 0.0
    %3312 = vmatpush1.xpose.msra.mxu0 0.0
    %3313 = vmatprep.subr.mxu0 0.0
    %3314 = vmatpush1.xpose.msra.mxu0 0.0
    %3315 = vmatprep.subr.mxu0 0.0
    %3316 = vmatpush1.xpose.msra.mxu0 0.0
    %3317 = vmatprep.subr.mxu0 0.0
    %3318 = vmatpush1.xpose.msra.mxu0 0.0
    %3319 = vmatprep.subr.mxu0 0.0
    %3320 = vmatpush1.xpose.msra.mxu0 0.0
    %3321 = vmatprep.subr.mxu0 0.0
    %3322 = vmatpush1.xpose.msra.mxu0 0.0
    %3323 = vmatprep.subr.mxu0 0.0
    %3324 = vmatpush1.xpose.msra.mxu0 0.0
    %3325 = vmatprep.subr.mxu0 0.0
    %3326 = vmatpush1.xpose.msra.mxu0 0.0
    %3327 = vmatprep.subr.mxu0 0.0
    %3328 = vmatpush1.xpose.msra.mxu0 0.0
    %3329 = vmatprep.subr.mxu0 0.0
    %3330 = vmatpush1.xpose.msra.mxu0 0.0
    %3331 = vmatprep.subr.mxu0 0.0
    %3332 = vmatpush1.xpose.msra.mxu0 0.0
    %3333 = vmatprep.subr.mxu0 0.0
    %3334 = vmatpush1.xpose.msra.mxu0 0.0
    %3335 = vmatprep.subr.mxu0 0.0
    %3336 = vmatpush1.xpose.msra.mxu0 0.0
    %3337 = vmatprep.subr.mxu0 0.0
    %3338 = vmatpush1.xpose.msra.mxu0 0.0
    %3339 = vmatprep.subr.mxu0 0.0
    %3340 = vmatpush1.xpose.msra.mxu0 0.0
    %3341 = vmatprep.subr.mxu0 0.0
    %3342 = vmatpush1.xpose.msra.mxu0 0.0
    %3343 = vmatprep.subr.mxu0 0.0
    %3344 = vmatpush1.xpose.msra.mxu0 0.0
    %3345 = vmatprep.subr.mxu0 0.0
    %3346 = vmatpush1.xpose.msra.mxu0 0.0
    %3347 = vmatprep.subr.mxu0 0.0
    %3348 = vmatpush1.xpose.msra.mxu0 0.0
    %3349 = vmatprep.subr.mxu0 0.0
    %3350 = vmatpush1.xpose.msra.mxu0 0.0
    %3351 = vmatprep.subr.mxu0 0.0
    %3352 = vmatpush1.xpose.msra.mxu0 0.0
    %3353 = vmatprep.subr.mxu0 0.0
    %3354 = vmatpush1.xpose.msra.mxu0 0.0
    %3355 = vmatprep.subr.mxu0 0.0
    %3356 = vmatpush1.xpose.msra.mxu0 0.0
    %3357 = vmatprep.subr.mxu0 0.0
    %3358 = vmatpush1.xpose.msra.mxu0 0.0
    %3359 = vmatprep.subr.mxu0 0.0
    %3360 = vmatpush1.xpose.msra.mxu0 0.0
    %3361 = vmatprep.subr.mxu0 0.0
    %3362 = vmatpush1.xpose.msra.mxu0 0.0
    %3363 = vmatprep.mubr.f32.mxu0 %v2987
    %3364 = vmatmul.mubr.f32.gmra.mrb[0].mxu0 %v2985
    %v3365 = vpop.f32.mrb[0].mxu0
    %v3366 = vadd.f32 %v3296, %v3365
    %v3367 = vpop.f32.mrb[0].mxu0
    %3368 = vdwg.mxu0
    %3369 = vmatprep.subr.mxu0 %v3010
    %3370 = vmatpush1.xpose.msra.mxu0 %v3009
    %3371 = vmatprep.subr.mxu0 0.0
    %3372 = vmatpush1.xpose.msra.mxu0 0.0
    %3373 = vmatprep.subr.mxu0 0.0
    %3374 = vmatpush1.xpose.msra.mxu0 0.0
    %3375 = vmatprep.subr.mxu0 0.0
    %3376 = vmatpush1.xpose.msra.mxu0 0.0
    %3377 = vmatprep.subr.mxu0 0.0
    %3378 = vmatpush1.xpose.msra.mxu0 0.0
    %3379 = vmatprep.subr.mxu0 0.0
    %3380 = vmatpush1.xpose.msra.mxu0 0.0
    %3381 = vmatprep.subr.mxu0 0.0
    %3382 = vmatpush1.xpose.msra.mxu0 0.0
    %3383 = vmatprep.subr.mxu0 0.0
    %3384 = vmatpush1.xpose.msra.mxu0 0.0
    %3385 = vmatprep.subr.mxu0 0.0
    %3386 = vmatpush1.xpose.msra.mxu0 0.0
    %3387 = vmatprep.subr.mxu0 0.0
    %3388 = vmatpush1.xpose.msra.mxu0 0.0
    %3389 = vmatprep.subr.mxu0 0.0
    %3390 = vmatpush1.xpose.msra.mxu0 0.0
    %3391 = vmatprep.subr.mxu0 0.0
    %3392 = vmatpush1.xpose.msra.mxu0 0.0
    %3393 = vmatprep.subr.mxu0 0.0
    %3394 = vmatpush1.xpose.msra.mxu0 0.0
    %3395 = vmatprep.subr.mxu0 0.0
    %3396 = vmatpush1.xpose.msra.mxu0 0.0
    %3397 = vmatprep.subr.mxu0 0.0
    %3398 = vmatpush1.xpose.msra.mxu0 0.0
    %3399 = vmatprep.subr.mxu0 0.0
    %3400 = vmatpush1.xpose.msra.mxu0 0.0
    %3401 = vmatprep.subr.mxu0 0.0
    %3402 = vmatpush1.xpose.msra.mxu0 0.0
    %3403 = vmatprep.subr.mxu0 0.0
    %3404 = vmatpush1.xpose.msra.mxu0 0.0
    %3405 = vmatprep.subr.mxu0 0.0
    %3406 = vmatpush1.xpose.msra.mxu0 0.0
    %3407 = vmatprep.subr.mxu0 0.0
    %3408 = vmatpush1.xpose.msra.mxu0 0.0
    %3409 = vmatprep.subr.mxu0 0.0
    %3410 = vmatpush1.xpose.msra.mxu0 0.0
    %3411 = vmatprep.subr.mxu0 0.0
    %3412 = vmatpush1.xpose.msra.mxu0 0.0
    %3413 = vmatprep.subr.mxu0 0.0
    %3414 = vmatpush1.xpose.msra.mxu0 0.0
    %3415 = vmatprep.subr.mxu0 0.0
    %3416 = vmatpush1.xpose.msra.mxu0 0.0
    %3417 = vmatprep.subr.mxu0 0.0
    %3418 = vmatpush1.xpose.msra.mxu0 0.0
    %3419 = vmatprep.subr.mxu0 0.0
    %3420 = vmatpush1.xpose.msra.mxu0 0.0
    %3421 = vmatprep.subr.mxu0 0.0
    %3422 = vmatpush1.xpose.msra.mxu0 0.0
    %3423 = vmatprep.subr.mxu0 0.0
    %3424 = vmatpush1.xpose.msra.mxu0 0.0
    %3425 = vmatprep.subr.mxu0 0.0
    %3426 = vmatpush1.xpose.msra.mxu0 0.0
    %3427 = vmatprep.subr.mxu0 0.0
    %3428 = vmatpush1.xpose.msra.mxu0 0.0
    %3429 = vmatprep.subr.mxu0 0.0
    %3430 = vmatpush1.xpose.msra.mxu0 0.0
    %3431 = vmatprep.subr.mxu0 0.0
    %3432 = vmatpush1.xpose.msra.mxu0 0.0
    %3433 = vmatprep.mubr.f32.mxu0 %v1230
    %3434 = vmatmul.mubr.f32.gmra.mrb[0].mxu0 %v1228
    %v3435 = vpop.f32.mrb[0].mxu0
    %v3436 = vadd.f32 %v3366, %v3435
    %v3437 = vpop.f32.mrb[0].mxu0
    %3438 = vdwg.mxu0
    %3439 = vmatprep.subr.mxu0 %v3012
    %3440 = vmatpush1.xpose.msra.mxu0 %v3011
    %3441 = vmatprep.subr.mxu0 0.0
    %3442 = vmatpush1.xpose.msra.mxu0 0.0
    %3443 = vmatprep.subr.mxu0 0.0
    %3444 = vmatpush1.xpose.msra.mxu0 0.0
    %3445 = vmatprep.subr.mxu0 0.0
    %3446 = vmatpush1.xpose.msra.mxu0 0.0
    %3447 = vmatprep.subr.mxu0 0.0
    %3448 = vmatpush1.xpose.msra.mxu0 0.0
    %3449 = vmatprep.subr.mxu0 0.0
    %3450 = vmatpush1.xpose.msra.mxu0 0.0
    %3451 = vmatprep.subr.mxu0 0.0
    %3452 = vmatpush1.xpose.msra.mxu0 0.0
    %3453 = vmatprep.subr.mxu0 0.0
    %3454 = vmatpush1.xpose.msra.mxu0 0.0
    %3455 = vmatprep.subr.mxu0 0.0
    %3456 = vmatpush1.xpose.msra.mxu0 0.0
    %3457 = vmatprep.subr.mxu0 0.0
    %3458 = vmatpush1.xpose.msra.mxu0 0.0
    %3459 = vmatprep.subr.mxu0 0.0
    %3460 = vmatpush1.xpose.msra.mxu0 0.0
    %3461 = vmatprep.subr.mxu0 0.0
    %3462 = vmatpush1.xpose.msra.mxu0 0.0
    %3463 = vmatprep.subr.mxu0 0.0
    %3464 = vmatpush1.xpose.msra.mxu0 0.0
    %3465 = vmatprep.subr.mxu0 0.0
    %3466 = vmatpush1.xpose.msra.mxu0 0.0
    %3467 = vmatprep.subr.mxu0 0.0
    %3468 = vmatpush1.xpose.msra.mxu0 0.0
    %3469 = vmatprep.subr.mxu0 0.0
    %3470 = vmatpush1.xpose.msra.mxu0 0.0
    %3471 = vmatprep.subr.mxu0 0.0
    %3472 = vmatpush1.xpose.msra.mxu0 0.0
    %3473 = vmatprep.subr.mxu0 0.0
    %3474 = vmatpush1.xpose.msra.mxu0 0.0
    %3475 = vmatprep.subr.mxu0 0.0
    %3476 = vmatpush1.xpose.msra.mxu0 0.0
    %3477 = vmatprep.subr.mxu0 0.0
    %3478 = vmatpush1.xpose.msra.mxu0 0.0
    %3479 = vmatprep.subr.mxu0 0.0
    %3480 = vmatpush1.xpose.msra.mxu0 0.0
    %3481 = vmatprep.subr.mxu0 0.0
    %3482 = vmatpush1.xpose.msra.mxu0 0.0
    %3483 = vmatprep.subr.mxu0 0.0
    %3484 = vmatpush1.xpose.msra.mxu0 0.0
    %3485 = vmatprep.subr.mxu0 0.0
    %3486 = vmatpush1.xpose.msra.mxu0 0.0
    %3487 = vmatprep.subr.mxu0 0.0
    %3488 = vmatpush1.xpose.msra.mxu0 0.0
    %3489 = vmatprep.subr.mxu0 0.0
    %3490 = vmatpush1.xpose.msra.mxu0 0.0
    %3491 = vmatprep.subr.mxu0 0.0
    %3492 = vmatpush1.xpose.msra.mxu0 0.0
    %3493 = vmatprep.subr.mxu0 0.0
    %3494 = vmatpush1.xpose.msra.mxu0 0.0
    %3495 = vmatprep.subr.mxu0 0.0
    %3496 = vmatpush1.xpose.msra.mxu0 0.0
    %3497 = vmatprep.subr.mxu0 0.0
    %3498 = vmatpush1.xpose.msra.mxu0 0.0
    %3499 = vmatprep.subr.mxu0 0.0
    %3500 = vmatpush1.xpose.msra.mxu0 0.0
    %3501 = vmatprep.subr.mxu0 0.0
    %3502 = vmatpush1.xpose.msra.mxu0 0.0
    %3503 = vmatprep.mubr.f32.mxu0 %v1301
    %3504 = vmatmul.mubr.f32.gmra.mrb[0].mxu0 %v1299
    %v3505 = vpop.f32.mrb[0].mxu0
    %v3506 = vadd.f32 %v3436, %v3505
    %v3507 = vpop.f32.mrb[0].mxu0
    %3508 = vdwg.mxu0
    %3509 = vmatprep.subr.mxu0 %v3014
    %3510 = vmatpush1.xpose.msra.mxu0 %v3013
    %3511 = vmatprep.subr.mxu0 0.0
    %3512 = vmatpush1.xpose.msra.mxu0 0.0
    %3513 = vmatprep.subr.mxu0 0.0
    %3514 = vmatpush1.xpose.msra.mxu0 0.0
    %3515 = vmatprep.subr.mxu0 0.0
    %3516 = vmatpush1.xpose.msra.mxu0 0.0
    %3517 = vmatprep.subr.mxu0 0.0
    %3518 = vmatpush1.xpose.msra.mxu0 0.0
    %3519 = vmatprep.subr.mxu0 0.0
    %3520 = vmatpush1.xpose.msra.mxu0 0.0
    %3521 = vmatprep.subr.mxu0 0.0
    %3522 = vmatpush1.xpose.msra.mxu0 0.0
    %3523 = vmatprep.subr.mxu0 0.0
    %3524 = vmatpush1.xpose.msra.mxu0 0.0
    %3525 = vmatprep.subr.mxu0 0.0
    %3526 = vmatpush1.xpose.msra.mxu0 0.0
    %3527 = vmatprep.subr.mxu0 0.0
    %3528 = vmatpush1.xpose.msra.mxu0 0.0
    %3529 = vmatprep.subr.mxu0 0.0
    %3530 = vmatpush1.xpose.msra.mxu0 0.0
    %3531 = vmatprep.subr.mxu0 0.0
    %3532 = vmatpush1.xpose.msra.mxu0 0.0
    %3533 = vmatprep.subr.mxu0 0.0
    %3534 = vmatpush1.xpose.msra.mxu0 0.0
    %3535 = vmatprep.subr.mxu0 0.0
    %3536 = vmatpush1.xpose.msra.mxu0 0.0
    %3537 = vmatprep.subr.mxu0 0.0
    %3538 = vmatpush1.xpose.msra.mxu0 0.0
    %3539 = vmatprep.subr.mxu0 0.0
    %3540 = vmatpush1.xpose.msra.mxu0 0.0
    %3541 = vmatprep.subr.mxu0 0.0
    %3542 = vmatpush1.xpose.msra.mxu0 0.0
    %3543 = vmatprep.subr.mxu0 0.0
    %3544 = vmatpush1.xpose.msra.mxu0 0.0
    %3545 = vmatprep.subr.mxu0 0.0
    %3546 = vmatpush1.xpose.msra.mxu0 0.0
    %3547 = vmatprep.subr.mxu0 0.0
    %3548 = vmatpush1.xpose.msra.mxu0 0.0
    %3549 = vmatprep.subr.mxu0 0.0
    %3550 = vmatpush1.xpose.msra.mxu0 0.0
    %3551 = vmatprep.subr.mxu0 0.0
    %3552 = vmatpush1.xpose.msra.mxu0 0.0
    %3553 = vmatprep.subr.mxu0 0.0
    %3554 = vmatpush1.xpose.msra.mxu0 0.0
    %3555 = vmatprep.subr.mxu0 0.0
    %3556 = vmatpush1.xpose.msra.mxu0 0.0
    %3557 = vmatprep.subr.mxu0 0.0
    %3558 = vmatpush1.xpose.msra.mxu0 0.0
    %3559 = vmatprep.subr.mxu0 0.0
    %3560 = vmatpush1.xpose.msra.mxu0 0.0
    %3561 = vmatprep.subr.mxu0 0.0
    %3562 = vmatpush1.xpose.msra.mxu0 0.0
    %3563 = vmatprep.subr.mxu0 0.0
    %3564 = vmatpush1.xpose.msra.mxu0 0.0
    %3565 = vmatprep.subr.mxu0 0.0
    %3566 = vmatpush1.xpose.msra.mxu0 0.0
    %3567 = vmatprep.subr.mxu0 0.0
    %3568 = vmatpush1.xpose.msra.mxu0 0.0
    %3569 = vmatprep.subr.mxu0 0.0
    %3570 = vmatpush1.xpose.msra.mxu0 0.0
    %3571 = vmatprep.subr.mxu0 0.0
    %3572 = vmatpush1.xpose.msra.mxu0 0.0
    %3573 = vmatprep.mubr.f32.mxu0 %v1372
    %3574 = vmatmul.mubr.f32.gmra.mrb[0].mxu0 %v1370
    %v3575 = vpop.f32.mrb[0].mxu0
    %v3576 = vadd.f32 %v3506, %v3575
    %v3577 = vpop.f32.mrb[0].mxu0
    %3578 = vdwg.mxu0
    %3579 = vmatprep.subr.mxu0 %v3016
    %3580 = vmatpush1.xpose.msra.mxu0 %v3015
    %3581 = vmatprep.subr.mxu0 0.0
    %3582 = vmatpush1.xpose.msra.mxu0 0.0
    %3583 = vmatprep.subr.mxu0 0.0
    %3584 = vmatpush1.xpose.msra.mxu0 0.0
    %3585 = vmatprep.subr.mxu0 0.0
    %3586 = vmatpush1.xpose.msra.mxu0 0.0
    %3587 = vmatprep.subr.mxu0 0.0
    %3588 = vmatpush1.xpose.msra.mxu0 0.0
    %3589 = vmatprep.subr.mxu0 0.0
    %3590 = vmatpush1.xpose.msra.mxu0 0.0
    %3591 = vmatprep.subr.mxu0 0.0
    %3592 = vmatpush1.xpose.msra.mxu0 0.0
    %3593 = vmatprep.subr.mxu0 0.0
    %3594 = vmatpush1.xpose.msra.mxu0 0.0
    %3595 = vmatprep.subr.mxu0 0.0
    %3596 = vmatpush1.xpose.msra.mxu0 0.0
    %3597 = vmatprep.subr.mxu0 0.0
    %3598 = vmatpush1.xpose.msra.mxu0 0.0
    %3599 = vmatprep.subr.mxu0 0.0
    %3600 = vmatpush1.xpose.msra.mxu0 0.0
    %3601 = vmatprep.subr.mxu0 0.0
    %3602 = vmatpush1.xpose.msra.mxu0 0.0
    %3603 = vmatprep.subr.mxu0 0.0
    %3604 = vmatpush1.xpose.msra.mxu0 0.0
    %3605 = vmatprep.subr.mxu0 0.0
    %3606 = vmatpush1.xpose.msra.mxu0 0.0
    %3607 = vmatprep.subr.mxu0 0.0
    %3608 = vmatpush1.xpose.msra.mxu0 0.0
    %3609 = vmatprep.subr.mxu0 0.0
    %3610 = vmatpush1.xpose.msra.mxu0 0.0
    %3611 = vmatprep.subr.mxu0 0.0
    %3612 = vmatpush1.xpose.msra.mxu0 0.0
    %3613 = vmatprep.subr.mxu0 0.0
    %3614 = vmatpush1.xpose.msra.mxu0 0.0
    %3615 = vmatprep.subr.mxu0 0.0
    %3616 = vmatpush1.xpose.msra.mxu0 0.0
    %3617 = vmatprep.subr.mxu0 0.0
    %3618 = vmatpush1.xpose.msra.mxu0 0.0
    %3619 = vmatprep.subr.mxu0 0.0
    %3620 = vmatpush1.xpose.msra.mxu0 0.0
    %3621 = vmatprep.subr.mxu0 0.0
    %3622 = vmatpush1.xpose.msra.mxu0 0.0
    %3623 = vmatprep.subr.mxu0 0.0
    %3624 = vmatpush1.xpose.msra.mxu0 0.0
    %3625 = vmatprep.subr.mxu0 0.0
    %3626 = vmatpush1.xpose.msra.mxu0 0.0
    %3627 = vmatprep.subr.mxu0 0.0
    %3628 = vmatpush1.xpose.msra.mxu0 0.0
    %3629 = vmatprep.subr.mxu0 0.0
    %3630 = vmatpush1.xpose.msra.mxu0 0.0
    %3631 = vmatprep.subr.mxu0 0.0
    %3632 = vmatpush1.xpose.msra.mxu0 0.0
    %3633 = vmatprep.subr.mxu0 0.0
    %3634 = vmatpush1.xpose.msra.mxu0 0.0
    %3635 = vmatprep.subr.mxu0 0.0
    %3636 = vmatpush1.xpose.msra.mxu0 0.0
    %3637 = vmatprep.subr.mxu0 0.0
    %3638 = vmatpush1.xpose.msra.mxu0 0.0
    %3639 = vmatprep.subr.mxu0 0.0
    %3640 = vmatpush1.xpose.msra.mxu0 0.0
    %3641 = vmatprep.subr.mxu0 0.0
    %3642 = vmatpush1.xpose.msra.mxu0 0.0
    %3643 = vmatprep.mubr.f32.mxu0 %v1443
    %3644 = vmatmul.mubr.f32.gmra.mrb[0].mxu0 %v1441
    %v3645 = vpop.f32.mrb[0].mxu0
    %v3646 = vadd.f32 %v3576, %v3645
    %v3647 = vpop.f32.mrb[0].mxu0
    %3648 = vdwg.mxu0
    %3649 = vmatprep.subr.mxu0 %v3018
    %3650 = vmatpush1.xpose.msra.mxu0 %v3017
    %3651 = vmatprep.subr.mxu0 0.0
    %3652 = vmatpush1.xpose.msra.mxu0 0.0
    %3653 = vmatprep.subr.mxu0 0.0
    %3654 = vmatpush1.xpose.msra.mxu0 0.0
    %3655 = vmatprep.subr.mxu0 0.0
    %3656 = vmatpush1.xpose.msra.mxu0 0.0
    %3657 = vmatprep.subr.mxu0 0.0
    %3658 = vmatpush1.xpose.msra.mxu0 0.0
    %3659 = vmatprep.subr.mxu0 0.0
    %3660 = vmatpush1.xpose.msra.mxu0 0.0
    %3661 = vmatprep.subr.mxu0 0.0
    %3662 = vmatpush1.xpose.msra.mxu0 0.0
    %3663 = vmatprep.subr.mxu0 0.0
    %3664 = vmatpush1.xpose.msra.mxu0 0.0
    %3665 = vmatprep.subr.mxu0 0.0
    %3666 = vmatpush1.xpose.msra.mxu0 0.0
    %3667 = vmatprep.subr.mxu0 0.0
    %3668 = vmatpush1.xpose.msra.mxu0 0.0
    %3669 = vmatprep.subr.mxu0 0.0
    %3670 = vmatpush1.xpose.msra.mxu0 0.0
    %3671 = vmatprep.subr.mxu0 0.0
    %3672 = vmatpush1.xpose.msra.mxu0 0.0
    %3673 = vmatprep.subr.mxu0 0.0
    %3674 = vmatpush1.xpose.msra.mxu0 0.0
    %3675 = vmatprep.subr.mxu0 0.0
    %3676 = vmatpush1.xpose.msra.mxu0 0.0
    %3677 = vmatprep.subr.mxu0 0.0
    %3678 = vmatpush1.xpose.msra.mxu0 0.0
    %3679 = vmatprep.subr.mxu0 0.0
    %3680 = vmatpush1.xpose.msra.mxu0 0.0
    %3681 = vmatprep.subr.mxu0 0.0
    %3682 = vmatpush1.xpose.msra.mxu0 0.0
    %3683 = vmatprep.subr.mxu0 0.0
    %3684 = vmatpush1.xpose.msra.mxu0 0.0
    %3685 = vmatprep.subr.mxu0 0.0
    %3686 = vmatpush1.xpose.msra.mxu0 0.0
    %3687 = vmatprep.subr.mxu0 0.0
    %3688 = vmatpush1.xpose.msra.mxu0 0.0
    %3689 = vmatprep.subr.mxu0 0.0
    %3690 = vmatpush1.xpose.msra.mxu0 0.0
    %3691 = vmatprep.subr.mxu0 0.0
    %3692 = vmatpush1.xpose.msra.mxu0 0.0
    %3693 = vmatprep.subr.mxu0 0.0
    %3694 = vmatpush1.xpose.msra.mxu0 0.0
    %3695 = vmatprep.subr.mxu0 0.0
    %3696 = vmatpush1.xpose.msra.mxu0 0.0
    %3697 = vmatprep.subr.mxu0 0.0
    %3698 = vmatpush1.xpose.msra.mxu0 0.0
    %3699 = vmatprep.subr.mxu0 0.0
    %3700 = vmatpush1.xpose.msra.mxu0 0.0
    %3701 = vmatprep.subr.mxu0 0.0
    %3702 = vmatpush1.xpose.msra.mxu0 0.0
    %3703 = vmatprep.subr.mxu0 0.0
    %3704 = vmatpush1.xpose.msra.mxu0 0.0
    %3705 = vmatprep.subr.mxu0 0.0
    %3706 = vmatpush1.xpose.msra.mxu0 0.0
    %3707 = vmatprep.subr.mxu0 0.0
    %3708 = vmatpush1.xpose.msra.mxu0 0.0
    %3709 = vmatprep.subr.mxu0 0.0
    %3710 = vmatpush1.xpose.msra.mxu0 0.0
    %3711 = vmatprep.subr.mxu0 0.0
    %3712 = vmatpush1.xpose.msra.mxu0 0.0
    %3713 = vmatprep.mubr.f32.mxu0 %v1514
    %3714 = vmatmul.mubr.f32.gmra.mrb[0].mxu0 %v1512
    %v3715 = vpop.f32.mrb[0].mxu0
    %v3716 = vadd.f32 %v3646, %v3715
    %v3717 = vpop.f32.mrb[0].mxu0
    %3718 = vdwg.mxu0
    %v3719 = vld [vmem:[%s7] sm:$0x1]
    %v3721 = vlaneseq
    %v3722 = vshrl.u32 %v3721, 7
    %v3723 = vsub.s32 0, %v3722
    %v3724 = vrot.slane %v3719, %v3723
    %v3726 = vadd.f32 %v3716, %v3724
    %vm3727 = vcmask 41984
    %3728 = vst.msk [vmem:[#allocation2] sm:$0x3] %vm3727, %v3726
    // Predicated region
    $region34: #{dain_forward.1} parent=1 // pred_check
      _
    $region35: #{dain_forward.1} parent=1 // pred_check_branch
      %3730 = sbr.rel (0) target = $region37
    $region36: #{dain_forward.1} parent=1 // pred_region
      %s3732 = ssub.s32 32, 32
      %3733 = vsyncadd [#allocation3], %s3732
      %s3735 = sshll.u32 [#allocation2], 4
      %s3736 = int_to_ptr.vmem [resolvable:$true] %s3735
      %3738 = dma.vmem_to_hbm [thread:$0]  %s3736, 32, %s8, [#allocation3]
    $region37: #{dain_forward.1} parent=1 // pred_fallthru
      _
    // Predicated region
    $region38: #{dain_forward.1} parent=1 // pred_check
      _
    $region39: #{dain_forward.1} parent=1 // pred_check_branch
      %3740 = sbr.rel (0) target = $region41
    $region40: #{dain_forward.1} parent=1 // pred_region
      %3741 = dma.done [#allocation3], 32
    $region41: #{dain_forward.1} parent=1 // pred_fallthru
      _
    %3742 = vsyncpa [#allocation3], 1

</llo_original>
